<compile_context>
chip_gen: v7x
topology: tpu7x:2x2x1
jax: 0.10.0
libtpu: 0.0.40
codegen_flags: <defaults>
</compile_context>

<pallas_src>
import functools

import jax
import jax.numpy as jnp
from jax.experimental import pallas as pl
from jax.experimental.pallas import tpu as pltpu


# ----------------------------------------------------------------------------
# Pallas kernel: matmul (full-K, full-OC block) with fused affine + activation
# (+ optional fused residual add)
# ----------------------------------------------------------------------------
def _matmul_affine_kernel(x_ref, w_ref, s_ref, b_ref, *rest,
                          activation, has_residual):
    if has_residual:
        r_ref, o_ref = rest
    else:
        (o_ref,) = rest

    # bf16 x bf16 -> f32 on the MXU (single block covers all of K and OC).
    acc = jnp.dot(x_ref[...], w_ref[...], preferred_element_type=jnp.float32)

    y = acc * s_ref[...] + b_ref[...]          # folded BN / bias (f32 epilogue)
    if activation == "relu":
        y = jnp.maximum(y, 0.0)
    elif activation == "tanh":
        y = jnp.tanh(y)
    if has_residual:
        y = y + r_ref[...].astype(jnp.float32)  # fused ResnetBlock skip add

    o_ref[...] = y.astype(o_ref.dtype)


def _round_up(x, m):
    return ((x + m - 1) // m) * m


def pallas_matmul_affine(p, w, scale, shift, *, activation="none",
                         residual=None, out_dtype=jnp.bfloat16, tm_max=256):
    """out[m, n] = act(sum_k p[m,k] * w[k,n] * scale[n] + shift[n]) (+ residual)."""
    M, K = p.shape
    _, N = w.shape

    Np = _round_up(N, 128)          # lane-dense output / weight strip
    Kp = _round_up(K, 16)           # bf16 sublane alignment only
    Mp8 = _round_up(M, 8)
    if Mp8 <= tm_max:
        tm, Mp = Mp8, Mp8
    else:
        tm = tm_max
        Mp = _round_up(M, tm)

    p_b = jnp.pad(p.astype(jnp.bfloat16), ((0, Mp - M), (0, Kp - K)))
    w_b = jnp.pad(w.astype(jnp.bfloat16), ((0, Kp - K), (0, Np - N)))
    s_p = jnp.pad(scale.astype(jnp.float32), (0, Np - N)).reshape(1, Np)
    b_p = jnp.pad(shift.astype(jnp.float32), (0, Np - N)).reshape(1, Np)

    in_specs = [
        pl.BlockSpec((tm, Kp), lambda i: (i, 0)),   # streamed activation tile
        pl.BlockSpec((Kp, Np), lambda i: (0, 0)),   # weight strip, VMEM-resident
        pl.BlockSpec((1, Np), lambda i: (0, 0)),    # scale
        pl.BlockSpec((1, Np), lambda i: (0, 0)),    # shift
    ]
    inputs = [p_b, w_b, s_p, b_p]

    has_residual = residual is not None
    if has_residual:
        r_b = jnp.pad(residual.astype(jnp.bfloat16), ((0, Mp - M), (0, Np - N)))
        in_specs.append(pl.BlockSpec((tm, Np), lambda i: (i, 0)))
        inputs.append(r_b)

    out = pl.pallas_call(
        functools.partial(_matmul_affine_kernel,
                          activation=activation, has_residual=has_residual),
        out_shape=jax.ShapeDtypeStruct((Mp, Np), out_dtype),
        grid_spec=pltpu.PrefetchScalarGridSpec(
            num_scalar_prefetch=0,
            grid=(Mp // tm,),
            in_specs=in_specs,
            out_specs=pl.BlockSpec((tm, Np), lambda i: (i, 0)),
        ),
        compiler_params=pltpu.CompilerParams(
            dimension_semantics=("parallel",)),
    )(*inputs)
    return out[:M, :N]


# ----------------------------------------------------------------------------
# Conv glue: padding + im2col (plain JAX, bf16), matmul in Pallas
# ----------------------------------------------------------------------------
def _im2col(x, kh, kw, stride):
    n, h, w, c = x.shape
    oh = (h - kh) // stride + 1
    ow = (w - kw) // stride + 1
    patches = []
    for i in range(kh):
        for j in range(kw):
            patches.append(
                x[:, i:i + stride * oh:stride, j:j + stride * ow:stride, :]
            )
    p = jnp.concatenate(patches, axis=-1)  # (n, oh, ow, kh*kw*c)
    return p.reshape(n * oh * ow, kh * kw * c), (n, oh, ow)


def conv_bn_act(x, w, scale, shift, *, stride=1, pad=0, pad_mode="zero",
                activation="none", residual=None, out_dtype=jnp.bfloat16):
    """x: (N,H,W,C); w: (KH,KW,C,OC); scale/shift: (OC,); residual: (N,OH,OW,OC)."""
    kh, kw, c, oc = w.shape
    x = x.astype(jnp.bfloat16)
    if pad > 0:
        mode = "reflect" if pad_mode == "reflect" else "constant"
        x = jnp.pad(x, ((0, 0), (pad, pad), (pad, pad), (0, 0)), mode=mode)
    patches, (n, oh, ow) = _im2col(x, kh, kw, stride)
    res_flat = None
    if residual is not None:
        res_flat = residual.reshape(n * oh * ow, oc)
    out = pallas_matmul_affine(
        patches, w.reshape(kh * kw * c, oc), scale, shift,
        activation=activation, residual=res_flat, out_dtype=out_dtype)
    return out.reshape(n, oh, ow, oc)


# ----------------------------------------------------------------------------
# Parameter initialization (deterministic, synthetic)
# ----------------------------------------------------------------------------
_BN_EPS = 1e-5


def _bn_fold(gamma, beta):
    # eval-mode BN with running_mean=0, running_var=1
    scale = gamma / jnp.sqrt(1.0 + _BN_EPS)
    shift = beta
    return scale, shift


def init_params(key, input_nc, ngf):
    ks = iter(jax.random.split(key, 64))

    def conv_w(kh, kw, cin, cout):
        return 0.1 * jax.random.normal(next(ks), (kh, kw, cin, cout), jnp.float32)

    def bn(c):
        gamma = 1.0 + 0.05 * jax.random.normal(next(ks), (c,), jnp.float32)
        beta = 0.05 * jax.random.normal(next(ks), (c,), jnp.float32)
        return _bn_fold(gamma, beta)

    P = {}
    # stem: conv7x7 input_nc -> ngf
    P["w0"] = conv_w(7, 7, input_nc, ngf)
    P["s0"], P["b0"] = bn(ngf)
    # downsample 1: ngf -> 2ngf
    P["w1"] = conv_w(3, 3, ngf, 2 * ngf)
    P["s1"], P["b1"] = bn(2 * ngf)
    # downsample 2: 2ngf -> 4ngf
    P["w2"] = conv_w(3, 3, 2 * ngf, 4 * ngf)
    P["s2"], P["b2"] = bn(4 * ngf)
    # 3 resnet blocks at 4ngf
    dim = 4 * ngf
    for b in range(3):
        P[f"rb{b}_w1"] = conv_w(3, 3, dim, dim)
        P[f"rb{b}_s1"], P[f"rb{b}_b1"] = bn(dim)
        P[f"rb{b}_w2"] = conv_w(3, 3, dim, dim)
        P[f"rb{b}_s2"], P[f"rb{b}_b2"] = bn(dim)
    # final conv7x7 4ngf -> 128 (with bias), tanh
    P["wf"] = conv_w(7, 7, dim, 128)
    P["bf"] = 0.05 * jax.random.normal(next(ks), (128,), jnp.float32)
    P["sf"] = jnp.ones((128,), jnp.float32)
    return P


# ----------------------------------------------------------------------------
# G_1 forward
# ----------------------------------------------------------------------------
def g1_forward(x_nhwc, P):
    x = conv_bn_act(x_nhwc, P["w0"], P["s0"], P["b0"],
                    stride=1, pad=3, pad_mode="reflect", activation="relu")
    x = conv_bn_act(x, P["w1"], P["s1"], P["b1"],
                    stride=2, pad=1, pad_mode="zero", activation="relu")
    x = conv_bn_act(x, P["w2"], P["s2"], P["b2"],
                    stride=2, pad=1, pad_mode="zero", activation="relu")
    for b in range(3):
        y = conv_bn_act(x, P[f"rb{b}_w1"], P[f"rb{b}_s1"], P[f"rb{b}_b1"],
                        stride=1, pad=1, pad_mode="reflect", activation="relu")
        # second conv of the block: BN only, residual add fused in the epilogue
        x = conv_bn_act(y, P[f"rb{b}_w2"], P[f"rb{b}_s2"], P[f"rb{b}_b2"],
                        stride=1, pad=1, pad_mode="reflect", activation="none",
                        residual=x)
    x = conv_bn_act(x, P["wf"], P["sf"], P["bf"],
                    stride=1, pad=3, pad_mode="reflect", activation="tanh",
                    out_dtype=jnp.float32)
    return x  # (N, H/4, W/4, 128) float32


if __name__ == "__main__":
    key = jax.random.PRNGKey(0)
    k_x, k_p = jax.random.split(key)

    # Reference PyTorch input would be NCHW (2, 3, 16, 16); kernel uses NHWC.
    N, C, H, W = 2, 3, 16, 16
    ngf = 8  # small ngf for the synthetic run (PyTorch default is 64)
    x_nchw = jax.random.normal(k_x, (N, C, H, W), jnp.float32)
    x_nhwc = jnp.transpose(x_nchw, (0, 2, 3, 1))

    params = init_params(k_p, input_nc=C, ngf=ngf)

    out = jax.jit(g1_forward)(x_nhwc, params)
    out = jax.block_until_ready(out)

    expected_shape = (N, H // 4, W // 4, 128)
    assert out.shape == expected_shape, (out.shape, expected_shape)
    assert bool(jnp.all(jnp.isfinite(out)))
    assert bool(jnp.all(jnp.abs(out) <= 1.0 + 1e-6))  # tanh output range
    print("KERNEL_OK")
</pallas_src>

<mosaic_0001>
module attributes {stable_mosaic.version = 11 : i64} {
  func.func @_matmul_affine_kernel(%arg0: i32, %arg1: memref<256x160xbf16, #tpu.memory_space<vmem>>, %arg2: memref<160x128xbf16, #tpu.memory_space<vmem>>, %arg3: memref<1x128xf32, #tpu.memory_space<vmem>>, %arg4: memref<1x128xf32, #tpu.memory_space<vmem>>, %arg5: memref<256x128xbf16, #tpu.memory_space<vmem>>) attributes {dimension_semantics = [#tpu.dimension_semantics<parallel>], iteration_bounds = array<i64: 2>, scalar_prefetch = 0 : i64, scratch_operands = 0 : i64, tpu.core_type = #tpu.core_type<tc>, window_params = [{transform_indices = @transform_0, window_bounds = array<i64: 256, 160>}, {pipeline_mode = #tpu.pipeline_mode<synchronous>, transform_indices = @transform_1, window_bounds = array<i64: 160, 128>}, {pipeline_mode = #tpu.pipeline_mode<synchronous>, transform_indices = @transform_2, window_bounds = array<i64: 1, 128>}, {pipeline_mode = #tpu.pipeline_mode<synchronous>, transform_indices = @transform_3, window_bounds = array<i64: 1, 128>}, {transform_indices = @transform_4, window_bounds = array<i64: 256, 128>}]} {
    %c0 = arith.constant 0 : index
    %c0_0 = arith.constant 0 : index
    %0 = vector.load %arg1[%c0, %c0_0] : memref<256x160xbf16, #tpu.memory_space<vmem>>, vector<256x160xbf16>
    %c0_1 = arith.constant 0 : index
    %c0_2 = arith.constant 0 : index
    %1 = vector.load %arg2[%c0_1, %c0_2] : memref<160x128xbf16, #tpu.memory_space<vmem>>, vector<160x128xbf16>
    %cst = arith.constant dense<0.000000e+00> : vector<256x128xf32>
    %2 = tpu.matmul %0, %1, %cst {dimension_numbers = #tpu.dot_dimension_numbers<[1], [0], [0], [1], [0, 0, 1, 1], [], []>} : vector<256x160xbf16>, vector<160x128xbf16>, vector<256x128xf32> -> vector<256x128xf32>
    %c0_3 = arith.constant 0 : index
    %c0_4 = arith.constant 0 : index
    %3 = vector.load %arg3[%c0_3, %c0_4] : memref<1x128xf32, #tpu.memory_space<vmem>>, vector<1x128xf32>
    %4 = vector.broadcast %3 : vector<1x128xf32> to vector<256x128xf32>
    %5 = arith.mulf %2, %4 : vector<256x128xf32>
    %c0_5 = arith.constant 0 : index
    %c0_6 = arith.constant 0 : index
    %6 = vector.load %arg4[%c0_5, %c0_6] : memref<1x128xf32, #tpu.memory_space<vmem>>, vector<1x128xf32>
    %7 = vector.broadcast %6 : vector<1x128xf32> to vector<256x128xf32>
    %8 = arith.addf %5, %7 : vector<256x128xf32>
    %cst_7 = arith.constant 0.000000e+00 : f32
    %9 = vector.broadcast %cst_7 : f32 to vector<256x128xf32>
    %10 = arith.maximumf %8, %9 : vector<256x128xf32>
    %11 = arith.truncf %10 : vector<256x128xf32> to vector<256x128xbf16>
    %c0_8 = arith.constant 0 : index
    %c0_9 = arith.constant 0 : index
    %12 = vector.load %arg5[%c0_8, %c0_9] : memref<256x128xbf16, #tpu.memory_space<vmem>>, vector<256x128xbf16>
    tpu.vector_store %arg5[%c0_8, %c0_9], %11 {strides = array<i32>} : memref<256x128xbf16, #tpu.memory_space<vmem>>, vector<256x128xbf16>,
    return
  }
  func.func @transform_0(%arg0: i32) -> (i32, i32) {
    %c0_i32 = arith.constant 0 : i32
    %c0_i32_0 = arith.constant 0 : i32
    return %arg0, %c0_i32 : i32, i32
  }
  func.func @transform_1(%arg0: i32) -> (i32, i32) {
    %c0_i32 = arith.constant 0 : i32
    %c0_i32_0 = arith.constant 0 : i32
    %c0_i32_1 = arith.constant 0 : i32
    return %c0_i32, %c0_i32_0 : i32, i32
  }
  func.func @transform_2(%arg0: i32) -> (i32, i32) {
    %c0_i32 = arith.constant 0 : i32
    %c0_i32_0 = arith.constant 0 : i32
    %c0_i32_1 = arith.constant 0 : i32
    return %c0_i32, %c0_i32_0 : i32, i32
  }
  func.func @transform_3(%arg0: i32) -> (i32, i32) {
    %c0_i32 = arith.constant 0 : i32
    %c0_i32_0 = arith.constant 0 : i32
    %c0_i32_1 = arith.constant 0 : i32
    return %c0_i32, %c0_i32_0 : i32, i32
  }
  func.func @transform_4(%arg0: i32) -> (i32, i32) {
    %c0_i32 = arith.constant 0 : i32
    %c0_i32_0 = arith.constant 0 : i32
    return %arg0, %c0_i32 : i32, i32
  }
}

module attributes {stable_mosaic.version = 11 : i64} {
  func.func @_matmul_affine_kernel(%arg0: i32, %arg1: memref<128x80xbf16, #tpu.memory_space<vmem>>, %arg2: memref<80x128xbf16, #tpu.memory_space<vmem>>, %arg3: memref<1x128xf32, #tpu.memory_space<vmem>>, %arg4: memref<1x128xf32, #tpu.memory_space<vmem>>, %arg5: memref<128x128xbf16, #tpu.memory_space<vmem>>) attributes {dimension_semantics = [#tpu.dimension_semantics<parallel>], iteration_bounds = array<i64: 1>, scalar_prefetch = 0 : i64, scratch_operands = 0 : i64, tpu.core_type = #tpu.core_type<tc>, window_params = [{transform_indices = @transform_0, window_bounds = array<i64: 128, 80>}, {pipeline_mode = #tpu.pipeline_mode<synchronous>, transform_indices = @transform_1, window_bounds = array<i64: 80, 128>}, {pipeline_mode = #tpu.pipeline_mode<synchronous>, transform_indices = @transform_2, window_bounds = array<i64: 1, 128>}, {pipeline_mode = #tpu.pipeline_mode<synchronous>, transform_indices = @transform_3, window_bounds = array<i64: 1, 128>}, {transform_indices = @transform_4, window_bounds = array<i64: 128, 128>}]} {
    %c0 = arith.constant 0 : index
    %c0_0 = arith.constant 0 : index
    %0 = vector.load %arg1[%c0, %c0_0] : memref<128x80xbf16, #tpu.memory_space<vmem>>, vector<128x80xbf16>
    %c0_1 = arith.constant 0 : index
    %c0_2 = arith.constant 0 : index
    %1 = vector.load %arg2[%c0_1, %c0_2] : memref<80x128xbf16, #tpu.memory_space<vmem>>, vector<80x128xbf16>
    %cst = arith.constant dense<0.000000e+00> : vector<128x128xf32>
    %2 = tpu.matmul %0, %1, %cst {dimension_numbers = #tpu.dot_dimension_numbers<[1], [0], [0], [1], [0, 0, 1, 1], [], []>} : vector<128x80xbf16>, vector<80x128xbf16>, vector<128x128xf32> -> vector<128x128xf32>
    %c0_3 = arith.constant 0 : index
    %c0_4 = arith.constant 0 : index
    %3 = vector.load %arg3[%c0_3, %c0_4] : memref<1x128xf32, #tpu.memory_space<vmem>>, vector<1x128xf32>
    %4 = vector.broadcast %3 : vector<1x128xf32> to vector<128x128xf32>
    %5 = arith.mulf %2, %4 : vector<128x128xf32>
    %c0_5 = arith.constant 0 : index
    %c0_6 = arith.constant 0 : index
    %6 = vector.load %arg4[%c0_5, %c0_6] : memref<1x128xf32, #tpu.memory_space<vmem>>, vector<1x128xf32>
    %7 = vector.broadcast %6 : vector<1x128xf32> to vector<128x128xf32>
    %8 = arith.addf %5, %7 : vector<128x128xf32>
    %cst_7 = arith.constant 0.000000e+00 : f32
    %9 = vector.broadcast %cst_7 : f32 to vector<128x128xf32>
    %10 = arith.maximumf %8, %9 : vector<128x128xf32>
    %11 = arith.truncf %10 : vector<128x128xf32> to vector<128x128xbf16>
    %c0_8 = arith.constant 0 : index
    %c0_9 = arith.constant 0 : index
    %12 = vector.load %arg5[%c0_8, %c0_9] : memref<128x128xbf16, #tpu.memory_space<vmem>>, vector<128x128xbf16>
    tpu.vector_store %arg5[%c0_8, %c0_9], %11 {strides = array<i32>} : memref<128x128xbf16, #tpu.memory_space<vmem>>, vector<128x128xbf16>,
    return
  }
  func.func @transform_0(%arg0: i32) -> (i32, i32) {
    %c0_i32 = arith.constant 0 : i32
    %c0_i32_0 = arith.constant 0 : i32
    return %arg0, %c0_i32 : i32, i32
  }
  func.func @transform_1(%arg0: i32) -> (i32, i32) {
    %c0_i32 = arith.constant 0 : i32
    %c0_i32_0 = arith.constant 0 : i32
    %c0_i32_1 = arith.constant 0 : i32
    return %c0_i32, %c0_i32_0 : i32, i32
  }
  func.func @transform_2(%arg0: i32) -> (i32, i32) {
    %c0_i32 = arith.constant 0 : i32
    %c0_i32_0 = arith.constant 0 : i32
    %c0_i32_1 = arith.constant 0 : i32
    return %c0_i32, %c0_i32_0 : i32, i32
  }
  func.func @transform_3(%arg0: i32) -> (i32, i32) {
    %c0_i32 = arith.constant 0 : i32
    %c0_i32_0 = arith.constant 0 : i32
    %c0_i32_1 = arith.constant 0 : i32
    return %c0_i32, %c0_i32_0 : i32, i32
  }
  func.func @transform_4(%arg0: i32) -> (i32, i32) {
    %c0_i32 = arith.constant 0 : i32
    %c0_i32_0 = arith.constant 0 : i32
    return %arg0, %c0_i32 : i32, i32
  }
}

module attributes {stable_mosaic.version = 11 : i64} {
  func.func @_matmul_affine_kernel(%arg0: i32, %arg1: memref<32x144xbf16, #tpu.memory_space<vmem>>, %arg2: memref<144x128xbf16, #tpu.memory_space<vmem>>, %arg3: memref<1x128xf32, #tpu.memory_space<vmem>>, %arg4: memref<1x128xf32, #tpu.memory_space<vmem>>, %arg5: memref<32x128xbf16, #tpu.memory_space<vmem>>) attributes {dimension_semantics = [#tpu.dimension_semantics<parallel>], iteration_bounds = array<i64: 1>, scalar_prefetch = 0 : i64, scratch_operands = 0 : i64, tpu.core_type = #tpu.core_type<tc>, window_params = [{transform_indices = @transform_0, window_bounds = array<i64: 32, 144>}, {pipeline_mode = #tpu.pipeline_mode<synchronous>, transform_indices = @transform_1, window_bounds = array<i64: 144, 128>}, {pipeline_mode = #tpu.pipeline_mode<synchronous>, transform_indices = @transform_2, window_bounds = array<i64: 1, 128>}, {pipeline_mode = #tpu.pipeline_mode<synchronous>, transform_indices = @transform_3, window_bounds = array<i64: 1, 128>}, {transform_indices = @transform_4, window_bounds = array<i64: 32, 128>}]} {
    %c0 = arith.constant 0 : index
    %c0_0 = arith.constant 0 : index
    %0 = vector.load %arg1[%c0, %c0_0] : memref<32x144xbf16, #tpu.memory_space<vmem>>, vector<32x144xbf16>
    %c0_1 = arith.constant 0 : index
    %c0_2 = arith.constant 0 : index
    %1 = vector.load %arg2[%c0_1, %c0_2] : memref<144x128xbf16, #tpu.memory_space<vmem>>, vector<144x128xbf16>
    %cst = arith.constant dense<0.000000e+00> : vector<32x128xf32>
    %2 = tpu.matmul %0, %1, %cst {dimension_numbers = #tpu.dot_dimension_numbers<[1], [0], [0], [1], [0, 0, 1, 1], [], []>} : vector<32x144xbf16>, vector<144x128xbf16>, vector<32x128xf32> -> vector<32x128xf32>
    %c0_3 = arith.constant 0 : index
    %c0_4 = arith.constant 0 : index
    %3 = vector.load %arg3[%c0_3, %c0_4] : memref<1x128xf32, #tpu.memory_space<vmem>>, vector<1x128xf32>
    %4 = vector.broadcast %3 : vector<1x128xf32> to vector<32x128xf32>
    %5 = arith.mulf %2, %4 : vector<32x128xf32>
    %c0_5 = arith.constant 0 : index
    %c0_6 = arith.constant 0 : index
    %6 = vector.load %arg4[%c0_5, %c0_6] : memref<1x128xf32, #tpu.memory_space<vmem>>, vector<1x128xf32>
    %7 = vector.broadcast %6 : vector<1x128xf32> to vector<32x128xf32>
    %8 = arith.addf %5, %7 : vector<32x128xf32>
    %cst_7 = arith.constant 0.000000e+00 : f32
    %9 = vector.broadcast %cst_7 : f32 to vector<32x128xf32>
    %10 = arith.maximumf %8, %9 : vector<32x128xf32>
    %11 = arith.truncf %10 : vector<32x128xf32> to vector<32x128xbf16>
    %c0_8 = arith.constant 0 : index
    %c0_9 = arith.constant 0 : index
    %12 = vector.load %arg5[%c0_8, %c0_9] : memref<32x128xbf16, #tpu.memory_space<vmem>>, vector<32x128xbf16>
    tpu.vector_store %arg5[%c0_8, %c0_9], %11 {strides = array<i32>} : memref<32x128xbf16, #tpu.memory_space<vmem>>, vector<32x128xbf16>,
    return
  }
  func.func @transform_0(%arg0: i32) -> (i32, i32) {
    %c0_i32 = arith.constant 0 : i32
    %c0_i32_0 = arith.constant 0 : i32
    return %arg0, %c0_i32 : i32, i32
  }
  func.func @transform_1(%arg0: i32) -> (i32, i32) {
    %c0_i32 = arith.constant 0 : i32
    %c0_i32_0 = arith.constant 0 : i32
    %c0_i32_1 = arith.constant 0 : i32
    return %c0_i32, %c0_i32_0 : i32, i32
  }
  func.func @transform_2(%arg0: i32) -> (i32, i32) {
    %c0_i32 = arith.constant 0 : i32
    %c0_i32_0 = arith.constant 0 : i32
    %c0_i32_1 = arith.constant 0 : i32
    return %c0_i32, %c0_i32_0 : i32, i32
  }
  func.func @transform_3(%arg0: i32) -> (i32, i32) {
    %c0_i32 = arith.constant 0 : i32
    %c0_i32_0 = arith.constant 0 : i32
    %c0_i32_1 = arith.constant 0 : i32
    return %c0_i32, %c0_i32_0 : i32, i32
  }
  func.func @transform_4(%arg0: i32) -> (i32, i32) {
    %c0_i32 = arith.constant 0 : i32
    %c0_i32_0 = arith.constant 0 : i32
    return %arg0, %c0_i32 : i32, i32
  }
}

module attributes {stable_mosaic.version = 11 : i64} {
  func.func @_matmul_affine_kernel(%arg0: i32, %arg1: memref<32x288xbf16, #tpu.memory_space<vmem>>, %arg2: memref<288x128xbf16, #tpu.memory_space<vmem>>, %arg3: memref<1x128xf32, #tpu.memory_space<vmem>>, %arg4: memref<1x128xf32, #tpu.memory_space<vmem>>, %arg5: memref<32x128xbf16, #tpu.memory_space<vmem>>) attributes {dimension_semantics = [#tpu.dimension_semantics<parallel>], iteration_bounds = array<i64: 1>, scalar_prefetch = 0 : i64, scratch_operands = 0 : i64, tpu.core_type = #tpu.core_type<tc>, window_params = [{transform_indices = @transform_0, window_bounds = array<i64: 32, 288>}, {pipeline_mode = #tpu.pipeline_mode<synchronous>, transform_indices = @transform_1, window_bounds = array<i64: 288, 128>}, {pipeline_mode = #tpu.pipeline_mode<synchronous>, transform_indices = @transform_2, window_bounds = array<i64: 1, 128>}, {pipeline_mode = #tpu.pipeline_mode<synchronous>, transform_indices = @transform_3, window_bounds = array<i64: 1, 128>}, {transform_indices = @transform_4, window_bounds = array<i64: 32, 128>}]} {
    %c0 = arith.constant 0 : index
    %c0_0 = arith.constant 0 : index
    %0 = vector.load %arg1[%c0, %c0_0] : memref<32x288xbf16, #tpu.memory_space<vmem>>, vector<32x288xbf16>
    %c0_1 = arith.constant 0 : index
    %c0_2 = arith.constant 0 : index
    %1 = vector.load %arg2[%c0_1, %c0_2] : memref<288x128xbf16, #tpu.memory_space<vmem>>, vector<288x128xbf16>
    %cst = arith.constant dense<0.000000e+00> : vector<32x128xf32>
    %2 = tpu.matmul %0, %1, %cst {dimension_numbers = #tpu.dot_dimension_numbers<[1], [0], [0], [1], [0, 0, 1, 1], [], []>} : vector<32x288xbf16>, vector<288x128xbf16>, vector<32x128xf32> -> vector<32x128xf32>
    %c0_3 = arith.constant 0 : index
    %c0_4 = arith.constant 0 : index
    %3 = vector.load %arg3[%c0_3, %c0_4] : memref<1x128xf32, #tpu.memory_space<vmem>>, vector<1x128xf32>
    %4 = vector.broadcast %3 : vector<1x128xf32> to vector<32x128xf32>
    %5 = arith.mulf %2, %4 : vector<32x128xf32>
    %c0_5 = arith.constant 0 : index
    %c0_6 = arith.constant 0 : index
    %6 = vector.load %arg4[%c0_5, %c0_6] : memref<1x128xf32, #tpu.memory_space<vmem>>, vector<1x128xf32>
    %7 = vector.broadcast %6 : vector<1x128xf32> to vector<32x128xf32>
    %8 = arith.addf %5, %7 : vector<32x128xf32>
    %cst_7 = arith.constant 0.000000e+00 : f32
    %9 = vector.broadcast %cst_7 : f32 to vector<32x128xf32>
    %10 = arith.maximumf %8, %9 : vector<32x128xf32>
    %11 = arith.truncf %10 : vector<32x128xf32> to vector<32x128xbf16>
    %c0_8 = arith.constant 0 : index
    %c0_9 = arith.constant 0 : index
    %12 = vector.load %arg5[%c0_8, %c0_9] : memref<32x128xbf16, #tpu.memory_space<vmem>>, vector<32x128xbf16>
    tpu.vector_store %arg5[%c0_8, %c0_9], %11 {strides = array<i32>} : memref<32x128xbf16, #tpu.memory_space<vmem>>, vector<32x128xbf16>,
    return
  }
  func.func @transform_0(%arg0: i32) -> (i32, i32) {
    %c0_i32 = arith.constant 0 : i32
    %c0_i32_0 = arith.constant 0 : i32
    return %arg0, %c0_i32 : i32, i32
  }
  func.func @transform_1(%arg0: i32) -> (i32, i32) {
    %c0_i32 = arith.constant 0 : i32
    %c0_i32_0 = arith.constant 0 : i32
    %c0_i32_1 = arith.constant 0 : i32
    return %c0_i32, %c0_i32_0 : i32, i32
  }
  func.func @transform_2(%arg0: i32) -> (i32, i32) {
    %c0_i32 = arith.constant 0 : i32
    %c0_i32_0 = arith.constant 0 : i32
    %c0_i32_1 = arith.constant 0 : i32
    return %c0_i32, %c0_i32_0 : i32, i32
  }
  func.func @transform_3(%arg0: i32) -> (i32, i32) {
    %c0_i32 = arith.constant 0 : i32
    %c0_i32_0 = arith.constant 0 : i32
    %c0_i32_1 = arith.constant 0 : i32
    return %c0_i32, %c0_i32_0 : i32, i32
  }
  func.func @transform_4(%arg0: i32) -> (i32, i32) {
    %c0_i32 = arith.constant 0 : i32
    %c0_i32_0 = arith.constant 0 : i32
    return %arg0, %c0_i32 : i32, i32
  }
}

module attributes {stable_mosaic.version = 11 : i64} {
  func.func @_matmul_affine_kernel(%arg0: i32, %arg1: memref<32x288xbf16, #tpu.memory_space<vmem>>, %arg2: memref<288x128xbf16, #tpu.memory_space<vmem>>, %arg3: memref<1x128xf32, #tpu.memory_space<vmem>>, %arg4: memref<1x128xf32, #tpu.memory_space<vmem>>, %arg5: memref<32x128xbf16, #tpu.memory_space<vmem>>, %arg6: memref<32x128xbf16, #tpu.memory_space<vmem>>) attributes {dimension_semantics = [#tpu.dimension_semantics<parallel>], iteration_bounds = array<i64: 1>, scalar_prefetch = 0 : i64, scratch_operands = 0 : i64, tpu.core_type = #tpu.core_type<tc>, window_params = [{transform_indices = @transform_0, window_bounds = array<i64: 32, 288>}, {pipeline_mode = #tpu.pipeline_mode<synchronous>, transform_indices = @transform_1, window_bounds = array<i64: 288, 128>}, {pipeline_mode = #tpu.pipeline_mode<synchronous>, transform_indices = @transform_2, window_bounds = array<i64: 1, 128>}, {pipeline_mode = #tpu.pipeline_mode<synchronous>, transform_indices = @transform_3, window_bounds = array<i64: 1, 128>}, {transform_indices = @transform_4, window_bounds = array<i64: 32, 128>}, {transform_indices = @transform_5, window_bounds = array<i64: 32, 128>}]} {
    %c0 = arith.constant 0 : index
    %c0_0 = arith.constant 0 : index
    %0 = vector.load %arg1[%c0, %c0_0] : memref<32x288xbf16, #tpu.memory_space<vmem>>, vector<32x288xbf16>
    %c0_1 = arith.constant 0 : index
    %c0_2 = arith.constant 0 : index
    %1 = vector.load %arg2[%c0_1, %c0_2] : memref<288x128xbf16, #tpu.memory_space<vmem>>, vector<288x128xbf16>
    %cst = arith.constant dense<0.000000e+00> : vector<32x128xf32>
    %2 = tpu.matmul %0, %1, %cst {dimension_numbers = #tpu.dot_dimension_numbers<[1], [0], [0], [1], [0, 0, 1, 1], [], []>} : vector<32x288xbf16>, vector<288x128xbf16>, vector<32x128xf32> -> vector<32x128xf32>
    %c0_3 = arith.constant 0 : index
    %c0_4 = arith.constant 0 : index
    %3 = vector.load %arg3[%c0_3, %c0_4] : memref<1x128xf32, #tpu.memory_space<vmem>>, vector<1x128xf32>
    %4 = vector.broadcast %3 : vector<1x128xf32> to vector<32x128xf32>
    %5 = arith.mulf %2, %4 : vector<32x128xf32>
    %c0_5 = arith.constant 0 : index
    %c0_6 = arith.constant 0 : index
    %6 = vector.load %arg4[%c0_5, %c0_6] : memref<1x128xf32, #tpu.memory_space<vmem>>, vector<1x128xf32>
    %7 = vector.broadcast %6 : vector<1x128xf32> to vector<32x128xf32>
    %8 = arith.addf %5, %7 : vector<32x128xf32>
    %c0_7 = arith.constant 0 : index
    %c0_8 = arith.constant 0 : index
    %9 = vector.load %arg5[%c0_7, %c0_8] : memref<32x128xbf16, #tpu.memory_space<vmem>>, vector<32x128xbf16>
    %10 = arith.extf %9 : vector<32x128xbf16> to vector<32x128xf32>
    %11 = arith.addf %8, %10 : vector<32x128xf32>
    %12 = arith.truncf %11 : vector<32x128xf32> to vector<32x128xbf16>
    %c0_9 = arith.constant 0 : index
    %c0_10 = arith.constant 0 : index
    %13 = vector.load %arg6[%c0_9, %c0_10] : memref<32x128xbf16, #tpu.memory_space<vmem>>, vector<32x128xbf16>
    tpu.vector_store %arg6[%c0_9, %c0_10], %12 {strides = array<i32>} : memref<32x128xbf16, #tpu.memory_space<vmem>>, vector<32x128xbf16>,
    return
  }
  func.func @transform_0(%arg0: i32) -> (i32, i32) {
    %c0_i32 = arith.constant 0 : i32
    %c0_i32_0 = arith.constant 0 : i32
    return %arg0, %c0_i32 : i32, i32
  }
  func.func @transform_1(%arg0: i32) -> (i32, i32) {
    %c0_i32 = arith.constant 0 : i32
    %c0_i32_0 = arith.constant 0 : i32
    %c0_i32_1 = arith.constant 0 : i32
    return %c0_i32, %c0_i32_0 : i32, i32
  }
  func.func @transform_2(%arg0: i32) -> (i32, i32) {
    %c0_i32 = arith.constant 0 : i32
    %c0_i32_0 = arith.constant 0 : i32
    %c0_i32_1 = arith.constant 0 : i32
    return %c0_i32, %c0_i32_0 : i32, i32
  }
  func.func @transform_3(%arg0: i32) -> (i32, i32) {
    %c0_i32 = arith.constant 0 : i32
    %c0_i32_0 = arith.constant 0 : i32
    %c0_i32_1 = arith.constant 0 : i32
    return %c0_i32, %c0_i32_0 : i32, i32
  }
  func.func @transform_4(%arg0: i32) -> (i32, i32) {
    %c0_i32 = arith.constant 0 : i32
    %c0_i32_0 = arith.constant 0 : i32
    return %arg0, %c0_i32 : i32, i32
  }
  func.func @transform_5(%arg0: i32) -> (i32, i32) {
    %c0_i32 = arith.constant 0 : i32
    %c0_i32_0 = arith.constant 0 : i32
    return %arg0, %c0_i32 : i32, i32
  }
}

module attributes {stable_mosaic.version = 11 : i64} {
  func.func @_matmul_affine_kernel(%arg0: i32, %arg1: memref<32x1568xbf16, #tpu.memory_space<vmem>>, %arg2: memref<1568x128xbf16, #tpu.memory_space<vmem>>, %arg3: memref<1x128xf32, #tpu.memory_space<vmem>>, %arg4: memref<1x128xf32, #tpu.memory_space<vmem>>, %arg5: memref<32x128xf32, #tpu.memory_space<vmem>>) attributes {dimension_semantics = [#tpu.dimension_semantics<parallel>], iteration_bounds = array<i64: 1>, scalar_prefetch = 0 : i64, scratch_operands = 0 : i64, tpu.core_type = #tpu.core_type<tc>, window_params = [{transform_indices = @transform_0, window_bounds = array<i64: 32, 1568>}, {pipeline_mode = #tpu.pipeline_mode<synchronous>, transform_indices = @transform_1, window_bounds = array<i64: 1568, 128>}, {pipeline_mode = #tpu.pipeline_mode<synchronous>, transform_indices = @transform_2, window_bounds = array<i64: 1, 128>}, {pipeline_mode = #tpu.pipeline_mode<synchronous>, transform_indices = @transform_3, window_bounds = array<i64: 1, 128>}, {transform_indices = @transform_4, window_bounds = array<i64: 32, 128>}]} {
    %c0 = arith.constant 0 : index
    %c0_0 = arith.constant 0 : index
    %0 = vector.load %arg1[%c0, %c0_0] : memref<32x1568xbf16, #tpu.memory_space<vmem>>, vector<32x1568xbf16>
    %c0_1 = arith.constant 0 : index
    %c0_2 = arith.constant 0 : index
    %1 = vector.load %arg2[%c0_1, %c0_2] : memref<1568x128xbf16, #tpu.memory_space<vmem>>, vector<1568x128xbf16>
    %cst = arith.constant dense<0.000000e+00> : vector<32x128xf32>
    %2 = tpu.matmul %0, %1, %cst {dimension_numbers = #tpu.dot_dimension_numbers<[1], [0], [0], [1], [0, 0, 1, 1], [], []>} : vector<32x1568xbf16>, vector<1568x128xbf16>, vector<32x128xf32> -> vector<32x128xf32>
    %c0_3 = arith.constant 0 : index
    %c0_4 = arith.constant 0 : index
    %3 = vector.load %arg3[%c0_3, %c0_4] : memref<1x128xf32, #tpu.memory_space<vmem>>, vector<1x128xf32>
    %4 = vector.broadcast %3 : vector<1x128xf32> to vector<32x128xf32>
    %5 = arith.mulf %2, %4 : vector<32x128xf32>
    %c0_5 = arith.constant 0 : index
    %c0_6 = arith.constant 0 : index
    %6 = vector.load %arg4[%c0_5, %c0_6] : memref<1x128xf32, #tpu.memory_space<vmem>>, vector<1x128xf32>
    %7 = vector.broadcast %6 : vector<1x128xf32> to vector<32x128xf32>
    %8 = arith.addf %5, %7 : vector<32x128xf32>
    %9 = math.tanh %8 : vector<32x128xf32>
    %c0_7 = arith.constant 0 : index
    %c0_8 = arith.constant 0 : index
    %10 = vector.load %arg5[%c0_7, %c0_8] : memref<32x128xf32, #tpu.memory_space<vmem>>, vector<32x128xf32>
    tpu.vector_store %arg5[%c0_7, %c0_8], %9 {strides = array<i32>} : memref<32x128xf32, #tpu.memory_space<vmem>>, vector<32x128xf32>,
    return
  }
  func.func @transform_0(%arg0: i32) -> (i32, i32) {
    %c0_i32 = arith.constant 0 : i32
    %c0_i32_0 = arith.constant 0 : i32
    return %arg0, %c0_i32 : i32, i32
  }
  func.func @transform_1(%arg0: i32) -> (i32, i32) {
    %c0_i32 = arith.constant 0 : i32
    %c0_i32_0 = arith.constant 0 : i32
    %c0_i32_1 = arith.constant 0 : i32
    return %c0_i32, %c0_i32_0 : i32, i32
  }
  func.func @transform_2(%arg0: i32) -> (i32, i32) {
    %c0_i32 = arith.constant 0 : i32
    %c0_i32_0 = arith.constant 0 : i32
    %c0_i32_1 = arith.constant 0 : i32
    return %c0_i32, %c0_i32_0 : i32, i32
  }
  func.func @transform_3(%arg0: i32) -> (i32, i32) {
    %c0_i32 = arith.constant 0 : i32
    %c0_i32_0 = arith.constant 0 : i32
    %c0_i32_1 = arith.constant 0 : i32
    return %c0_i32, %c0_i32_0 : i32, i32
  }
  func.func @transform_4(%arg0: i32) -> (i32, i32) {
    %c0_i32 = arith.constant 0 : i32
    %c0_i32_0 = arith.constant 0 : i32
    return %arg0, %c0_i32 : i32, i32
  }
}

</mosaic_0001>

<llo_original>
// kernel: g1_forward.10
$region0: #{g1_forward.10}
  #allocation0 [shape = 'u32[]', space=smem, size = 0x4, offset = 0x4, fixed_abs, tag = 'smem constant byte address 0x4 - core index']
  #allocation1 [shape = 'u32[144,128]{1,0:T(1,128)}', space=vmem, size = 0x12000, scoped, tag = 'internal scratch']
  %s0 = inlined_call_operand.vmem [shape: bf16[512,160], index: 0, kind: input, shape index: {}]
  %s1 = inlined_call_operand.vmem [shape: bf16[160,128], index: 1, kind: input, shape index: {}]
  %s2 = inlined_call_operand.vmem [shape: f32[1,128], index: 2, kind: input, shape index: {}]
  %s3 = inlined_call_operand.vmem [shape: f32[1,128], index: 3, kind: input, shape index: {}]
  %s4 = inlined_call_operand.vmem [shape: bf16[512,128], index: 4, kind: output, shape index: {}]
  %s5 = sld [smem:[#allocation0]]
  $region49: #{g1_forward.10} parent=0
    _
  %s7 = ssub.s32 1, %s5
  %s8 = scalar_select 0, %s7, %s5
  loop: start=0, step=1, limit=4
  $region2: #{g1_forward.10} parent=0 // loop_pre_header
    _
  $region3: #{g1_forward.10} parent=0 // loop_header
    %s10 = sphi 0, %s14
    %p11 = scmp.ge.s32.totalorder %s10, 4
    %s20 = sphi 0, %s22
    %s23 = sphi 0, %s20
    %s24 = sphi 0, %s23
    %s40 = sphi 0, %s24
    %s44 = sphi 0, %s44
    %s46 = sphi 0, %s44
    %s47 = sphi 0, %s46
    %s61 = sphi 0, %s47
    %s65 = sphi 0, %s65
    %s67 = sphi 0, %s65
    %s68 = sphi 0, %s67
    %s82 = sphi 0, %s68
    %s86 = sphi 0, %s86
    %s88 = sphi 0, %s86
    %s89 = sphi 0, %s88
    %s103 = sphi 0, %s89
    %s109 = sphi 0, %s111
    %s112 = sphi 0, %s109
    %s113 = sphi 0, %s112
    %s129 = sphi 0, %s113
  $region4: #{g1_forward.10} parent=0 // loop_header_branch
    %13 = sbr.rel (%p11) target = $region8
  $region5: #{g1_forward.10} parent=0 // loop_body
    %s15 = ssub.s32 %s10, 1
    %s16 = ssub.s32 %s10, 2
    %s17 = sadd.s32 %s10, 1
    %s18 = ssub.s32 %s10, %s17
    %p19 = scmp.eq.s32.totalorder %s18, 0
    %s21 = sadd.s32 %s20, 1
    %s22 = scalar_select %p19, %s20, %s21
    %p25 = pneg %p19
    %p26 = scmp.eq.s32.totalorder %s10, 1
    %p27 = por %p25, %p26
    %p28 = scmp.ne.s32.totalorder %s20, %s23
    %p29 = scmp.eq.s32.totalorder %s10, 0
    %p30 = por %p28, %p29
    %p31 = scmp.ne.s32.totalorder %s20, %s23
    %p32 = scmp.eq.s32.totalorder %s15, 1
    %p33 = por %p31, %p32
    %p34 = scmp.ne.s32.totalorder %s23, %s24
    %p35 = scmp.eq.s32.totalorder %s15, 0
    %p36 = por %p34, %p35
    %p37 = scmp.ne.s32.totalorder %s23, %s24
    %p38 = scmp.eq.s32.totalorder %s16, 1
    %p39 = por %p37, %p38
    %p41 = scmp.ne.s32.totalorder %s24, %s40
    %p42 = scmp.eq.s32.totalorder %s16, 0
    %p43 = por %p41, %p42
    %s45 = sadd.s32 %s44, 1
    %p48 = scmp.eq.s32.totalorder %s10, 1
    %p49 = scmp.ne.s32.totalorder %s44, %s46
    %p50 = scmp.eq.s32.totalorder %s10, 0
    %p51 = por %p49, %p50
    %p52 = scmp.ne.s32.totalorder %s44, %s46
    %p53 = scmp.eq.s32.totalorder %s15, 1
    %p54 = por %p52, %p53
    %p55 = scmp.ne.s32.totalorder %s46, %s47
    %p56 = scmp.eq.s32.totalorder %s15, 0
    %p57 = por %p55, %p56
    %p58 = scmp.ne.s32.totalorder %s46, %s47
    %p59 = scmp.eq.s32.totalorder %s16, 1
    %p60 = por %p58, %p59
    %p62 = scmp.ne.s32.totalorder %s47, %s61
    %p63 = scmp.eq.s32.totalorder %s16, 0
    %p64 = por %p62, %p63
    %s66 = sadd.s32 %s65, 1
    %p69 = scmp.eq.s32.totalorder %s10, 1
    %p70 = scmp.ne.s32.totalorder %s65, %s67
    %p71 = scmp.eq.s32.totalorder %s10, 0
    %p72 = por %p70, %p71
    %p73 = scmp.ne.s32.totalorder %s65, %s67
    %p74 = scmp.eq.s32.totalorder %s15, 1
    %p75 = por %p73, %p74
    %p76 = scmp.ne.s32.totalorder %s67, %s68
    %p77 = scmp.eq.s32.totalorder %s15, 0
    %p78 = por %p76, %p77
    %p79 = scmp.ne.s32.totalorder %s67, %s68
    %p80 = scmp.eq.s32.totalorder %s16, 1
    %p81 = por %p79, %p80
    %p83 = scmp.ne.s32.totalorder %s68, %s82
    %p84 = scmp.eq.s32.totalorder %s16, 0
    %p85 = por %p83, %p84
    %s87 = sadd.s32 %s86, 1
    %p90 = scmp.eq.s32.totalorder %s10, 1
    %p91 = scmp.ne.s32.totalorder %s86, %s88
    %p92 = scmp.eq.s32.totalorder %s10, 0
    %p93 = por %p91, %p92
    %p94 = scmp.ne.s32.totalorder %s86, %s88
    %p95 = scmp.eq.s32.totalorder %s15, 1
    %p96 = por %p94, %p95
    %p97 = scmp.ne.s32.totalorder %s88, %s89
    %p98 = scmp.eq.s32.totalorder %s15, 0
    %p99 = por %p97, %p98
    %p100 = scmp.ne.s32.totalorder %s88, %s89
    %p101 = scmp.eq.s32.totalorder %s16, 1
    %p102 = por %p100, %p101
    %p104 = scmp.ne.s32.totalorder %s89, %s103
    %p105 = scmp.eq.s32.totalorder %s16, 0
    %p106 = por %p104, %p105
    %s107 = ssub.s32 %s10, %s17
    %p108 = scmp.eq.s32.totalorder %s107, 0
    %s110 = sadd.s32 %s109, 1
    %s111 = scalar_select %p108, %s109, %s110
    %p114 = pneg %p108
    %p115 = scmp.eq.s32.totalorder %s10, 1
    %p116 = por %p114, %p115
    %p117 = scmp.ne.s32.totalorder %s109, %s112
    %p118 = scmp.eq.s32.totalorder %s10, 0
    %p119 = por %p117, %p118
    %p120 = scmp.ne.s32.totalorder %s109, %s112
    %p121 = scmp.eq.s32.totalorder %s15, 1
    %p122 = por %p120, %p121
    %p123 = scmp.ne.s32.totalorder %s112, %s113
    %p124 = scmp.eq.s32.totalorder %s15, 0
    %p125 = por %p123, %p124
    %p126 = scmp.ne.s32.totalorder %s112, %s113
    %p127 = scmp.eq.s32.totalorder %s16, 1
    %p128 = por %p126, %p127
    %p130 = scmp.ne.s32.totalorder %s113, %s129
    %p131 = scmp.eq.s32.totalorder %s16, 0
    %p132 = por %p130, %p131
    %p133 = scmp.le.s32.totalorder 1, %s10
    %p134 = scmp.lt.s32.totalorder %s10, 3
    %p135 = pnand %p133, %p134
    %p136 = pneg %p135
    // Predicated region
    $region9: #{g1_forward.10} parent=5 // pred_check
      _
    $region10: #{g1_forward.10} parent=5 // pred_check_branch
      %138 = sbr.rel (%p135) target = $region12
    $region11: #{g1_forward.10} parent=5 // pred_region
      %s139 = ssub.s32 %s10, 1
      // Predicated region
      $region13: #{g1_forward.10} parent=11 // pred_check
        %p140 = pneg %p57
      $region14: #{g1_forward.10} parent=11 // pred_check_branch
        %142 = sbr.rel (%p140) target = $region16
      $region15: #{g1_forward.10} parent=11 // pred_region
        _
      $region16: #{g1_forward.10} parent=11 // pred_fallthru
        _
      // Predicated region
      $region17: #{g1_forward.10} parent=11 // pred_check
        %p143 = pneg %p78
      $region18: #{g1_forward.10} parent=11 // pred_check_branch
        %145 = sbr.rel (%p143) target = $region20
      $region19: #{g1_forward.10} parent=11 // pred_region
        _
      $region20: #{g1_forward.10} parent=11 // pred_fallthru
        _
      // Predicated region
      $region21: #{g1_forward.10} parent=11 // pred_check
        %p146 = pneg %p99
      $region22: #{g1_forward.10} parent=11 // pred_check_branch
        %148 = sbr.rel (%p146) target = $region24
      $region23: #{g1_forward.10} parent=11 // pred_region
        _
      $region24: #{g1_forward.10} parent=11 // pred_fallthru
        _
    $region12: #{g1_forward.10} parent=5 // pred_fallthru
      _
    %p149 = scmp.lt.s32.totalorder %s10, 2
    // Predicated region
    $region25: #{g1_forward.10} parent=5 // pred_check
      %p150 = pneg %p149
    $region26: #{g1_forward.10} parent=5 // pred_check_branch
      %152 = sbr.rel (%p150) target = $region28
    $region27: #{g1_forward.10} parent=5 // pred_region
      // Predicated region
      $region29: #{g1_forward.10} parent=27 // pred_check
        %p153 = pneg %p30
      $region30: #{g1_forward.10} parent=27 // pred_check_branch
        %155 = sbr.rel (%p153) target = $region32
      $region31: #{g1_forward.10} parent=27 // pred_region
        %s156 = smul.u32 32, %s10
        %p157 = scmp.lt.s32.totalorder %s156, 63
        %s158 = scalar_select %p157, %s156, 63
        %s159 = smul.addr %s158, 2
        %s160 = smul.addr %s159, 4
        %s161 = scalar_lea.vmem %s0, %s160
        %s162 = smul.u32 32, %s10
      $region32: #{g1_forward.10} parent=27 // pred_fallthru
        _
    $region28: #{g1_forward.10} parent=5 // pred_fallthru
      _
    %p163 = scmp.le.s32.totalorder 1, %s10
    %p164 = scmp.lt.s32.totalorder %s10, 3
    %p165 = pnand %p163, %p164
    %p166 = pneg %p165
    // Predicated region
    $region33: #{g1_forward.10} parent=5 // pred_check
      _
    $region34: #{g1_forward.10} parent=5 // pred_check_branch
      %168 = sbr.rel (%p165) target = $region36
    $region35: #{g1_forward.10} parent=5 // pred_region
      %s169 = ssub.s32 %s10, 1
      %s170 = smul.u32 32, %s15
      %p171 = scmp.lt.s32.totalorder %s170, 63
      %s172 = scalar_select %p171, %s170, 63
      %s173 = smul.addr %s172, 2
      %s174 = smul.addr %s173, 4
      %s175 = scalar_lea.vmem %s0, %s174
      %p176 = pneg %p36
      %p177 = pneg %p33
      %p178 = pneg %p57
      %p179 = pneg %p54
      %p180 = pneg %p78
      %p181 = pneg %p75
      %p182 = pneg %p99
      %p183 = pneg %p96
      %p184 = pneg %p125
      %p185 = pneg %p122
      %s186 = smul.u32 32, %s15
      %p187 = scmp.lt.s32.totalorder %s186, 63
      %s188 = scalar_select %p187, %s186, 63
      %s189 = smul.addr %s188, 4
      %s190 = scalar_lea.vmem %s4, %s189
      %s191 = smul.u32 32, %s15
      %p192 = scmp.lt.s32.totalorder %s191, 63
      %s193 = scalar_select %p192, %s191, 63
      %s194 = smul.addr %s193, 2
      %s195 = smul.addr %s194, 4
      %s196 = scalar_lea.vmem %s0, %s195
      %s197 = smul.u32 32, %s15
      %s198 = smul.u32 32, %s15
      %p199 = scmp.lt.s32.totalorder %s198, 63
      %s200 = scalar_select %p199, %s198, 63
      %s201 = smul.addr %s200, 4
      %s202 = scalar_lea.vmem %s4, %s201
      %s203 = smul.u32 32, %s15
      %v205 = vld [vmem:[%s196] sm:$0xff]
      %v206 = vld [vmem:[%s196 + $0x8] sm:$0xff]
      %v207 = vld [vmem:[%s196 + $0x10] sm:$0xff]
      %v208 = vld [vmem:[%s196 + $0x18] sm:$0xff]
      %v209 = vld [vmem:[%s196 + $0x20] sm:$0xff]
      %v210 = vld [vmem:[%s196 + $0x28] sm:$0xff]
      %v211 = vld [vmem:[%s196 + $0x30] sm:$0xff]
      %v212 = vld [vmem:[%s196 + $0x38] sm:$0xff]
      %v213 = vld [vmem:[%s196 + $0x40] sm:$0xff]
      %v214 = vld [vmem:[%s196 + $0x48] sm:$0xff]
      %v215 = vld [vmem:[%s196 + $0x50] sm:$0xff]
      %v216 = vld [vmem:[%s196 + $0x58] sm:$0xff]
      %v217 = vld [vmem:[%s196 + $0x60] sm:$0xff]
      %v218 = vld [vmem:[%s196 + $0x68] sm:$0xff]
      %v219 = vld [vmem:[%s196 + $0x70] sm:$0xff]
      %v220 = vld [vmem:[%s196 + $0x78] sm:$0xff]
      %v221 = vld [vmem:[%s196 + $0x80] sm:$0xff]
      %v222 = vld [vmem:[%s196 + $0x88] sm:$0xff]
      %v223 = vld [vmem:[%s196 + $0x90] sm:$0xff]
      %v224 = vld [vmem:[%s196 + $0x98] sm:$0xff]
      %v225 = vld [vmem:[%s196 + $0xa0] sm:$0xff]
      %v226 = vld [vmem:[%s196 + $0xa8] sm:$0xff]
      %v227 = vld [vmem:[%s196 + $0xb0] sm:$0xff]
      %v228 = vld [vmem:[%s196 + $0xb8] sm:$0xff]
      %v229 = vld [vmem:[%s196 + $0xc0] sm:$0xff]
      %v230 = vld [vmem:[%s196 + $0xc8] sm:$0xff]
      %v231 = vld [vmem:[%s196 + $0xd0] sm:$0xff]
      %v232 = vld [vmem:[%s196 + $0xd8] sm:$0xff]
      %v233 = vld [vmem:[%s196 + $0xe0] sm:$0xff]
      %v234 = vld [vmem:[%s196 + $0xe8] sm:$0xff]
      %v235 = vld [vmem:[%s196 + $0xf0] sm:$0xff]
      %v236 = vld [vmem:[%s196 + $0xf8] sm:$0xff]
      %v237 = vld [vmem:[%s1] sm:$0xf]
      %v238 = vld [vmem:[%s1 + $0x4] sm:$0xf]
      %v239 = vld [vmem:[%s1 + $0x8] sm:$0xf]
      %v240 = vld [vmem:[%s1 + $0xc] sm:$0xf]
      %v241 = vld [vmem:[%s1 + $0x10] sm:$0xf]
      %v242 = vld [vmem:[%s1 + $0x14] sm:$0xf]
      %v243 = vld [vmem:[%s1 + $0x18] sm:$0xf]
      %v244 = vld [vmem:[%s1 + $0x1c] sm:$0xf]
      %v245 = vld [vmem:[%s1 + $0x20] sm:$0xf]
      %v246 = vld [vmem:[%s1 + $0x24] sm:$0xf]
      %v247 = vld [vmem:[%s1 + $0x28] sm:$0xf]
      %v248 = vld [vmem:[%s1 + $0x2c] sm:$0xf]
      %v249 = vld [vmem:[%s1 + $0x30] sm:$0xf]
      %v250 = vld [vmem:[%s1 + $0x34] sm:$0xf]
      %v251 = vld [vmem:[%s1 + $0x38] sm:$0xf]
      %v252 = vld [vmem:[%s1 + $0x3c] sm:$0xf]
      %v253 = vld [vmem:[%s1 + $0x40] sm:$0xf]
      %v254 = vld [vmem:[%s1 + $0x44] sm:$0xf]
      %v255 = vld [vmem:[%s1 + $0x48] sm:$0xf]
      %v256 = vld [vmem:[%s1 + $0x4c] sm:$0xf]
      %v289 = vunpack.c.l.b16 %v205
      %v290 = vunpack.c.h.b16 %v205
      %v291 = vunpack.c.l.b16 %v206
      %v292 = vunpack.c.h.b16 %v206
      %v293 = vunpack.c.l.b16 %v207
      %v294 = vunpack.c.h.b16 %v207
      %v295 = vunpack.c.l.b16 %v208
      %v296 = vunpack.c.h.b16 %v208
      %v297 = vunpack.c.l.b16 %v209
      %v298 = vunpack.c.h.b16 %v209
      %v299 = vunpack.c.l.b16 %v210
      %v300 = vunpack.c.h.b16 %v210
      %v301 = vunpack.c.l.b16 %v211
      %v302 = vunpack.c.h.b16 %v211
      %v303 = vunpack.c.l.b16 %v212
      %v304 = vunpack.c.h.b16 %v212
      %v305 = vunpack.c.l.b16 %v213
      %v306 = vunpack.c.h.b16 %v213
      %v307 = vunpack.c.l.b16 %v214
      %v308 = vunpack.c.h.b16 %v214
      %v309 = vunpack.c.l.b16 %v215
      %v310 = vunpack.c.h.b16 %v215
      %v311 = vunpack.c.l.b16 %v216
      %v312 = vunpack.c.h.b16 %v216
      %v313 = vunpack.c.l.b16 %v217
      %v314 = vunpack.c.h.b16 %v217
      %v315 = vunpack.c.l.b16 %v218
      %v316 = vunpack.c.h.b16 %v218
      %v317 = vunpack.c.l.b16 %v219
      %v318 = vunpack.c.h.b16 %v219
      %v319 = vunpack.c.l.b16 %v220
      %v320 = vunpack.c.h.b16 %v220
      %v321 = vunpack.c.l.b16 %v221
      %v322 = vunpack.c.h.b16 %v221
      %v323 = vunpack.c.l.b16 %v222
      %v324 = vunpack.c.h.b16 %v222
      %v325 = vunpack.c.l.b16 %v223
      %v326 = vunpack.c.h.b16 %v223
      %v327 = vunpack.c.l.b16 %v224
      %v328 = vunpack.c.h.b16 %v224
      %v329 = vunpack.c.l.b16 %v225
      %v330 = vunpack.c.h.b16 %v225
      %v331 = vunpack.c.l.b16 %v226
      %v332 = vunpack.c.h.b16 %v226
      %v333 = vunpack.c.l.b16 %v227
      %v334 = vunpack.c.h.b16 %v227
      %v335 = vunpack.c.l.b16 %v228
      %v336 = vunpack.c.h.b16 %v228
      %v337 = vunpack.c.l.b16 %v229
      %v338 = vunpack.c.h.b16 %v229
      %v339 = vunpack.c.l.b16 %v230
      %v340 = vunpack.c.h.b16 %v230
      %v341 = vunpack.c.l.b16 %v231
      %v342 = vunpack.c.h.b16 %v231
      %v343 = vunpack.c.l.b16 %v232
      %v344 = vunpack.c.h.b16 %v232
      %v345 = vunpack.c.l.b16 %v233
      %v346 = vunpack.c.h.b16 %v233
      %v347 = vunpack.c.l.b16 %v234
      %v348 = vunpack.c.h.b16 %v234
      %v349 = vunpack.c.l.b16 %v235
      %v350 = vunpack.c.h.b16 %v235
      %v351 = vunpack.c.l.b16 %v236
      %v352 = vunpack.c.h.b16 %v236
      %v353 = vpack.c.b16 %v291, %v289
      %v354 = vpack.c.b16 %v292, %v290
      %v355 = vpack.c.b16 %v295, %v293
      %v356 = vpack.c.b16 %v296, %v294
      %v357 = vpack.c.b16 %v299, %v297
      %v358 = vpack.c.b16 %v300, %v298
      %v359 = vpack.c.b16 %v303, %v301
      %v360 = vpack.c.b16 %v304, %v302
      %v361 = vpack.c.b16 %v307, %v305
      %v362 = vpack.c.b16 %v308, %v306
      %v363 = vpack.c.b16 %v311, %v309
      %v364 = vpack.c.b16 %v312, %v310
      %v365 = vpack.c.b16 %v315, %v313
      %v366 = vpack.c.b16 %v316, %v314
      %v367 = vpack.c.b16 %v319, %v317
      %v368 = vpack.c.b16 %v320, %v318
      %v369 = vpack.c.b16 %v323, %v321
      %v370 = vpack.c.b16 %v324, %v322
      %v371 = vpack.c.b16 %v327, %v325
      %v372 = vpack.c.b16 %v328, %v326
      %v373 = vpack.c.b16 %v331, %v329
      %v374 = vpack.c.b16 %v332, %v330
      %v375 = vpack.c.b16 %v335, %v333
      %v376 = vpack.c.b16 %v336, %v334
      %v377 = vpack.c.b16 %v339, %v337
      %v378 = vpack.c.b16 %v340, %v338
      %v379 = vpack.c.b16 %v343, %v341
      %v380 = vpack.c.b16 %v344, %v342
      %v381 = vpack.c.b16 %v347, %v345
      %v382 = vpack.c.b16 %v348, %v346
      %v383 = vpack.c.b16 %v351, %v349
      %v384 = vpack.c.b16 %v352, %v350
      %v421 = vunpack.c.l.b16 %v237
      %v422 = vunpack.c.l.b16 %v238
      %v423 = vunpack.c.l.b16 %v239
      %v424 = vunpack.c.l.b16 %v240
      %v425 = vunpack.c.l.b16 %v241
      %v426 = vunpack.c.l.b16 %v242
      %v427 = vunpack.c.l.b16 %v243
      %v428 = vunpack.c.l.b16 %v244
      %v429 = vunpack.c.l.b16 %v245
      %v430 = vunpack.c.l.b16 %v246
      %v431 = vunpack.c.l.b16 %v247
      %v432 = vunpack.c.l.b16 %v248
      %v433 = vunpack.c.l.b16 %v249
      %v434 = vunpack.c.l.b16 %v250
      %v435 = vunpack.c.l.b16 %v251
      %v436 = vunpack.c.l.b16 %v252
      %v437 = vunpack.c.l.b16 %v253
      %v438 = vunpack.c.l.b16 %v254
      %v439 = vunpack.c.l.b16 %v255
      %v440 = vunpack.c.l.b16 %v256
      %v441 = vpack.c.b16 %v422, %v421
      %v442 = vpack.c.b16 %v424, %v423
      %v443 = vpack.c.b16 %v426, %v425
      %v444 = vpack.c.b16 %v428, %v427
      %v445 = vpack.c.b16 %v430, %v429
      %v446 = vpack.c.b16 %v432, %v431
      %v447 = vpack.c.b16 %v434, %v433
      %v448 = vpack.c.b16 %v436, %v435
      %v449 = vpack.c.b16 %v438, %v437
      %v450 = vpack.c.b16 %v440, %v439
      %vm461 = vcmask 261120
      %v463 = vsel %vm461, %v354, 0
      %v466 = vsel %vm461, %v356, 0
      %v469 = vsel %vm461, %v358, 0
      %v472 = vsel %vm461, %v360, 0
      %v475 = vsel %vm461, %v362, 0
      %v478 = vsel %vm461, %v364, 0
      %v481 = vsel %vm461, %v366, 0
      %v484 = vsel %vm461, %v368, 0
      %v487 = vsel %vm461, %v370, 0
      %v490 = vsel %vm461, %v372, 0
      %v493 = vsel %vm461, %v374, 0
      %v496 = vsel %vm461, %v376, 0
      %v499 = vsel %vm461, %v378, 0
      %v502 = vsel %vm461, %v380, 0
      %v505 = vsel %vm461, %v382, 0
      %v508 = vsel %vm461, %v384, 0
      %510 = vmatprep.subr.bf16.mxu0 0
      %511 = vmatpush1.bf16.msra.mxu0 %v441
      %512 = vmatprep.subr.bf16.mxu0 0
      %513 = vmatpush1.bf16.msra.mxu0 %v442
      %514 = vmatprep.subr.bf16.mxu0 0
      %515 = vmatpush1.bf16.msra.mxu0 %v443
      %516 = vmatprep.subr.bf16.mxu0 0
      %517 = vmatpush1.bf16.msra.mxu0 %v444
      %518 = vmatprep.subr.bf16.mxu0 0
      %519 = vmatpush1.bf16.msra.mxu0 %v445
      %520 = vmatprep.subr.bf16.mxu0 0
      %521 = vmatpush1.bf16.msra.mxu0 %v446
      %522 = vmatprep.subr.bf16.mxu0 0
      %523 = vmatpush1.bf16.msra.mxu0 %v447
      %524 = vmatprep.subr.bf16.mxu0 0
      %525 = vmatpush1.bf16.msra.mxu0 %v448
      %526 = vmatprep.subr.bf16.mxu0 0
      %527 = vmatpush1.bf16.msra.mxu0 %v449
      %528 = vmatprep.subr.bf16.mxu0 0
      %529 = vmatpush1.bf16.msra.mxu0 %v450
      %530 = vmatprep.subr.bf16.mxu0 0
      %531 = vmatpush1.bf16.msra.mxu0 0
      %532 = vmatprep.subr.bf16.mxu0 0
      %533 = vmatpush1.bf16.msra.mxu0 0
      %534 = vmatprep.subr.bf16.mxu0 0
      %535 = vmatpush1.bf16.msra.mxu0 0
      %536 = vmatprep.subr.bf16.mxu0 0
      %537 = vmatpush1.bf16.msra.mxu0 0
      %538 = vmatprep.subr.bf16.mxu0 0
      %539 = vmatpush1.bf16.msra.mxu0 0
      %540 = vmatprep.subr.bf16.mxu0 0
      %541 = vmatpush1.bf16.msra.mxu0 0
      %542 = vmatprep.mubr.bf16.mxu0 %v463
      %543 = vmatmul.mubr.bf16.gmra.mrb[0].mxu0 %v353
      %v544 = vpop.f32.mrb[0].mxu0
      %v545 = vadd.f32 0.0, %v544
      %v546 = vpop.f32.mrb[0].mxu0
      %v547 = vpop.f32.mrb[0].mxu0
      %v548 = vadd.f32 0.0, %v547
      %v549 = vpop.f32.mrb[0].mxu0
      %550 = vmatprep.mubr.bf16.mxu0 %v466
      %551 = vmatmul.mubr.bf16.gmra.mrb[0].mxu0 %v355
      %v552 = vpop.f32.mrb[0].mxu0
      %v553 = vadd.f32 0.0, %v552
      %v554 = vpop.f32.mrb[0].mxu0
      %v555 = vpop.f32.mrb[0].mxu0
      %v556 = vadd.f32 0.0, %v555
      %v557 = vpop.f32.mrb[0].mxu0
      %558 = vmatprep.mubr.bf16.mxu0 %v469
      %559 = vmatmul.mubr.bf16.gmra.mrb[0].mxu0 %v357
      %v560 = vpop.f32.mrb[0].mxu0
      %v561 = vadd.f32 0.0, %v560
      %v562 = vpop.f32.mrb[0].mxu0
      %v563 = vpop.f32.mrb[0].mxu0
      %v564 = vadd.f32 0.0, %v563
      %v565 = vpop.f32.mrb[0].mxu0
      %566 = vmatprep.mubr.bf16.mxu0 %v472
      %567 = vmatmul.mubr.bf16.gmra.mrb[0].mxu0 %v359
      %v568 = vpop.f32.mrb[0].mxu0
      %v569 = vadd.f32 0.0, %v568
      %v570 = vpop.f32.mrb[0].mxu0
      %v571 = vpop.f32.mrb[0].mxu0
      %v572 = vadd.f32 0.0, %v571
      %v573 = vpop.f32.mrb[0].mxu0
      %574 = vmatprep.mubr.bf16.mxu0 %v475
      %575 = vmatmul.mubr.bf16.gmra.mrb[0].mxu0 %v361
      %v576 = vpop.f32.mrb[0].mxu0
      %v577 = vadd.f32 0.0, %v576
      %v578 = vpop.f32.mrb[0].mxu0
      %v579 = vpop.f32.mrb[0].mxu0
      %v580 = vadd.f32 0.0, %v579
      %v581 = vpop.f32.mrb[0].mxu0
      %582 = vmatprep.mubr.bf16.mxu0 %v478
      %583 = vmatmul.mubr.bf16.gmra.mrb[0].mxu0 %v363
      %v584 = vpop.f32.mrb[0].mxu0
      %v585 = vadd.f32 0.0, %v584
      %v586 = vpop.f32.mrb[0].mxu0
      %v587 = vpop.f32.mrb[0].mxu0
      %v588 = vadd.f32 0.0, %v587
      %v589 = vpop.f32.mrb[0].mxu0
      %590 = vmatprep.mubr.bf16.mxu0 %v481
      %591 = vmatmul.mubr.bf16.gmra.mrb[0].mxu0 %v365
      %v592 = vpop.f32.mrb[0].mxu0
      %v593 = vadd.f32 0.0, %v592
      %v594 = vpop.f32.mrb[0].mxu0
      %v595 = vpop.f32.mrb[0].mxu0
      %v596 = vadd.f32 0.0, %v595
      %v597 = vpop.f32.mrb[0].mxu0
      %598 = vmatprep.mubr.bf16.mxu0 %v484
      %599 = vmatmul.mubr.bf16.gmra.mrb[0].mxu0 %v367
      %v600 = vpop.f32.mrb[0].mxu0
      %v601 = vadd.f32 0.0, %v600
      %v602 = vpop.f32.mrb[0].mxu0
      %v603 = vpop.f32.mrb[0].mxu0
      %v604 = vadd.f32 0.0, %v603
      %v605 = vpop.f32.mrb[0].mxu0
      %606 = vmatprep.mubr.bf16.mxu0 %v487
      %607 = vmatmul.mubr.bf16.gmra.mrb[0].mxu0 %v369
      %v608 = vpop.f32.mrb[0].mxu0
      %v609 = vadd.f32 0.0, %v608
      %v610 = vpop.f32.mrb[0].mxu0
      %v611 = vpop.f32.mrb[0].mxu0
      %v612 = vadd.f32 0.0, %v611
      %v613 = vpop.f32.mrb[0].mxu0
      %614 = vmatprep.mubr.bf16.mxu0 %v490
      %615 = vmatmul.mubr.bf16.gmra.mrb[0].mxu0 %v371
      %v616 = vpop.f32.mrb[0].mxu0
      %v617 = vadd.f32 0.0, %v616
      %v618 = vpop.f32.mrb[0].mxu0
      %v619 = vpop.f32.mrb[0].mxu0
      %v620 = vadd.f32 0.0, %v619
      %v621 = vpop.f32.mrb[0].mxu0
      %622 = vmatprep.mubr.bf16.mxu0 %v493
      %623 = vmatmul.mubr.bf16.gmra.mrb[0].mxu0 %v373
      %v624 = vpop.f32.mrb[0].mxu0
      %v625 = vadd.f32 0.0, %v624
      %v626 = vpop.f32.mrb[0].mxu0
      %v627 = vpop.f32.mrb[0].mxu0
      %v628 = vadd.f32 0.0, %v627
      %v629 = vpop.f32.mrb[0].mxu0
      %630 = vmatprep.mubr.bf16.mxu0 %v496
      %631 = vmatmul.mubr.bf16.gmra.mrb[0].mxu0 %v375
      %v632 = vpop.f32.mrb[0].mxu0
      %v633 = vadd.f32 0.0, %v632
      %v634 = vpop.f32.mrb[0].mxu0
      %v635 = vpop.f32.mrb[0].mxu0
      %v636 = vadd.f32 0.0, %v635
      %v637 = vpop.f32.mrb[0].mxu0
      %638 = vmatprep.mubr.bf16.mxu0 %v499
      %639 = vmatmul.mubr.bf16.gmra.mrb[0].mxu0 %v377
      %v640 = vpop.f32.mrb[0].mxu0
      %v641 = vadd.f32 0.0, %v640
      %v642 = vpop.f32.mrb[0].mxu0
      %v643 = vpop.f32.mrb[0].mxu0
      %v644 = vadd.f32 0.0, %v643
      %v645 = vpop.f32.mrb[0].mxu0
      %646 = vmatprep.mubr.bf16.mxu0 %v502
      %647 = vmatmul.mubr.bf16.gmra.mrb[0].mxu0 %v379
      %v648 = vpop.f32.mrb[0].mxu0
      %v649 = vadd.f32 0.0, %v648
      %v650 = vpop.f32.mrb[0].mxu0
      %v651 = vpop.f32.mrb[0].mxu0
      %v652 = vadd.f32 0.0, %v651
      %v653 = vpop.f32.mrb[0].mxu0
      %654 = vmatprep.mubr.bf16.mxu0 %v505
      %655 = vmatmul.mubr.bf16.gmra.mrb[0].mxu0 %v381
      %v656 = vpop.f32.mrb[0].mxu0
      %v657 = vadd.f32 0.0, %v656
      %v658 = vpop.f32.mrb[0].mxu0
      %v659 = vpop.f32.mrb[0].mxu0
      %v660 = vadd.f32 0.0, %v659
      %v661 = vpop.f32.mrb[0].mxu0
      %662 = vmatprep.mubr.bf16.mxu0 %v508
      %663 = vmatmul.mubr.bf16.gmra.mrb[0].mxu0 %v383
      %v664 = vpop.f32.mrb[0].mxu0
      %v665 = vadd.f32 0.0, %v664
      %v666 = vpop.f32.mrb[0].mxu0
      %v667 = vpop.f32.mrb[0].mxu0
      %v668 = vadd.f32 0.0, %v667
      %v669 = vpop.f32.mrb[0].mxu0
      %670 = vdwg.mxu0
      %v671 = vld [vmem:[%s2] sm:$0x1]
      %v673 = vlaneseq
      %v674 = vshrl.u32 %v673, 7
      %v675 = vsub.s32 0, %v674
      %v676 = vrot.slane %v671, %v675
      %v678 = vmul.f32 %v545, %v676
      %v679 = vmul.f32 %v548, %v676
      %v680 = vmul.f32 %v553, %v676
      %v681 = vmul.f32 %v556, %v676
      %v682 = vmul.f32 %v561, %v676
      %v683 = vmul.f32 %v564, %v676
      %v684 = vmul.f32 %v569, %v676
      %v685 = vmul.f32 %v572, %v676
      %v686 = vmul.f32 %v577, %v676
      %v687 = vmul.f32 %v580, %v676
      %v688 = vmul.f32 %v585, %v676
      %v689 = vmul.f32 %v588, %v676
      %v690 = vmul.f32 %v593, %v676
      %v691 = vmul.f32 %v596, %v676
      %v692 = vmul.f32 %v601, %v676
      %v693 = vmul.f32 %v604, %v676
      %v694 = vmul.f32 %v609, %v676
      %v695 = vmul.f32 %v612, %v676
      %v696 = vmul.f32 %v617, %v676
      %v697 = vmul.f32 %v620, %v676
      %v698 = vmul.f32 %v625, %v676
      %v699 = vmul.f32 %v628, %v676
      %v700 = vmul.f32 %v633, %v676
      %v701 = vmul.f32 %v636, %v676
      %v702 = vmul.f32 %v641, %v676
      %v703 = vmul.f32 %v644, %v676
      %v704 = vmul.f32 %v649, %v676
      %v705 = vmul.f32 %v652, %v676
      %v706 = vmul.f32 %v657, %v676
      %v707 = vmul.f32 %v660, %v676
      %v708 = vmul.f32 %v665, %v676
      %v709 = vmul.f32 %v668, %v676
      %v710 = vld [vmem:[%s3] sm:$0x1]
      %v712 = vlaneseq
      %v713 = vshrl.u32 %v712, 7
      %v714 = vsub.s32 0, %v713
      %v715 = vrot.slane %v710, %v714
      %v717 = vadd.f32 %v678, %v715
      %v718 = vadd.f32 %v679, %v715
      %v719 = vadd.f32 %v680, %v715
      %v720 = vadd.f32 %v681, %v715
      %v721 = vadd.f32 %v682, %v715
      %v722 = vadd.f32 %v683, %v715
      %v723 = vadd.f32 %v684, %v715
      %v724 = vadd.f32 %v685, %v715
      %v725 = vadd.f32 %v686, %v715
      %v726 = vadd.f32 %v687, %v715
      %v727 = vadd.f32 %v688, %v715
      %v728 = vadd.f32 %v689, %v715
      %v729 = vadd.f32 %v690, %v715
      %v730 = vadd.f32 %v691, %v715
      %v731 = vadd.f32 %v692, %v715
      %v732 = vadd.f32 %v693, %v715
      %v733 = vadd.f32 %v694, %v715
      %v734 = vadd.f32 %v695, %v715
      %v735 = vadd.f32 %v696, %v715
      %v736 = vadd.f32 %v697, %v715
      %v737 = vadd.f32 %v698, %v715
      %v738 = vadd.f32 %v699, %v715
      %v739 = vadd.f32 %v700, %v715
      %v740 = vadd.f32 %v701, %v715
      %v741 = vadd.f32 %v702, %v715
      %v742 = vadd.f32 %v703, %v715
      %v743 = vadd.f32 %v704, %v715
      %v744 = vadd.f32 %v705, %v715
      %v745 = vadd.f32 %v706, %v715
      %v746 = vadd.f32 %v707, %v715
      %v747 = vadd.f32 %v708, %v715
      %v748 = vadd.f32 %v709, %v715
      %v749 = vmax.f32 %v717, 0.0
      %v750 = vmax.f32 %v718, 0.0
      %v751 = vmax.f32 %v719, 0.0
      %v752 = vmax.f32 %v720, 0.0
      %v753 = vmax.f32 %v721, 0.0
      %v754 = vmax.f32 %v722, 0.0
      %v755 = vmax.f32 %v723, 0.0
      %v756 = vmax.f32 %v724, 0.0
      %v757 = vmax.f32 %v725, 0.0
      %v758 = vmax.f32 %v726, 0.0
      %v759 = vmax.f32 %v727, 0.0
      %v760 = vmax.f32 %v728, 0.0
      %v761 = vmax.f32 %v729, 0.0
      %v762 = vmax.f32 %v730, 0.0
      %v763 = vmax.f32 %v731, 0.0
      %v764 = vmax.f32 %v732, 0.0
      %v765 = vmax.f32 %v733, 0.0
      %v766 = vmax.f32 %v734, 0.0
      %v767 = vmax.f32 %v735, 0.0
      %v768 = vmax.f32 %v736, 0.0
      %v769 = vmax.f32 %v737, 0.0
      %v770 = vmax.f32 %v738, 0.0
      %v771 = vmax.f32 %v739, 0.0
      %v772 = vmax.f32 %v740, 0.0
      %v773 = vmax.f32 %v741, 0.0
      %v774 = vmax.f32 %v742, 0.0
      %v775 = vmax.f32 %v743, 0.0
      %v776 = vmax.f32 %v744, 0.0
      %v777 = vmax.f32 %v745, 0.0
      %v778 = vmax.f32 %v746, 0.0
      %v779 = vmax.f32 %v747, 0.0
      %v780 = vmax.f32 %v748, 0.0
      %v781 = vpack.c.bf16 %v750, %v749
      %v782 = vpack.c.bf16 %v752, %v751
      %v783 = vpack.c.bf16 %v754, %v753
      %v784 = vpack.c.bf16 %v756, %v755
      %v785 = vpack.c.bf16 %v758, %v757
      %v786 = vpack.c.bf16 %v760, %v759
      %v787 = vpack.c.bf16 %v762, %v761
      %v788 = vpack.c.bf16 %v764, %v763
      %v789 = vpack.c.bf16 %v766, %v765
      %v790 = vpack.c.bf16 %v768, %v767
      %v791 = vpack.c.bf16 %v770, %v769
      %v792 = vpack.c.bf16 %v772, %v771
      %v793 = vpack.c.bf16 %v774, %v773
      %v794 = vpack.c.bf16 %v776, %v775
      %v795 = vpack.c.bf16 %v778, %v777
      %v796 = vpack.c.bf16 %v780, %v779
      %v813 = vunpack.c.l.b16 %v781
      %v814 = vunpack.c.h.b16 %v781
      %v815 = vunpack.c.l.b16 %v782
      %v816 = vunpack.c.h.b16 %v782
      %v817 = vunpack.c.l.b16 %v783
      %v818 = vunpack.c.h.b16 %v783
      %v819 = vunpack.c.l.b16 %v784
      %v820 = vunpack.c.h.b16 %v784
      %v821 = vunpack.c.l.b16 %v785
      %v822 = vunpack.c.h.b16 %v785
      %v823 = vunpack.c.l.b16 %v786
      %v824 = vunpack.c.h.b16 %v786
      %v825 = vunpack.c.l.b16 %v787
      %v826 = vunpack.c.h.b16 %v787
      %v827 = vunpack.c.l.b16 %v788
      %v828 = vunpack.c.h.b16 %v788
      %v829 = vunpack.c.l.b16 %v789
      %v830 = vunpack.c.h.b16 %v789
      %v831 = vunpack.c.l.b16 %v790
      %v832 = vunpack.c.h.b16 %v790
      %v833 = vunpack.c.l.b16 %v791
      %v834 = vunpack.c.h.b16 %v791
      %v835 = vunpack.c.l.b16 %v792
      %v836 = vunpack.c.h.b16 %v792
      %v837 = vunpack.c.l.b16 %v793
      %v838 = vunpack.c.h.b16 %v793
      %v839 = vunpack.c.l.b16 %v794
      %v840 = vunpack.c.h.b16 %v794
      %v841 = vunpack.c.l.b16 %v795
      %v842 = vunpack.c.h.b16 %v795
      %v843 = vunpack.c.l.b16 %v796
      %v844 = vunpack.c.h.b16 %v796
      %v845 = vpack.c.b16 %v813, %v813
      %v846 = vpack.c.b16 %v814, %v814
      %v847 = vpack.c.b16 %v815, %v815
      %v848 = vpack.c.b16 %v816, %v816
      %v849 = vpack.c.b16 %v817, %v817
      %v850 = vpack.c.b16 %v818, %v818
      %v851 = vpack.c.b16 %v819, %v819
      %v852 = vpack.c.b16 %v820, %v820
      %v853 = vpack.c.b16 %v821, %v821
      %v854 = vpack.c.b16 %v822, %v822
      %v855 = vpack.c.b16 %v823, %v823
      %v856 = vpack.c.b16 %v824, %v824
      %v857 = vpack.c.b16 %v825, %v825
      %v858 = vpack.c.b16 %v826, %v826
      %v859 = vpack.c.b16 %v827, %v827
      %v860 = vpack.c.b16 %v828, %v828
      %v861 = vpack.c.b16 %v829, %v829
      %v862 = vpack.c.b16 %v830, %v830
      %v863 = vpack.c.b16 %v831, %v831
      %v864 = vpack.c.b16 %v832, %v832
      %v865 = vpack.c.b16 %v833, %v833
      %v866 = vpack.c.b16 %v834, %v834
      %v867 = vpack.c.b16 %v835, %v835
      %v868 = vpack.c.b16 %v836, %v836
      %v869 = vpack.c.b16 %v837, %v837
      %v870 = vpack.c.b16 %v838, %v838
      %v871 = vpack.c.b16 %v839, %v839
      %v872 = vpack.c.b16 %v840, %v840
      %v873 = vpack.c.b16 %v841, %v841
      %v874 = vpack.c.b16 %v842, %v842
      %v875 = vpack.c.b16 %v843, %v843
      %v876 = vpack.c.b16 %v844, %v844
      %909 = vst [vmem:[%s202] sm:$0xf] %v845
      %910 = vst [vmem:[%s202 + $0x4] sm:$0xf] %v846
      %911 = vst [vmem:[%s202 + $0x8] sm:$0xf] %v847
      %912 = vst [vmem:[%s202 + $0xc] sm:$0xf] %v848
      %913 = vst [vmem:[%s202 + $0x10] sm:$0xf] %v849
      %914 = vst [vmem:[%s202 + $0x14] sm:$0xf] %v850
      %915 = vst [vmem:[%s202 + $0x18] sm:$0xf] %v851
      %916 = vst [vmem:[%s202 + $0x1c] sm:$0xf] %v852
      %917 = vst [vmem:[%s202 + $0x20] sm:$0xf] %v853
      %918 = vst [vmem:[%s202 + $0x24] sm:$0xf] %v854
      %919 = vst [vmem:[%s202 + $0x28] sm:$0xf] %v855
      %920 = vst [vmem:[%s202 + $0x2c] sm:$0xf] %v856
      %921 = vst [vmem:[%s202 + $0x30] sm:$0xf] %v857
      %922 = vst [vmem:[%s202 + $0x34] sm:$0xf] %v858
      %923 = vst [vmem:[%s202 + $0x38] sm:$0xf] %v859
      %924 = vst [vmem:[%s202 + $0x3c] sm:$0xf] %v860
      %925 = vst [vmem:[%s202 + $0x40] sm:$0xf] %v861
      %926 = vst [vmem:[%s202 + $0x44] sm:$0xf] %v862
      %927 = vst [vmem:[%s202 + $0x48] sm:$0xf] %v863
      %928 = vst [vmem:[%s202 + $0x4c] sm:$0xf] %v864
      %929 = vst [vmem:[%s202 + $0x50] sm:$0xf] %v865
      %930 = vst [vmem:[%s202 + $0x54] sm:$0xf] %v866
      %931 = vst [vmem:[%s202 + $0x58] sm:$0xf] %v867
      %932 = vst [vmem:[%s202 + $0x5c] sm:$0xf] %v868
      %933 = vst [vmem:[%s202 + $0x60] sm:$0xf] %v869
      %934 = vst [vmem:[%s202 + $0x64] sm:$0xf] %v870
      %935 = vst [vmem:[%s202 + $0x68] sm:$0xf] %v871
      %936 = vst [vmem:[%s202 + $0x6c] sm:$0xf] %v872
      %937 = vst [vmem:[%s202 + $0x70] sm:$0xf] %v873
      %938 = vst [vmem:[%s202 + $0x74] sm:$0xf] %v874
      %939 = vst [vmem:[%s202 + $0x78] sm:$0xf] %v875
      %940 = vst [vmem:[%s202 + $0x7c] sm:$0xf] %v876
      %s941 = smul.u32 32, %s15
      %p942 = scmp.lt.s32.totalorder %s941, 63
      %s943 = scalar_select %p942, %s941, 63
      %s944 = smul.addr %s943, 4
      %s945 = scalar_lea.vmem %s4, %s944
      // Predicated region
      $region37: #{g1_forward.10} parent=35 // pred_check
        %p946 = pneg %p122
      $region38: #{g1_forward.10} parent=35 // pred_check_branch
        %948 = sbr.rel (%p946) target = $region40
      $region39: #{g1_forward.10} parent=35 // pred_region
        %s949 = smul.u32 32, %s15
      $region40: #{g1_forward.10} parent=35 // pred_fallthru
        _
    $region36: #{g1_forward.10} parent=5 // pred_fallthru
      _
    %p950 = scmp.le.s32.totalorder 2, %s10
    // Predicated region
    $region41: #{g1_forward.10} parent=5 // pred_check
      %p951 = pneg %p950
    $region42: #{g1_forward.10} parent=5 // pred_check_branch
      %953 = sbr.rel (%p951) target = $region44
    $region43: #{g1_forward.10} parent=5 // pred_region
      %s954 = ssub.s32 %s10, 2
      // Predicated region
      $region45: #{g1_forward.10} parent=43 // pred_check
        %p955 = pneg %p128
      $region46: #{g1_forward.10} parent=43 // pred_check_branch
        %957 = sbr.rel (%p955) target = $region48
      $region47: #{g1_forward.10} parent=43 // pred_region
        %s958 = smul.u32 32, %s16
        %p959 = scmp.lt.s32.totalorder %s958, 63
        %s960 = scalar_select %p959, %s958, 63
        %s961 = smul.addr %s960, 4
        %s962 = scalar_lea.vmem %s4, %s961
      $region48: #{g1_forward.10} parent=43 // pred_fallthru
        _
    $region44: #{g1_forward.10} parent=5 // pred_fallthru
      _
  $region6: #{g1_forward.10} parent=0 // loop_footer
    %s14 = sadd.s32 1, %s10
  $region7: #{g1_forward.10} parent=0 // loop_footer_branch
    %9 = sbr.rel target = $region3
  $region8: #{g1_forward.10} parent=0 // loop_exit
    _

// kernel: g1_forward.11
$region0: #{g1_forward.11}
  #allocation0 [shape = 'u32[]', space=smem, size = 0x4, offset = 0x4, fixed_abs, tag = 'smem constant byte address 0x4 - core index']
  #allocation1 [shape = 'u32[144,128]{1,0:T(1,128)}', space=vmem, size = 0x12000, scoped, tag = 'internal scratch']
  %s0 = inlined_call_operand.vmem [shape: bf16[128,80], index: 0, kind: input, shape index: {}]
  %s1 = inlined_call_operand.vmem [shape: bf16[80,128], index: 1, kind: input, shape index: {}]
  %s2 = inlined_call_operand.vmem [shape: f32[1,128], index: 2, kind: input, shape index: {}]
  %s3 = inlined_call_operand.vmem [shape: f32[1,128], index: 3, kind: input, shape index: {}]
  %s4 = inlined_call_operand.vmem [shape: bf16[128,128], index: 4, kind: output, shape index: {}]
  %s5 = sld [smem:[#allocation0]]
  $region26: #{g1_forward.11} parent=0
    _
  %s7 = ssub.s32 1, %s5
  %s8 = scalar_select 0, %s7, %s5
  // Predicated region
  $region2: #{g1_forward.11} parent=0 // pred_check
    _
  $region3: #{g1_forward.11} parent=0 // pred_check_branch
    %10 = sbr.rel (0) target = $region5
  $region4: #{g1_forward.11} parent=0 // pred_region
    _
  $region5: #{g1_forward.11} parent=0 // pred_fallthru
    _
  // Predicated region
  $region6: #{g1_forward.11} parent=0 // pred_check
    _
  $region7: #{g1_forward.11} parent=0 // pred_check_branch
    %12 = sbr.rel (0) target = $region9
  $region8: #{g1_forward.11} parent=0 // pred_region
    _
  $region9: #{g1_forward.11} parent=0 // pred_fallthru
    _
  // Predicated region
  $region10: #{g1_forward.11} parent=0 // pred_check
    _
  $region11: #{g1_forward.11} parent=0 // pred_check_branch
    %14 = sbr.rel (0) target = $region13
  $region12: #{g1_forward.11} parent=0 // pred_region
    _
  $region13: #{g1_forward.11} parent=0 // pred_fallthru
    _
  // Predicated region
  $region14: #{g1_forward.11} parent=0 // pred_check
    _
  $region15: #{g1_forward.11} parent=0 // pred_check_branch
    %16 = sbr.rel (0) target = $region17
  $region16: #{g1_forward.11} parent=0 // pred_region
    _
  $region17: #{g1_forward.11} parent=0 // pred_fallthru
    _
  %v18 = vld [vmem:[%s0] sm:$0xf]
  %v19 = vld [vmem:[%s0 + $0x4] sm:$0xf]
  %v20 = vld [vmem:[%s0 + $0x8] sm:$0xf]
  %v21 = vld [vmem:[%s0 + $0xc] sm:$0xf]
  %v22 = vld [vmem:[%s0 + $0x10] sm:$0xf]
  %v23 = vld [vmem:[%s0 + $0x14] sm:$0xf]
  %v24 = vld [vmem:[%s0 + $0x18] sm:$0xf]
  %v25 = vld [vmem:[%s0 + $0x1c] sm:$0xf]
  %v26 = vld [vmem:[%s0 + $0x20] sm:$0xf]
  %v27 = vld [vmem:[%s0 + $0x24] sm:$0xf]
  %v28 = vld [vmem:[%s0 + $0x28] sm:$0xf]
  %v29 = vld [vmem:[%s0 + $0x2c] sm:$0xf]
  %v30 = vld [vmem:[%s0 + $0x30] sm:$0xf]
  %v31 = vld [vmem:[%s0 + $0x34] sm:$0xf]
  %v32 = vld [vmem:[%s0 + $0x38] sm:$0xf]
  %v33 = vld [vmem:[%s0 + $0x3c] sm:$0xf]
  %v34 = vld [vmem:[%s1] sm:$0xf]
  %v35 = vld [vmem:[%s1 + $0x4] sm:$0xf]
  %v36 = vld [vmem:[%s1 + $0x8] sm:$0xf]
  %v37 = vld [vmem:[%s1 + $0xc] sm:$0xf]
  %v38 = vld [vmem:[%s1 + $0x10] sm:$0xf]
  %v39 = vld [vmem:[%s1 + $0x14] sm:$0xf]
  %v40 = vld [vmem:[%s1 + $0x18] sm:$0xf]
  %v41 = vld [vmem:[%s1 + $0x1c] sm:$0xf]
  %v42 = vld [vmem:[%s1 + $0x20] sm:$0xf]
  %v43 = vld [vmem:[%s1 + $0x24] sm:$0xf]
  %v60 = vunpack.c.l.b16 %v18
  %v61 = vunpack.c.l.b16 %v19
  %v62 = vunpack.c.l.b16 %v20
  %v63 = vunpack.c.l.b16 %v21
  %v64 = vunpack.c.l.b16 %v22
  %v65 = vunpack.c.l.b16 %v23
  %v66 = vunpack.c.l.b16 %v24
  %v67 = vunpack.c.l.b16 %v25
  %v68 = vunpack.c.l.b16 %v26
  %v69 = vunpack.c.l.b16 %v27
  %v70 = vunpack.c.l.b16 %v28
  %v71 = vunpack.c.l.b16 %v29
  %v72 = vunpack.c.l.b16 %v30
  %v73 = vunpack.c.l.b16 %v31
  %v74 = vunpack.c.l.b16 %v32
  %v75 = vunpack.c.l.b16 %v33
  %v76 = vpack.c.b16 %v61, %v60
  %v77 = vpack.c.b16 %v63, %v62
  %v78 = vpack.c.b16 %v65, %v64
  %v79 = vpack.c.b16 %v67, %v66
  %v80 = vpack.c.b16 %v69, %v68
  %v81 = vpack.c.b16 %v71, %v70
  %v82 = vpack.c.b16 %v73, %v72
  %v83 = vpack.c.b16 %v75, %v74
  %v94 = vunpack.c.l.b16 %v34
  %v95 = vunpack.c.l.b16 %v35
  %v96 = vunpack.c.l.b16 %v36
  %v97 = vunpack.c.l.b16 %v37
  %v98 = vunpack.c.l.b16 %v38
  %v99 = vunpack.c.l.b16 %v39
  %v100 = vunpack.c.l.b16 %v40
  %v101 = vunpack.c.l.b16 %v41
  %v102 = vunpack.c.l.b16 %v42
  %v103 = vunpack.c.l.b16 %v43
  %v104 = vpack.c.b16 %v95, %v94
  %v105 = vpack.c.b16 %v97, %v96
  %v106 = vpack.c.b16 %v99, %v98
  %v107 = vpack.c.b16 %v101, %v100
  %v108 = vpack.c.b16 %v103, %v102
  %vm114 = vcmask 654336
  %v116 = vsel %vm114, %v76, 0
  %v119 = vsel %vm114, %v77, 0
  %v122 = vsel %vm114, %v78, 0
  %v125 = vsel %vm114, %v79, 0
  %v128 = vsel %vm114, %v80, 0
  %v131 = vsel %vm114, %v81, 0
  %v134 = vsel %vm114, %v82, 0
  %v137 = vsel %vm114, %v83, 0
  %139 = vmatprep.subr.bf16.mxu0 0
  %140 = vmatpush1.bf16.msra.mxu0 %v104
  %141 = vmatprep.subr.bf16.mxu0 0
  %142 = vmatpush1.bf16.msra.mxu0 %v105
  %143 = vmatprep.subr.bf16.mxu0 0
  %144 = vmatpush1.bf16.msra.mxu0 %v106
  %145 = vmatprep.subr.bf16.mxu0 0
  %146 = vmatpush1.bf16.msra.mxu0 %v107
  %147 = vmatprep.subr.bf16.mxu0 0
  %148 = vmatpush1.bf16.msra.mxu0 %v108
  %149 = vmatprep.subr.bf16.mxu0 0
  %150 = vmatpush1.bf16.msra.mxu0 0
  %151 = vmatprep.subr.bf16.mxu0 0
  %152 = vmatpush1.bf16.msra.mxu0 0
  %153 = vmatprep.subr.bf16.mxu0 0
  %154 = vmatpush1.bf16.msra.mxu0 0
  %155 = vmatprep.subr.bf16.mxu0 0
  %156 = vmatpush1.bf16.msra.mxu0 0
  %157 = vmatprep.subr.bf16.mxu0 0
  %158 = vmatpush1.bf16.msra.mxu0 0
  %159 = vmatprep.subr.bf16.mxu0 0
  %160 = vmatpush1.bf16.msra.mxu0 0
  %161 = vmatprep.subr.bf16.mxu0 0
  %162 = vmatpush1.bf16.msra.mxu0 0
  %163 = vmatprep.subr.bf16.mxu0 0
  %164 = vmatpush1.bf16.msra.mxu0 0
  %165 = vmatprep.subr.bf16.mxu0 0
  %166 = vmatpush1.bf16.msra.mxu0 0
  %167 = vmatprep.subr.bf16.mxu0 0
  %168 = vmatpush1.bf16.msra.mxu0 0
  %169 = vmatprep.subr.bf16.mxu0 0
  %170 = vmatpush1.bf16.msra.mxu0 0
  %171 = vmatprep.mubr.bf16.mxu0 0
  %172 = vmatmul.mubr.bf16.gmra.mrb[0].mxu0 %v116
  %v173 = vpop.f32.mrb[0].mxu0
  %v174 = vadd.f32 0.0, %v173
  %v175 = vpop.f32.mrb[0].mxu0
  %v176 = vpop.f32.mrb[0].mxu0
  %v177 = vadd.f32 0.0, %v176
  %v178 = vpop.f32.mrb[0].mxu0
  %179 = vmatprep.mubr.bf16.mxu0 0
  %180 = vmatmul.mubr.bf16.gmra.mrb[0].mxu0 %v119
  %v181 = vpop.f32.mrb[0].mxu0
  %v182 = vadd.f32 0.0, %v181
  %v183 = vpop.f32.mrb[0].mxu0
  %v184 = vpop.f32.mrb[0].mxu0
  %v185 = vadd.f32 0.0, %v184
  %v186 = vpop.f32.mrb[0].mxu0
  %187 = vmatprep.mubr.bf16.mxu0 0
  %188 = vmatmul.mubr.bf16.gmra.mrb[0].mxu0 %v122
  %v189 = vpop.f32.mrb[0].mxu0
  %v190 = vadd.f32 0.0, %v189
  %v191 = vpop.f32.mrb[0].mxu0
  %v192 = vpop.f32.mrb[0].mxu0
  %v193 = vadd.f32 0.0, %v192
  %v194 = vpop.f32.mrb[0].mxu0
  %195 = vmatprep.mubr.bf16.mxu0 0
  %196 = vmatmul.mubr.bf16.gmra.mrb[0].mxu0 %v125
  %v197 = vpop.f32.mrb[0].mxu0
  %v198 = vadd.f32 0.0, %v197
  %v199 = vpop.f32.mrb[0].mxu0
  %v200 = vpop.f32.mrb[0].mxu0
  %v201 = vadd.f32 0.0, %v200
  %v202 = vpop.f32.mrb[0].mxu0
  %203 = vmatprep.mubr.bf16.mxu0 0
  %204 = vmatmul.mubr.bf16.gmra.mrb[0].mxu0 %v128
  %v205 = vpop.f32.mrb[0].mxu0
  %v206 = vadd.f32 0.0, %v205
  %v207 = vpop.f32.mrb[0].mxu0
  %v208 = vpop.f32.mrb[0].mxu0
  %v209 = vadd.f32 0.0, %v208
  %v210 = vpop.f32.mrb[0].mxu0
  %211 = vmatprep.mubr.bf16.mxu0 0
  %212 = vmatmul.mubr.bf16.gmra.mrb[0].mxu0 %v131
  %v213 = vpop.f32.mrb[0].mxu0
  %v214 = vadd.f32 0.0, %v213
  %v215 = vpop.f32.mrb[0].mxu0
  %v216 = vpop.f32.mrb[0].mxu0
  %v217 = vadd.f32 0.0, %v216
  %v218 = vpop.f32.mrb[0].mxu0
  %219 = vmatprep.mubr.bf16.mxu0 0
  %220 = vmatmul.mubr.bf16.gmra.mrb[0].mxu0 %v134
  %v221 = vpop.f32.mrb[0].mxu0
  %v222 = vadd.f32 0.0, %v221
  %v223 = vpop.f32.mrb[0].mxu0
  %v224 = vpop.f32.mrb[0].mxu0
  %v225 = vadd.f32 0.0, %v224
  %v226 = vpop.f32.mrb[0].mxu0
  %227 = vmatprep.mubr.bf16.mxu0 0
  %228 = vmatmul.mubr.bf16.gmra.mrb[0].mxu0 %v137
  %v229 = vpop.f32.mrb[0].mxu0
  %v230 = vadd.f32 0.0, %v229
  %v231 = vpop.f32.mrb[0].mxu0
  %v232 = vpop.f32.mrb[0].mxu0
  %v233 = vadd.f32 0.0, %v232
  %v234 = vpop.f32.mrb[0].mxu0
  %235 = vdwg.mxu0
  %v236 = vld [vmem:[%s2] sm:$0x1]
  %v238 = vlaneseq
  %v239 = vshrl.u32 %v238, 7
  %v240 = vsub.s32 0, %v239
  %v241 = vrot.slane %v236, %v240
  %v243 = vmul.f32 %v174, %v241
  %v244 = vmul.f32 %v177, %v241
  %v245 = vmul.f32 %v182, %v241
  %v246 = vmul.f32 %v185, %v241
  %v247 = vmul.f32 %v190, %v241
  %v248 = vmul.f32 %v193, %v241
  %v249 = vmul.f32 %v198, %v241
  %v250 = vmul.f32 %v201, %v241
  %v251 = vmul.f32 %v206, %v241
  %v252 = vmul.f32 %v209, %v241
  %v253 = vmul.f32 %v214, %v241
  %v254 = vmul.f32 %v217, %v241
  %v255 = vmul.f32 %v222, %v241
  %v256 = vmul.f32 %v225, %v241
  %v257 = vmul.f32 %v230, %v241
  %v258 = vmul.f32 %v233, %v241
  %v259 = vld [vmem:[%s3] sm:$0x1]
  %v261 = vlaneseq
  %v262 = vshrl.u32 %v261, 7
  %v263 = vsub.s32 0, %v262
  %v264 = vrot.slane %v259, %v263
  %v266 = vadd.f32 %v243, %v264
  %v267 = vadd.f32 %v244, %v264
  %v268 = vadd.f32 %v245, %v264
  %v269 = vadd.f32 %v246, %v264
  %v270 = vadd.f32 %v247, %v264
  %v271 = vadd.f32 %v248, %v264
  %v272 = vadd.f32 %v249, %v264
  %v273 = vadd.f32 %v250, %v264
  %v274 = vadd.f32 %v251, %v264
  %v275 = vadd.f32 %v252, %v264
  %v276 = vadd.f32 %v253, %v264
  %v277 = vadd.f32 %v254, %v264
  %v278 = vadd.f32 %v255, %v264
  %v279 = vadd.f32 %v256, %v264
  %v280 = vadd.f32 %v257, %v264
  %v281 = vadd.f32 %v258, %v264
  %v282 = vmax.f32 %v266, 0.0
  %v283 = vmax.f32 %v267, 0.0
  %v284 = vmax.f32 %v268, 0.0
  %v285 = vmax.f32 %v269, 0.0
  %v286 = vmax.f32 %v270, 0.0
  %v287 = vmax.f32 %v271, 0.0
  %v288 = vmax.f32 %v272, 0.0
  %v289 = vmax.f32 %v273, 0.0
  %v290 = vmax.f32 %v274, 0.0
  %v291 = vmax.f32 %v275, 0.0
  %v292 = vmax.f32 %v276, 0.0
  %v293 = vmax.f32 %v277, 0.0
  %v294 = vmax.f32 %v278, 0.0
  %v295 = vmax.f32 %v279, 0.0
  %v296 = vmax.f32 %v280, 0.0
  %v297 = vmax.f32 %v281, 0.0
  %v298 = vpack.c.bf16 %v283, %v282
  %v299 = vpack.c.bf16 %v285, %v284
  %v300 = vpack.c.bf16 %v287, %v286
  %v301 = vpack.c.bf16 %v289, %v288
  %v302 = vpack.c.bf16 %v291, %v290
  %v303 = vpack.c.bf16 %v293, %v292
  %v304 = vpack.c.bf16 %v295, %v294
  %v305 = vpack.c.bf16 %v297, %v296
  %v314 = vunpack.c.l.b16 %v298
  %v315 = vunpack.c.h.b16 %v298
  %v316 = vunpack.c.l.b16 %v299
  %v317 = vunpack.c.h.b16 %v299
  %v318 = vunpack.c.l.b16 %v300
  %v319 = vunpack.c.h.b16 %v300
  %v320 = vunpack.c.l.b16 %v301
  %v321 = vunpack.c.h.b16 %v301
  %v322 = vunpack.c.l.b16 %v302
  %v323 = vunpack.c.h.b16 %v302
  %v324 = vunpack.c.l.b16 %v303
  %v325 = vunpack.c.h.b16 %v303
  %v326 = vunpack.c.l.b16 %v304
  %v327 = vunpack.c.h.b16 %v304
  %v328 = vunpack.c.l.b16 %v305
  %v329 = vunpack.c.h.b16 %v305
  %v330 = vpack.c.b16 %v314, %v314
  %v331 = vpack.c.b16 %v315, %v315
  %v332 = vpack.c.b16 %v316, %v316
  %v333 = vpack.c.b16 %v317, %v317
  %v334 = vpack.c.b16 %v318, %v318
  %v335 = vpack.c.b16 %v319, %v319
  %v336 = vpack.c.b16 %v320, %v320
  %v337 = vpack.c.b16 %v321, %v321
  %v338 = vpack.c.b16 %v322, %v322
  %v339 = vpack.c.b16 %v323, %v323
  %v340 = vpack.c.b16 %v324, %v324
  %v341 = vpack.c.b16 %v325, %v325
  %v342 = vpack.c.b16 %v326, %v326
  %v343 = vpack.c.b16 %v327, %v327
  %v344 = vpack.c.b16 %v328, %v328
  %v345 = vpack.c.b16 %v329, %v329
  %362 = vst [vmem:[%s4] sm:$0xf] %v330
  %363 = vst [vmem:[%s4 + $0x4] sm:$0xf] %v331
  %364 = vst [vmem:[%s4 + $0x8] sm:$0xf] %v332
  %365 = vst [vmem:[%s4 + $0xc] sm:$0xf] %v333
  %366 = vst [vmem:[%s4 + $0x10] sm:$0xf] %v334
  %367 = vst [vmem:[%s4 + $0x14] sm:$0xf] %v335
  %368 = vst [vmem:[%s4 + $0x18] sm:$0xf] %v336
  %369 = vst [vmem:[%s4 + $0x1c] sm:$0xf] %v337
  %370 = vst [vmem:[%s4 + $0x20] sm:$0xf] %v338
  %371 = vst [vmem:[%s4 + $0x24] sm:$0xf] %v339
  %372 = vst [vmem:[%s4 + $0x28] sm:$0xf] %v340
  %373 = vst [vmem:[%s4 + $0x2c] sm:$0xf] %v341
  %374 = vst [vmem:[%s4 + $0x30] sm:$0xf] %v342
  %375 = vst [vmem:[%s4 + $0x34] sm:$0xf] %v343
  %376 = vst [vmem:[%s4 + $0x38] sm:$0xf] %v344
  %377 = vst [vmem:[%s4 + $0x3c] sm:$0xf] %v345
  // Predicated region
  $region18: #{g1_forward.11} parent=0 // pred_check
    _
  $region19: #{g1_forward.11} parent=0 // pred_check_branch
    %379 = sbr.rel (0) target = $region21
  $region20: #{g1_forward.11} parent=0 // pred_region
    _
  $region21: #{g1_forward.11} parent=0 // pred_fallthru
    _
  // Predicated region
  $region22: #{g1_forward.11} parent=0 // pred_check
    _
  $region23: #{g1_forward.11} parent=0 // pred_check_branch
    %381 = sbr.rel (0) target = $region25
  $region24: #{g1_forward.11} parent=0 // pred_region
    _
  $region25: #{g1_forward.11} parent=0 // pred_fallthru
    _

// kernel: g1_forward.12
$region0: #{g1_forward.12}
  #allocation0 [shape = 'u32[]', space=smem, size = 0x4, offset = 0x4, fixed_abs, tag = 'smem constant byte address 0x4 - core index']
  #allocation1 [shape = 'u32[144,128]{1,0:T(1,128)}', space=vmem, size = 0x12000, scoped, tag = 'internal scratch']
  %s0 = inlined_call_operand.vmem [shape: bf16[32,144], index: 0, kind: input, shape index: {}]
  %s1 = inlined_call_operand.vmem [shape: bf16[144,128], index: 1, kind: input, shape index: {}]
  %s2 = inlined_call_operand.vmem [shape: f32[1,128], index: 2, kind: input, shape index: {}]
  %s3 = inlined_call_operand.vmem [shape: f32[1,128], index: 3, kind: input, shape index: {}]
  %s4 = inlined_call_operand.vmem [shape: bf16[32,128], index: 4, kind: output, shape index: {}]
  %s5 = sld [smem:[#allocation0]]
  $region26: #{g1_forward.12} parent=0
    _
  %s7 = ssub.s32 1, %s5
  %s8 = scalar_select 0, %s7, %s5
  // Predicated region
  $region2: #{g1_forward.12} parent=0 // pred_check
    _
  $region3: #{g1_forward.12} parent=0 // pred_check_branch
    %10 = sbr.rel (0) target = $region5
  $region4: #{g1_forward.12} parent=0 // pred_region
    _
  $region5: #{g1_forward.12} parent=0 // pred_fallthru
    _
  // Predicated region
  $region6: #{g1_forward.12} parent=0 // pred_check
    _
  $region7: #{g1_forward.12} parent=0 // pred_check_branch
    %12 = sbr.rel (0) target = $region9
  $region8: #{g1_forward.12} parent=0 // pred_region
    _
  $region9: #{g1_forward.12} parent=0 // pred_fallthru
    _
  // Predicated region
  $region10: #{g1_forward.12} parent=0 // pred_check
    _
  $region11: #{g1_forward.12} parent=0 // pred_check_branch
    %14 = sbr.rel (0) target = $region13
  $region12: #{g1_forward.12} parent=0 // pred_region
    _
  $region13: #{g1_forward.12} parent=0 // pred_fallthru
    _
  // Predicated region
  $region14: #{g1_forward.12} parent=0 // pred_check
    _
  $region15: #{g1_forward.12} parent=0 // pred_check_branch
    %16 = sbr.rel (0) target = $region17
  $region16: #{g1_forward.12} parent=0 // pred_region
    _
  $region17: #{g1_forward.12} parent=0 // pred_fallthru
    _
  %v18 = vld [vmem:[%s0] sm:$0xff]
  %v19 = vld [vmem:[%s0 + $0x8] sm:$0xff]
  %v20 = vld [vmem:[%s0 + $0x10] sm:$0xff]
  %v21 = vld [vmem:[%s0 + $0x18] sm:$0xff]
  %v22 = vld [vmem:[%s1] sm:$0xf]
  %v23 = vld [vmem:[%s1 + $0x4] sm:$0xf]
  %v24 = vld [vmem:[%s1 + $0x8] sm:$0xf]
  %v25 = vld [vmem:[%s1 + $0xc] sm:$0xf]
  %v26 = vld [vmem:[%s1 + $0x10] sm:$0xf]
  %v27 = vld [vmem:[%s1 + $0x14] sm:$0xf]
  %v28 = vld [vmem:[%s1 + $0x18] sm:$0xf]
  %v29 = vld [vmem:[%s1 + $0x1c] sm:$0xf]
  %v30 = vld [vmem:[%s1 + $0x20] sm:$0xf]
  %v31 = vld [vmem:[%s1 + $0x24] sm:$0xf]
  %v32 = vld [vmem:[%s1 + $0x28] sm:$0xf]
  %v33 = vld [vmem:[%s1 + $0x2c] sm:$0xf]
  %v34 = vld [vmem:[%s1 + $0x30] sm:$0xf]
  %v35 = vld [vmem:[%s1 + $0x34] sm:$0xf]
  %v36 = vld [vmem:[%s1 + $0x38] sm:$0xf]
  %v37 = vld [vmem:[%s1 + $0x3c] sm:$0xf]
  %v38 = vld [vmem:[%s1 + $0x40] sm:$0xf]
  %v39 = vld [vmem:[%s1 + $0x44] sm:$0xf]
  %v44 = vunpack.c.l.b16 %v18
  %v45 = vunpack.c.h.b16 %v18
  %v46 = vunpack.c.l.b16 %v19
  %v47 = vunpack.c.h.b16 %v19
  %v48 = vunpack.c.l.b16 %v20
  %v49 = vunpack.c.h.b16 %v20
  %v50 = vunpack.c.l.b16 %v21
  %v51 = vunpack.c.h.b16 %v21
  %v52 = vpack.c.b16 %v46, %v44
  %v53 = vpack.c.b16 %v47, %v45
  %v54 = vpack.c.b16 %v50, %v48
  %v55 = vpack.c.b16 %v51, %v49
  %v76 = vunpack.c.l.b16 %v22
  %v77 = vunpack.c.l.b16 %v23
  %v78 = vunpack.c.l.b16 %v24
  %v79 = vunpack.c.l.b16 %v25
  %v80 = vunpack.c.l.b16 %v26
  %v81 = vunpack.c.l.b16 %v27
  %v82 = vunpack.c.l.b16 %v28
  %v83 = vunpack.c.l.b16 %v29
  %v84 = vunpack.c.l.b16 %v30
  %v85 = vunpack.c.l.b16 %v31
  %v86 = vunpack.c.l.b16 %v32
  %v87 = vunpack.c.l.b16 %v33
  %v88 = vunpack.c.l.b16 %v34
  %v89 = vunpack.c.l.b16 %v35
  %v90 = vunpack.c.l.b16 %v36
  %v91 = vunpack.c.l.b16 %v37
  %v92 = vunpack.c.l.b16 %v38
  %v93 = vunpack.c.l.b16 %v39
  %v94 = vpack.c.b16 %v77, %v76
  %v95 = vpack.c.b16 %v79, %v78
  %v96 = vpack.c.b16 %v81, %v80
  %v97 = vpack.c.b16 %v83, %v82
  %v98 = vpack.c.b16 %v85, %v84
  %v99 = vpack.c.b16 %v87, %v86
  %v100 = vpack.c.b16 %v89, %v88
  %v101 = vpack.c.b16 %v91, %v90
  %v102 = vpack.c.b16 %v93, %v92
  %vm112 = vcmask 130048
  %v114 = vsel %vm112, %v53, 0
  %v117 = vsel %vm112, %v55, 0
  %119 = vmatprep.subr.bf16.mxu0 0
  %120 = vmatpush1.bf16.msra.mxu0 %v94
  %121 = vmatprep.subr.bf16.mxu0 0
  %122 = vmatpush1.bf16.msra.mxu0 %v95
  %123 = vmatprep.subr.bf16.mxu0 0
  %124 = vmatpush1.bf16.msra.mxu0 %v96
  %125 = vmatprep.subr.bf16.mxu0 0
  %126 = vmatpush1.bf16.msra.mxu0 %v97
  %127 = vmatprep.subr.bf16.mxu0 0
  %128 = vmatpush1.bf16.msra.mxu0 %v98
  %129 = vmatprep.subr.bf16.mxu0 0
  %130 = vmatpush1.bf16.msra.mxu0 %v99
  %131 = vmatprep.subr.bf16.mxu0 0
  %132 = vmatpush1.bf16.msra.mxu0 %v100
  %133 = vmatprep.subr.bf16.mxu0 0
  %134 = vmatpush1.bf16.msra.mxu0 %v101
  %135 = vmatprep.subr.bf16.mxu0 0
  %136 = vmatpush1.bf16.msra.mxu0 %v102
  %137 = vmatprep.subr.bf16.mxu0 0
  %138 = vmatpush1.bf16.msra.mxu0 0
  %139 = vmatprep.subr.bf16.mxu0 0
  %140 = vmatpush1.bf16.msra.mxu0 0
  %141 = vmatprep.subr.bf16.mxu0 0
  %142 = vmatpush1.bf16.msra.mxu0 0
  %143 = vmatprep.subr.bf16.mxu0 0
  %144 = vmatpush1.bf16.msra.mxu0 0
  %145 = vmatprep.subr.bf16.mxu0 0
  %146 = vmatpush1.bf16.msra.mxu0 0
  %147 = vmatprep.subr.bf16.mxu0 0
  %148 = vmatpush1.bf16.msra.mxu0 0
  %149 = vmatprep.subr.bf16.mxu0 0
  %150 = vmatpush1.bf16.msra.mxu0 0
  %151 = vmatprep.mubr.bf16.mxu0 %v114
  %152 = vmatmul.mubr.bf16.gmra.mrb[0].mxu0 %v52
  %v153 = vpop.f32.mrb[0].mxu0
  %v154 = vadd.f32 0.0, %v153
  %v155 = vpop.f32.mrb[0].mxu0
  %v156 = vpop.f32.mrb[0].mxu0
  %v157 = vadd.f32 0.0, %v156
  %v158 = vpop.f32.mrb[0].mxu0
  %159 = vmatprep.mubr.bf16.mxu0 %v117
  %160 = vmatmul.mubr.bf16.gmra.mrb[0].mxu0 %v54
  %v161 = vpop.f32.mrb[0].mxu0
  %v162 = vadd.f32 0.0, %v161
  %v163 = vpop.f32.mrb[0].mxu0
  %v164 = vpop.f32.mrb[0].mxu0
  %v165 = vadd.f32 0.0, %v164
  %v166 = vpop.f32.mrb[0].mxu0
  %167 = vdwg.mxu0
  %v168 = vld [vmem:[%s2] sm:$0x1]
  %v170 = vlaneseq
  %v171 = vshrl.u32 %v170, 7
  %v172 = vsub.s32 0, %v171
  %v173 = vrot.slane %v168, %v172
  %v175 = vmul.f32 %v154, %v173
  %v176 = vmul.f32 %v157, %v173
  %v177 = vmul.f32 %v162, %v173
  %v178 = vmul.f32 %v165, %v173
  %v179 = vld [vmem:[%s3] sm:$0x1]
  %v181 = vlaneseq
  %v182 = vshrl.u32 %v181, 7
  %v183 = vsub.s32 0, %v182
  %v184 = vrot.slane %v179, %v183
  %v186 = vadd.f32 %v175, %v184
  %v187 = vadd.f32 %v176, %v184
  %v188 = vadd.f32 %v177, %v184
  %v189 = vadd.f32 %v178, %v184
  %v190 = vmax.f32 %v186, 0.0
  %v191 = vmax.f32 %v187, 0.0
  %v192 = vmax.f32 %v188, 0.0
  %v193 = vmax.f32 %v189, 0.0
  %v194 = vpack.c.bf16 %v191, %v190
  %v195 = vpack.c.bf16 %v193, %v192
  %v198 = vunpack.c.l.b16 %v194
  %v199 = vunpack.c.h.b16 %v194
  %v200 = vunpack.c.l.b16 %v195
  %v201 = vunpack.c.h.b16 %v195
  %v202 = vpack.c.b16 %v198, %v198
  %v203 = vpack.c.b16 %v199, %v199
  %v204 = vpack.c.b16 %v200, %v200
  %v205 = vpack.c.b16 %v201, %v201
  %210 = vst [vmem:[%s4] sm:$0xf] %v202
  %211 = vst [vmem:[%s4 + $0x4] sm:$0xf] %v203
  %212 = vst [vmem:[%s4 + $0x8] sm:$0xf] %v204
  %213 = vst [vmem:[%s4 + $0xc] sm:$0xf] %v205
  // Predicated region
  $region18: #{g1_forward.12} parent=0 // pred_check
    _
  $region19: #{g1_forward.12} parent=0 // pred_check_branch
    %215 = sbr.rel (0) target = $region21
  $region20: #{g1_forward.12} parent=0 // pred_region
    _
  $region21: #{g1_forward.12} parent=0 // pred_fallthru
    _
  // Predicated region
  $region22: #{g1_forward.12} parent=0 // pred_check
    _
  $region23: #{g1_forward.12} parent=0 // pred_check_branch
    %217 = sbr.rel (0) target = $region25
  $region24: #{g1_forward.12} parent=0 // pred_region
    _
  $region25: #{g1_forward.12} parent=0 // pred_fallthru
    _

// kernel: g1_forward.14
$region0: #{g1_forward.14}
  #allocation0 [shape = 'u32[]', space=smem, size = 0x4, offset = 0x4, fixed_abs, tag = 'smem constant byte address 0x4 - core index']
  #allocation1 [shape = 'u32[144,128]{1,0:T(1,128)}', space=vmem, size = 0x12000, scoped, tag = 'internal scratch']
  %s0 = inlined_call_operand.vmem [shape: bf16[32,288], index: 0, kind: input, shape index: {}]
  %s1 = inlined_call_operand.vmem [shape: bf16[288,128], index: 1, kind: input, shape index: {}]
  %s2 = inlined_call_operand.vmem [shape: f32[1,128], index: 2, kind: input, shape index: {}]
  %s3 = inlined_call_operand.vmem [shape: f32[1,128], index: 3, kind: input, shape index: {}]
  %s4 = inlined_call_operand.vmem [shape: bf16[32,128], index: 4, kind: input, shape index: {}]
  %s5 = inlined_call_operand.vmem [shape: bf16[32,128], index: 5, kind: output, shape index: {}]
  %s6 = sld [smem:[#allocation0]]
  $region30: #{g1_forward.14} parent=0
    _
  %s8 = ssub.s32 1, %s6
  %s9 = scalar_select 0, %s8, %s6
  // Predicated region
  $region2: #{g1_forward.14} parent=0 // pred_check
    _
  $region3: #{g1_forward.14} parent=0 // pred_check_branch
    %11 = sbr.rel (0) target = $region5
  $region4: #{g1_forward.14} parent=0 // pred_region
    _
  $region5: #{g1_forward.14} parent=0 // pred_fallthru
    _
  // Predicated region
  $region6: #{g1_forward.14} parent=0 // pred_check
    _
  $region7: #{g1_forward.14} parent=0 // pred_check_branch
    %13 = sbr.rel (0) target = $region9
  $region8: #{g1_forward.14} parent=0 // pred_region
    _
  $region9: #{g1_forward.14} parent=0 // pred_fallthru
    _
  // Predicated region
  $region10: #{g1_forward.14} parent=0 // pred_check
    _
  $region11: #{g1_forward.14} parent=0 // pred_check_branch
    %15 = sbr.rel (0) target = $region13
  $region12: #{g1_forward.14} parent=0 // pred_region
    _
  $region13: #{g1_forward.14} parent=0 // pred_fallthru
    _
  // Predicated region
  $region14: #{g1_forward.14} parent=0 // pred_check
    _
  $region15: #{g1_forward.14} parent=0 // pred_check_branch
    %17 = sbr.rel (0) target = $region17
  $region16: #{g1_forward.14} parent=0 // pred_region
    _
  $region17: #{g1_forward.14} parent=0 // pred_fallthru
    _
  // Predicated region
  $region18: #{g1_forward.14} parent=0 // pred_check
    _
  $region19: #{g1_forward.14} parent=0 // pred_check_branch
    %19 = sbr.rel (0) target = $region21
  $region20: #{g1_forward.14} parent=0 // pred_region
    _
  $region21: #{g1_forward.14} parent=0 // pred_fallthru
    _
  %v21 = vld [vmem:[%s0] sm:$0xff]
  %v22 = vld [vmem:[%s0 + $0x8] sm:$0xf]
  %v23 = vld [vmem:[%s0 + $0xc] sm:$0xff]
  %v24 = vld [vmem:[%s0 + $0x14] sm:$0xf]
  %v25 = vld [vmem:[%s0 + $0x18] sm:$0xff]
  %v26 = vld [vmem:[%s0 + $0x20] sm:$0xf]
  %v27 = vld [vmem:[%s0 + $0x24] sm:$0xff]
  %v28 = vld [vmem:[%s0 + $0x2c] sm:$0xf]
  %v29 = vld [vmem:[%s1] sm:$0xf]
  %v30 = vld [vmem:[%s1 + $0x4] sm:$0xf]
  %v31 = vld [vmem:[%s1 + $0x8] sm:$0xf]
  %v32 = vld [vmem:[%s1 + $0xc] sm:$0xf]
  %v33 = vld [vmem:[%s1 + $0x10] sm:$0xf]
  %v34 = vld [vmem:[%s1 + $0x14] sm:$0xf]
  %v35 = vld [vmem:[%s1 + $0x18] sm:$0xf]
  %v36 = vld [vmem:[%s1 + $0x1c] sm:$0xf]
  %v37 = vld [vmem:[%s1 + $0x20] sm:$0xf]
  %v38 = vld [vmem:[%s1 + $0x24] sm:$0xf]
  %v39 = vld [vmem:[%s1 + $0x28] sm:$0xf]
  %v40 = vld [vmem:[%s1 + $0x2c] sm:$0xf]
  %v41 = vld [vmem:[%s1 + $0x30] sm:$0xf]
  %v42 = vld [vmem:[%s1 + $0x34] sm:$0xf]
  %v43 = vld [vmem:[%s1 + $0x38] sm:$0xf]
  %v44 = vld [vmem:[%s1 + $0x3c] sm:$0xf]
  %v45 = vld [vmem:[%s1 + $0x40] sm:$0xf]
  %v46 = vld [vmem:[%s1 + $0x44] sm:$0xf]
  %v47 = vld [vmem:[%s1 + $0x48] sm:$0xf]
  %v48 = vld [vmem:[%s1 + $0x4c] sm:$0xf]
  %v49 = vld [vmem:[%s1 + $0x50] sm:$0xf]
  %v50 = vld [vmem:[%s1 + $0x54] sm:$0xf]
  %v51 = vld [vmem:[%s1 + $0x58] sm:$0xf]
  %v52 = vld [vmem:[%s1 + $0x5c] sm:$0xf]
  %v53 = vld [vmem:[%s1 + $0x60] sm:$0xf]
  %v54 = vld [vmem:[%s1 + $0x64] sm:$0xf]
  %v55 = vld [vmem:[%s1 + $0x68] sm:$0xf]
  %v56 = vld [vmem:[%s1 + $0x6c] sm:$0xf]
  %v57 = vld [vmem:[%s1 + $0x70] sm:$0xf]
  %v58 = vld [vmem:[%s1 + $0x74] sm:$0xf]
  %v59 = vld [vmem:[%s1 + $0x78] sm:$0xf]
  %v60 = vld [vmem:[%s1 + $0x7c] sm:$0xf]
  %v61 = vld [vmem:[%s1 + $0x80] sm:$0xf]
  %v62 = vld [vmem:[%s1 + $0x84] sm:$0xf]
  %v63 = vld [vmem:[%s1 + $0x88] sm:$0xf]
  %v64 = vld [vmem:[%s1 + $0x8c] sm:$0xf]
  %v73 = vunpack.c.l.b16 %v21
  %v74 = vunpack.c.h.b16 %v21
  %v75 = vunpack.c.l.b16 %v22
  %v76 = vunpack.c.l.b16 %v23
  %v77 = vunpack.c.h.b16 %v23
  %v78 = vunpack.c.l.b16 %v24
  %v79 = vunpack.c.l.b16 %v25
  %v80 = vunpack.c.h.b16 %v25
  %v81 = vunpack.c.l.b16 %v26
  %v82 = vunpack.c.l.b16 %v27
  %v83 = vunpack.c.h.b16 %v27
  %v84 = vunpack.c.l.b16 %v28
  %v85 = vpack.c.b16 %v76, %v73
  %v86 = vpack.c.b16 %v77, %v74
  %v87 = vpack.c.b16 %v78, %v75
  %v88 = vpack.c.b16 %v82, %v79
  %v89 = vpack.c.b16 %v83, %v80
  %v90 = vpack.c.b16 %v84, %v81
  %v131 = vunpack.c.l.b16 %v29
  %v132 = vunpack.c.l.b16 %v30
  %v133 = vunpack.c.l.b16 %v31
  %v134 = vunpack.c.l.b16 %v32
  %v135 = vunpack.c.l.b16 %v33
  %v136 = vunpack.c.l.b16 %v34
  %v137 = vunpack.c.l.b16 %v35
  %v138 = vunpack.c.l.b16 %v36
  %v139 = vunpack.c.l.b16 %v37
  %v140 = vunpack.c.l.b16 %v38
  %v141 = vunpack.c.l.b16 %v39
  %v142 = vunpack.c.l.b16 %v40
  %v143 = vunpack.c.l.b16 %v41
  %v144 = vunpack.c.l.b16 %v42
  %v145 = vunpack.c.l.b16 %v43
  %v146 = vunpack.c.l.b16 %v44
  %v147 = vunpack.c.l.b16 %v45
  %v148 = vunpack.c.l.b16 %v46
  %v149 = vunpack.c.l.b16 %v47
  %v150 = vunpack.c.l.b16 %v48
  %v151 = vunpack.c.l.b16 %v49
  %v152 = vunpack.c.l.b16 %v50
  %v153 = vunpack.c.l.b16 %v51
  %v154 = vunpack.c.l.b16 %v52
  %v155 = vunpack.c.l.b16 %v53
  %v156 = vunpack.c.l.b16 %v54
  %v157 = vunpack.c.l.b16 %v55
  %v158 = vunpack.c.l.b16 %v56
  %v159 = vunpack.c.l.b16 %v57
  %v160 = vunpack.c.l.b16 %v58
  %v161 = vunpack.c.l.b16 %v59
  %v162 = vunpack.c.l.b16 %v60
  %v163 = vunpack.c.l.b16 %v61
  %v164 = vunpack.c.l.b16 %v62
  %v165 = vunpack.c.l.b16 %v63
  %v166 = vunpack.c.l.b16 %v64
  %v167 = vpack.c.b16 %v132, %v131
  %v168 = vpack.c.b16 %v134, %v133
  %v169 = vpack.c.b16 %v136, %v135
  %v170 = vpack.c.b16 %v138, %v137
  %v171 = vpack.c.b16 %v140, %v139
  %v172 = vpack.c.b16 %v142, %v141
  %v173 = vpack.c.b16 %v144, %v143
  %v174 = vpack.c.b16 %v146, %v145
  %v175 = vpack.c.b16 %v148, %v147
  %v176 = vpack.c.b16 %v150, %v149
  %v177 = vpack.c.b16 %v152, %v151
  %v178 = vpack.c.b16 %v154, %v153
  %v179 = vpack.c.b16 %v156, %v155
  %v180 = vpack.c.b16 %v158, %v157
  %v181 = vpack.c.b16 %v160, %v159
  %v182 = vpack.c.b16 %v162, %v161
  %v183 = vpack.c.b16 %v164, %v163
  %v184 = vpack.c.b16 %v166, %v165
  %vm203 = vcmask 261120
  %v205 = vsel %vm203, %v87, 0
  %v208 = vsel %vm203, %v90, 0
  %210 = vmatprep.subr.bf16.mxu0 0
  %211 = vmatpush1.bf16.msra.mxu0 %v167
  %212 = vmatprep.subr.bf16.mxu0 0
  %213 = vmatpush1.bf16.msra.mxu0 %v168
  %214 = vmatprep.subr.bf16.mxu0 0
  %215 = vmatpush1.bf16.msra.mxu0 %v169
  %216 = vmatprep.subr.bf16.mxu0 0
  %217 = vmatpush1.bf16.msra.mxu0 %v170
  %218 = vmatprep.subr.bf16.mxu0 0
  %219 = vmatpush1.bf16.msra.mxu0 %v171
  %220 = vmatprep.subr.bf16.mxu0 0
  %221 = vmatpush1.bf16.msra.mxu0 %v172
  %222 = vmatprep.subr.bf16.mxu0 0
  %223 = vmatpush1.bf16.msra.mxu0 %v173
  %224 = vmatprep.subr.bf16.mxu0 0
  %225 = vmatpush1.bf16.msra.mxu0 %v174
  %226 = vmatprep.subr.bf16.mxu0 0
  %227 = vmatpush1.bf16.msra.mxu0 %v175
  %228 = vmatprep.subr.bf16.mxu0 0
  %229 = vmatpush1.bf16.msra.mxu0 %v176
  %230 = vmatprep.subr.bf16.mxu0 0
  %231 = vmatpush1.bf16.msra.mxu0 %v177
  %232 = vmatprep.subr.bf16.mxu0 0
  %233 = vmatpush1.bf16.msra.mxu0 %v178
  %234 = vmatprep.subr.bf16.mxu0 0
  %235 = vmatpush1.bf16.msra.mxu0 %v179
  %236 = vmatprep.subr.bf16.mxu0 0
  %237 = vmatpush1.bf16.msra.mxu0 %v180
  %238 = vmatprep.subr.bf16.mxu0 0
  %239 = vmatpush1.bf16.msra.mxu0 %v181
  %240 = vmatprep.subr.bf16.mxu0 0
  %241 = vmatpush1.bf16.msra.mxu0 %v182
  %242 = vmatprep.mubr.bf16.mxu0 %v86
  %243 = vmatmul.mubr.bf16.gmra.mrb[0].mxu0 %v85
  %v244 = vpop.f32.mrb[0].mxu0
  %v245 = vadd.f32 0.0, %v244
  %v246 = vpop.f32.mrb[0].mxu0
  %v247 = vpop.f32.mrb[0].mxu0
  %v248 = vadd.f32 0.0, %v247
  %v249 = vpop.f32.mrb[0].mxu0
  %250 = vmatprep.mubr.bf16.mxu0 %v89
  %251 = vmatmul.mubr.bf16.gmra.mrb[0].mxu0 %v88
  %v252 = vpop.f32.mrb[0].mxu0
  %v253 = vadd.f32 0.0, %v252
  %v254 = vpop.f32.mrb[0].mxu0
  %v255 = vpop.f32.mrb[0].mxu0
  %v256 = vadd.f32 0.0, %v255
  %v257 = vpop.f32.mrb[0].mxu0
  %258 = vdwg.mxu0
  %259 = vmatprep.subr.bf16.mxu0 0
  %260 = vmatpush1.bf16.msra.mxu0 %v183
  %261 = vmatprep.subr.bf16.mxu0 0
  %262 = vmatpush1.bf16.msra.mxu0 %v184
  %263 = vmatprep.subr.bf16.mxu0 0
  %264 = vmatpush1.bf16.msra.mxu0 0
  %265 = vmatprep.subr.bf16.mxu0 0
  %266 = vmatpush1.bf16.msra.mxu0 0
  %267 = vmatprep.subr.bf16.mxu0 0
  %268 = vmatpush1.bf16.msra.mxu0 0
  %269 = vmatprep.subr.bf16.mxu0 0
  %270 = vmatpush1.bf16.msra.mxu0 0
  %271 = vmatprep.subr.bf16.mxu0 0
  %272 = vmatpush1.bf16.msra.mxu0 0
  %273 = vmatprep.subr.bf16.mxu0 0
  %274 = vmatpush1.bf16.msra.mxu0 0
  %275 = vmatprep.subr.bf16.mxu0 0
  %276 = vmatpush1.bf16.msra.mxu0 0
  %277 = vmatprep.subr.bf16.mxu0 0
  %278 = vmatpush1.bf16.msra.mxu0 0
  %279 = vmatprep.subr.bf16.mxu0 0
  %280 = vmatpush1.bf16.msra.mxu0 0
  %281 = vmatprep.subr.bf16.mxu0 0
  %282 = vmatpush1.bf16.msra.mxu0 0
  %283 = vmatprep.subr.bf16.mxu0 0
  %284 = vmatpush1.bf16.msra.mxu0 0
  %285 = vmatprep.subr.bf16.mxu0 0
  %286 = vmatpush1.bf16.msra.mxu0 0
  %287 = vmatprep.subr.bf16.mxu0 0
  %288 = vmatpush1.bf16.msra.mxu0 0
  %289 = vmatprep.subr.bf16.mxu0 0
  %290 = vmatpush1.bf16.msra.mxu0 0
  %291 = vmatprep.mubr.bf16.mxu0 0
  %292 = vmatmul.mubr.bf16.gmra.mrb[0].mxu0 %v205
  %v293 = vpop.f32.mrb[0].mxu0
  %v294 = vadd.f32 %v245, %v293
  %v295 = vpop.f32.mrb[0].mxu0
  %v296 = vpop.f32.mrb[0].mxu0
  %v297 = vadd.f32 %v248, %v296
  %v298 = vpop.f32.mrb[0].mxu0
  %299 = vmatprep.mubr.bf16.mxu0 0
  %300 = vmatmul.mubr.bf16.gmra.mrb[0].mxu0 %v208
  %v301 = vpop.f32.mrb[0].mxu0
  %v302 = vadd.f32 %v253, %v301
  %v303 = vpop.f32.mrb[0].mxu0
  %v304 = vpop.f32.mrb[0].mxu0
  %v305 = vadd.f32 %v256, %v304
  %v306 = vpop.f32.mrb[0].mxu0
  %307 = vdwg.mxu0
  %v308 = vld [vmem:[%s2] sm:$0x1]
  %v310 = vlaneseq
  %v311 = vshrl.u32 %v310, 7
  %v312 = vsub.s32 0, %v311
  %v313 = vrot.slane %v308, %v312
  %v315 = vmul.f32 %v294, %v313
  %v316 = vmul.f32 %v297, %v313
  %v317 = vmul.f32 %v302, %v313
  %v318 = vmul.f32 %v305, %v313
  %v319 = vld [vmem:[%s3] sm:$0x1]
  %v321 = vlaneseq
  %v322 = vshrl.u32 %v321, 7
  %v323 = vsub.s32 0, %v322
  %v324 = vrot.slane %v319, %v323
  %v326 = vadd.f32 %v315, %v324
  %v327 = vadd.f32 %v316, %v324
  %v328 = vadd.f32 %v317, %v324
  %v329 = vadd.f32 %v318, %v324
  %v330 = vld [vmem:[%s4] sm:$0xf]
  %v331 = vld [vmem:[%s4 + $0x4] sm:$0xf]
  %v332 = vld [vmem:[%s4 + $0x8] sm:$0xf]
  %v333 = vld [vmem:[%s4 + $0xc] sm:$0xf]
  %v334 = vunpack.c.l.bf16 %v330
  %v335 = vunpack.c.l.bf16 %v331
  %v336 = vunpack.c.l.bf16 %v332
  %v337 = vunpack.c.l.bf16 %v333
  %v338 = vadd.f32 %v326, %v334
  %v339 = vadd.f32 %v327, %v335
  %v340 = vadd.f32 %v328, %v336
  %v341 = vadd.f32 %v329, %v337
  %v342 = vpack.c.bf16 %v339, %v338
  %v343 = vpack.c.bf16 %v341, %v340
  %v346 = vunpack.c.l.b16 %v342
  %v347 = vunpack.c.h.b16 %v342
  %v348 = vunpack.c.l.b16 %v343
  %v349 = vunpack.c.h.b16 %v343
  %v350 = vpack.c.b16 %v346, %v346
  %v351 = vpack.c.b16 %v347, %v347
  %v352 = vpack.c.b16 %v348, %v348
  %v353 = vpack.c.b16 %v349, %v349
  %358 = vst [vmem:[%s5] sm:$0xf] %v350
  %359 = vst [vmem:[%s5 + $0x4] sm:$0xf] %v351
  %360 = vst [vmem:[%s5 + $0x8] sm:$0xf] %v352
  %361 = vst [vmem:[%s5 + $0xc] sm:$0xf] %v353
  // Predicated region
  $region22: #{g1_forward.14} parent=0 // pred_check
    _
  $region23: #{g1_forward.14} parent=0 // pred_check_branch
    %363 = sbr.rel (0) target = $region25
  $region24: #{g1_forward.14} parent=0 // pred_region
    _
  $region25: #{g1_forward.14} parent=0 // pred_fallthru
    _
  // Predicated region
  $region26: #{g1_forward.14} parent=0 // pred_check
    _
  $region27: #{g1_forward.14} parent=0 // pred_check_branch
    %365 = sbr.rel (0) target = $region29
  $region28: #{g1_forward.14} parent=0 // pred_region
    _
  $region29: #{g1_forward.14} parent=0 // pred_fallthru
    _

// kernel: g1_forward.13
$region0: #{g1_forward.13}
  #allocation0 [shape = 'u32[]', space=smem, size = 0x4, offset = 0x4, fixed_abs, tag = 'smem constant byte address 0x4 - core index']
  #allocation1 [shape = 'u32[144,128]{1,0:T(1,128)}', space=vmem, size = 0x12000, scoped, tag = 'internal scratch']
  %s0 = inlined_call_operand.vmem [shape: bf16[32,288], index: 0, kind: input, shape index: {}]
  %s1 = inlined_call_operand.vmem [shape: bf16[288,128], index: 1, kind: input, shape index: {}]
  %s2 = inlined_call_operand.vmem [shape: f32[1,128], index: 2, kind: input, shape index: {}]
  %s3 = inlined_call_operand.vmem [shape: f32[1,128], index: 3, kind: input, shape index: {}]
  %s4 = inlined_call_operand.vmem [shape: bf16[32,128], index: 4, kind: output, shape index: {}]
  %s5 = sld [smem:[#allocation0]]
  $region26: #{g1_forward.13} parent=0
    _
  %s7 = ssub.s32 1, %s5
  %s8 = scalar_select 0, %s7, %s5
  // Predicated region
  $region2: #{g1_forward.13} parent=0 // pred_check
    _
  $region3: #{g1_forward.13} parent=0 // pred_check_branch
    %10 = sbr.rel (0) target = $region5
  $region4: #{g1_forward.13} parent=0 // pred_region
    _
  $region5: #{g1_forward.13} parent=0 // pred_fallthru
    _
  // Predicated region
  $region6: #{g1_forward.13} parent=0 // pred_check
    _
  $region7: #{g1_forward.13} parent=0 // pred_check_branch
    %12 = sbr.rel (0) target = $region9
  $region8: #{g1_forward.13} parent=0 // pred_region
    _
  $region9: #{g1_forward.13} parent=0 // pred_fallthru
    _
  // Predicated region
  $region10: #{g1_forward.13} parent=0 // pred_check
    _
  $region11: #{g1_forward.13} parent=0 // pred_check_branch
    %14 = sbr.rel (0) target = $region13
  $region12: #{g1_forward.13} parent=0 // pred_region
    _
  $region13: #{g1_forward.13} parent=0 // pred_fallthru
    _
  // Predicated region
  $region14: #{g1_forward.13} parent=0 // pred_check
    _
  $region15: #{g1_forward.13} parent=0 // pred_check_branch
    %16 = sbr.rel (0) target = $region17
  $region16: #{g1_forward.13} parent=0 // pred_region
    _
  $region17: #{g1_forward.13} parent=0 // pred_fallthru
    _
  %v18 = vld [vmem:[%s0] sm:$0xff]
  %v19 = vld [vmem:[%s0 + $0x8] sm:$0xf]
  %v20 = vld [vmem:[%s0 + $0xc] sm:$0xff]
  %v21 = vld [vmem:[%s0 + $0x14] sm:$0xf]
  %v22 = vld [vmem:[%s0 + $0x18] sm:$0xff]
  %v23 = vld [vmem:[%s0 + $0x20] sm:$0xf]
  %v24 = vld [vmem:[%s0 + $0x24] sm:$0xff]
  %v25 = vld [vmem:[%s0 + $0x2c] sm:$0xf]
  %v26 = vld [vmem:[%s1] sm:$0xf]
  %v27 = vld [vmem:[%s1 + $0x4] sm:$0xf]
  %v28 = vld [vmem:[%s1 + $0x8] sm:$0xf]
  %v29 = vld [vmem:[%s1 + $0xc] sm:$0xf]
  %v30 = vld [vmem:[%s1 + $0x10] sm:$0xf]
  %v31 = vld [vmem:[%s1 + $0x14] sm:$0xf]
  %v32 = vld [vmem:[%s1 + $0x18] sm:$0xf]
  %v33 = vld [vmem:[%s1 + $0x1c] sm:$0xf]
  %v34 = vld [vmem:[%s1 + $0x20] sm:$0xf]
  %v35 = vld [vmem:[%s1 + $0x24] sm:$0xf]
  %v36 = vld [vmem:[%s1 + $0x28] sm:$0xf]
  %v37 = vld [vmem:[%s1 + $0x2c] sm:$0xf]
  %v38 = vld [vmem:[%s1 + $0x30] sm:$0xf]
  %v39 = vld [vmem:[%s1 + $0x34] sm:$0xf]
  %v40 = vld [vmem:[%s1 + $0x38] sm:$0xf]
  %v41 = vld [vmem:[%s1 + $0x3c] sm:$0xf]
  %v42 = vld [vmem:[%s1 + $0x40] sm:$0xf]
  %v43 = vld [vmem:[%s1 + $0x44] sm:$0xf]
  %v44 = vld [vmem:[%s1 + $0x48] sm:$0xf]
  %v45 = vld [vmem:[%s1 + $0x4c] sm:$0xf]
  %v46 = vld [vmem:[%s1 + $0x50] sm:$0xf]
  %v47 = vld [vmem:[%s1 + $0x54] sm:$0xf]
  %v48 = vld [vmem:[%s1 + $0x58] sm:$0xf]
  %v49 = vld [vmem:[%s1 + $0x5c] sm:$0xf]
  %v50 = vld [vmem:[%s1 + $0x60] sm:$0xf]
  %v51 = vld [vmem:[%s1 + $0x64] sm:$0xf]
  %v52 = vld [vmem:[%s1 + $0x68] sm:$0xf]
  %v53 = vld [vmem:[%s1 + $0x6c] sm:$0xf]
  %v54 = vld [vmem:[%s1 + $0x70] sm:$0xf]
  %v55 = vld [vmem:[%s1 + $0x74] sm:$0xf]
  %v56 = vld [vmem:[%s1 + $0x78] sm:$0xf]
  %v57 = vld [vmem:[%s1 + $0x7c] sm:$0xf]
  %v58 = vld [vmem:[%s1 + $0x80] sm:$0xf]
  %v59 = vld [vmem:[%s1 + $0x84] sm:$0xf]
  %v60 = vld [vmem:[%s1 + $0x88] sm:$0xf]
  %v61 = vld [vmem:[%s1 + $0x8c] sm:$0xf]
  %v70 = vunpack.c.l.b16 %v18
  %v71 = vunpack.c.h.b16 %v18
  %v72 = vunpack.c.l.b16 %v19
  %v73 = vunpack.c.l.b16 %v20
  %v74 = vunpack.c.h.b16 %v20
  %v75 = vunpack.c.l.b16 %v21
  %v76 = vunpack.c.l.b16 %v22
  %v77 = vunpack.c.h.b16 %v22
  %v78 = vunpack.c.l.b16 %v23
  %v79 = vunpack.c.l.b16 %v24
  %v80 = vunpack.c.h.b16 %v24
  %v81 = vunpack.c.l.b16 %v25
  %v82 = vpack.c.b16 %v73, %v70
  %v83 = vpack.c.b16 %v74, %v71
  %v84 = vpack.c.b16 %v75, %v72
  %v85 = vpack.c.b16 %v79, %v76
  %v86 = vpack.c.b16 %v80, %v77
  %v87 = vpack.c.b16 %v81, %v78
  %v128 = vunpack.c.l.b16 %v26
  %v129 = vunpack.c.l.b16 %v27
  %v130 = vunpack.c.l.b16 %v28
  %v131 = vunpack.c.l.b16 %v29
  %v132 = vunpack.c.l.b16 %v30
  %v133 = vunpack.c.l.b16 %v31
  %v134 = vunpack.c.l.b16 %v32
  %v135 = vunpack.c.l.b16 %v33
  %v136 = vunpack.c.l.b16 %v34
  %v137 = vunpack.c.l.b16 %v35
  %v138 = vunpack.c.l.b16 %v36
  %v139 = vunpack.c.l.b16 %v37
  %v140 = vunpack.c.l.b16 %v38
  %v141 = vunpack.c.l.b16 %v39
  %v142 = vunpack.c.l.b16 %v40
  %v143 = vunpack.c.l.b16 %v41
  %v144 = vunpack.c.l.b16 %v42
  %v145 = vunpack.c.l.b16 %v43
  %v146 = vunpack.c.l.b16 %v44
  %v147 = vunpack.c.l.b16 %v45
  %v148 = vunpack.c.l.b16 %v46
  %v149 = vunpack.c.l.b16 %v47
  %v150 = vunpack.c.l.b16 %v48
  %v151 = vunpack.c.l.b16 %v49
  %v152 = vunpack.c.l.b16 %v50
  %v153 = vunpack.c.l.b16 %v51
  %v154 = vunpack.c.l.b16 %v52
  %v155 = vunpack.c.l.b16 %v53
  %v156 = vunpack.c.l.b16 %v54
  %v157 = vunpack.c.l.b16 %v55
  %v158 = vunpack.c.l.b16 %v56
  %v159 = vunpack.c.l.b16 %v57
  %v160 = vunpack.c.l.b16 %v58
  %v161 = vunpack.c.l.b16 %v59
  %v162 = vunpack.c.l.b16 %v60
  %v163 = vunpack.c.l.b16 %v61
  %v164 = vpack.c.b16 %v129, %v128
  %v165 = vpack.c.b16 %v131, %v130
  %v166 = vpack.c.b16 %v133, %v132
  %v167 = vpack.c.b16 %v135, %v134
  %v168 = vpack.c.b16 %v137, %v136
  %v169 = vpack.c.b16 %v139, %v138
  %v170 = vpack.c.b16 %v141, %v140
  %v171 = vpack.c.b16 %v143, %v142
  %v172 = vpack.c.b16 %v145, %v144
  %v173 = vpack.c.b16 %v147, %v146
  %v174 = vpack.c.b16 %v149, %v148
  %v175 = vpack.c.b16 %v151, %v150
  %v176 = vpack.c.b16 %v153, %v152
  %v177 = vpack.c.b16 %v155, %v154
  %v178 = vpack.c.b16 %v157, %v156
  %v179 = vpack.c.b16 %v159, %v158
  %v180 = vpack.c.b16 %v161, %v160
  %v181 = vpack.c.b16 %v163, %v162
  %vm200 = vcmask 261120
  %v202 = vsel %vm200, %v84, 0
  %v205 = vsel %vm200, %v87, 0
  %207 = vmatprep.subr.bf16.mxu0 0
  %208 = vmatpush1.bf16.msra.mxu0 %v164
  %209 = vmatprep.subr.bf16.mxu0 0
  %210 = vmatpush1.bf16.msra.mxu0 %v165
  %211 = vmatprep.subr.bf16.mxu0 0
  %212 = vmatpush1.bf16.msra.mxu0 %v166
  %213 = vmatprep.subr.bf16.mxu0 0
  %214 = vmatpush1.bf16.msra.mxu0 %v167
  %215 = vmatprep.subr.bf16.mxu0 0
  %216 = vmatpush1.bf16.msra.mxu0 %v168
  %217 = vmatprep.subr.bf16.mxu0 0
  %218 = vmatpush1.bf16.msra.mxu0 %v169
  %219 = vmatprep.subr.bf16.mxu0 0
  %220 = vmatpush1.bf16.msra.mxu0 %v170
  %221 = vmatprep.subr.bf16.mxu0 0
  %222 = vmatpush1.bf16.msra.mxu0 %v171
  %223 = vmatprep.subr.bf16.mxu0 0
  %224 = vmatpush1.bf16.msra.mxu0 %v172
  %225 = vmatprep.subr.bf16.mxu0 0
  %226 = vmatpush1.bf16.msra.mxu0 %v173
  %227 = vmatprep.subr.bf16.mxu0 0
  %228 = vmatpush1.bf16.msra.mxu0 %v174
  %229 = vmatprep.subr.bf16.mxu0 0
  %230 = vmatpush1.bf16.msra.mxu0 %v175
  %231 = vmatprep.subr.bf16.mxu0 0
  %232 = vmatpush1.bf16.msra.mxu0 %v176
  %233 = vmatprep.subr.bf16.mxu0 0
  %234 = vmatpush1.bf16.msra.mxu0 %v177
  %235 = vmatprep.subr.bf16.mxu0 0
  %236 = vmatpush1.bf16.msra.mxu0 %v178
  %237 = vmatprep.subr.bf16.mxu0 0
  %238 = vmatpush1.bf16.msra.mxu0 %v179
  %239 = vmatprep.mubr.bf16.mxu0 %v83
  %240 = vmatmul.mubr.bf16.gmra.mrb[0].mxu0 %v82
  %v241 = vpop.f32.mrb[0].mxu0
  %v242 = vadd.f32 0.0, %v241
  %v243 = vpop.f32.mrb[0].mxu0
  %v244 = vpop.f32.mrb[0].mxu0
  %v245 = vadd.f32 0.0, %v244
  %v246 = vpop.f32.mrb[0].mxu0
  %247 = vmatprep.mubr.bf16.mxu0 %v86
  %248 = vmatmul.mubr.bf16.gmra.mrb[0].mxu0 %v85
  %v249 = vpop.f32.mrb[0].mxu0
  %v250 = vadd.f32 0.0, %v249
  %v251 = vpop.f32.mrb[0].mxu0
  %v252 = vpop.f32.mrb[0].mxu0
  %v253 = vadd.f32 0.0, %v252
  %v254 = vpop.f32.mrb[0].mxu0
  %255 = vdwg.mxu0
  %256 = vmatprep.subr.bf16.mxu0 0
  %257 = vmatpush1.bf16.msra.mxu0 %v180
  %258 = vmatprep.subr.bf16.mxu0 0
  %259 = vmatpush1.bf16.msra.mxu0 %v181
  %260 = vmatprep.subr.bf16.mxu0 0
  %261 = vmatpush1.bf16.msra.mxu0 0
  %262 = vmatprep.subr.bf16.mxu0 0
  %263 = vmatpush1.bf16.msra.mxu0 0
  %264 = vmatprep.subr.bf16.mxu0 0
  %265 = vmatpush1.bf16.msra.mxu0 0
  %266 = vmatprep.subr.bf16.mxu0 0
  %267 = vmatpush1.bf16.msra.mxu0 0
  %268 = vmatprep.subr.bf16.mxu0 0
  %269 = vmatpush1.bf16.msra.mxu0 0
  %270 = vmatprep.subr.bf16.mxu0 0
  %271 = vmatpush1.bf16.msra.mxu0 0
  %272 = vmatprep.subr.bf16.mxu0 0
  %273 = vmatpush1.bf16.msra.mxu0 0
  %274 = vmatprep.subr.bf16.mxu0 0
  %275 = vmatpush1.bf16.msra.mxu0 0
  %276 = vmatprep.subr.bf16.mxu0 0
  %277 = vmatpush1.bf16.msra.mxu0 0
  %278 = vmatprep.subr.bf16.mxu0 0
  %279 = vmatpush1.bf16.msra.mxu0 0
  %280 = vmatprep.subr.bf16.mxu0 0
  %281 = vmatpush1.bf16.msra.mxu0 0
  %282 = vmatprep.subr.bf16.mxu0 0
  %283 = vmatpush1.bf16.msra.mxu0 0
  %284 = vmatprep.subr.bf16.mxu0 0
  %285 = vmatpush1.bf16.msra.mxu0 0
  %286 = vmatprep.subr.bf16.mxu0 0
  %287 = vmatpush1.bf16.msra.mxu0 0
  %288 = vmatprep.mubr.bf16.mxu0 0
  %289 = vmatmul.mubr.bf16.gmra.mrb[0].mxu0 %v202
  %v290 = vpop.f32.mrb[0].mxu0
  %v291 = vadd.f32 %v242, %v290
  %v292 = vpop.f32.mrb[0].mxu0
  %v293 = vpop.f32.mrb[0].mxu0
  %v294 = vadd.f32 %v245, %v293
  %v295 = vpop.f32.mrb[0].mxu0
  %296 = vmatprep.mubr.bf16.mxu0 0
  %297 = vmatmul.mubr.bf16.gmra.mrb[0].mxu0 %v205
  %v298 = vpop.f32.mrb[0].mxu0
  %v299 = vadd.f32 %v250, %v298
  %v300 = vpop.f32.mrb[0].mxu0
  %v301 = vpop.f32.mrb[0].mxu0
  %v302 = vadd.f32 %v253, %v301
  %v303 = vpop.f32.mrb[0].mxu0
  %304 = vdwg.mxu0
  %v305 = vld [vmem:[%s2] sm:$0x1]
  %v307 = vlaneseq
  %v308 = vshrl.u32 %v307, 7
  %v309 = vsub.s32 0, %v308
  %v310 = vrot.slane %v305, %v309
  %v312 = vmul.f32 %v291, %v310
  %v313 = vmul.f32 %v294, %v310
  %v314 = vmul.f32 %v299, %v310
  %v315 = vmul.f32 %v302, %v310
  %v316 = vld [vmem:[%s3] sm:$0x1]
  %v318 = vlaneseq
  %v319 = vshrl.u32 %v318, 7
  %v320 = vsub.s32 0, %v319
  %v321 = vrot.slane %v316, %v320
  %v323 = vadd.f32 %v312, %v321
  %v324 = vadd.f32 %v313, %v321
  %v325 = vadd.f32 %v314, %v321
  %v326 = vadd.f32 %v315, %v321
  %v327 = vmax.f32 %v323, 0.0
  %v328 = vmax.f32 %v324, 0.0
  %v329 = vmax.f32 %v325, 0.0
  %v330 = vmax.f32 %v326, 0.0
  %v331 = vpack.c.bf16 %v328, %v327
  %v332 = vpack.c.bf16 %v330, %v329
  %v335 = vunpack.c.l.b16 %v331
  %v336 = vunpack.c.h.b16 %v331
  %v337 = vunpack.c.l.b16 %v332
  %v338 = vunpack.c.h.b16 %v332
  %v339 = vpack.c.b16 %v335, %v335
  %v340 = vpack.c.b16 %v336, %v336
  %v341 = vpack.c.b16 %v337, %v337
  %v342 = vpack.c.b16 %v338, %v338
  %347 = vst [vmem:[%s4] sm:$0xf] %v339
  %348 = vst [vmem:[%s4 + $0x4] sm:$0xf] %v340
  %349 = vst [vmem:[%s4 + $0x8] sm:$0xf] %v341
  %350 = vst [vmem:[%s4 + $0xc] sm:$0xf] %v342
  // Predicated region
  $region18: #{g1_forward.13} parent=0 // pred_check
    _
  $region19: #{g1_forward.13} parent=0 // pred_check_branch
    %352 = sbr.rel (0) target = $region21
  $region20: #{g1_forward.13} parent=0 // pred_region
    _
  $region21: #{g1_forward.13} parent=0 // pred_fallthru
    _
  // Predicated region
  $region22: #{g1_forward.13} parent=0 // pred_check
    _
  $region23: #{g1_forward.13} parent=0 // pred_check_branch
    %354 = sbr.rel (0) target = $region25
  $region24: #{g1_forward.13} parent=0 // pred_region
    _
  $region25: #{g1_forward.13} parent=0 // pred_fallthru
    _

// kernel: g1_forward.19
$region0: #{g1_forward.19}
  #allocation0 [shape = 'u32[]', space=smem, size = 0x4, offset = 0x4, fixed_abs, tag = 'smem constant byte address 0x4 - core index']
  #allocation1 [shape = 'u32[144,128]{1,0:T(1,128)}', space=vmem, size = 0x12000, scoped, tag = 'internal scratch']
  %s0 = inlined_call_operand.vmem [shape: bf16[32,1568], index: 0, kind: input, shape index: {}]
  %s1 = inlined_call_operand.vmem [shape: bf16[1568,128], index: 1, kind: input, shape index: {}]
  %s2 = inlined_call_operand.vmem [shape: f32[1,128], index: 2, kind: input, shape index: {}]
  %s3 = inlined_call_operand.vmem [shape: f32[1,128], index: 3, kind: input, shape index: {}]
  %s4 = inlined_call_operand.hbm [shape: f32[32,128], index: 4, kind: output, shape index: {}]
  %s5 = sld [smem:[#allocation0]]
  $region26: #{g1_forward.19} parent=0
    _
  %s7 = ssub.s32 1, %s5
  %s8 = scalar_select 0, %s7, %s5
  $region1: #{g1_forward.19} parent=0
    #allocation2 [shape = 'u8[16384]{0}', space=vmem, size = 0x4000, scoped, tag = 'output window, operand 0, single buffered']
    #allocation3 [shape = 's32[1]{0}', space=sflag, size = 0x4, scoped, tag = 'scoped memory for g1_forward.19']
    %9 = vsyncpa [#allocation3], 0
    // Predicated region
    $region2: #{g1_forward.19} parent=1 // pred_check
      _
    $region3: #{g1_forward.19} parent=1 // pred_check_branch
      %11 = sbr.rel (0) target = $region5
    $region4: #{g1_forward.19} parent=1 // pred_region
      _
    $region5: #{g1_forward.19} parent=1 // pred_fallthru
      _
    // Predicated region
    $region6: #{g1_forward.19} parent=1 // pred_check
      _
    $region7: #{g1_forward.19} parent=1 // pred_check_branch
      %13 = sbr.rel (0) target = $region9
    $region8: #{g1_forward.19} parent=1 // pred_region
      _
    $region9: #{g1_forward.19} parent=1 // pred_fallthru
      _
    // Predicated region
    $region10: #{g1_forward.19} parent=1 // pred_check
      _
    $region11: #{g1_forward.19} parent=1 // pred_check_branch
      %15 = sbr.rel (0) target = $region13
    $region12: #{g1_forward.19} parent=1 // pred_region
      _
    $region13: #{g1_forward.19} parent=1 // pred_fallthru
      _
    // Predicated region
    $region14: #{g1_forward.19} parent=1 // pred_check
      _
    $region15: #{g1_forward.19} parent=1 // pred_check_branch
      %17 = sbr.rel (0) target = $region17
    $region16: #{g1_forward.19} parent=1 // pred_region
      _
    $region17: #{g1_forward.19} parent=1 // pred_fallthru
      _
    %v19 = vld [vmem:[%s0] sm:$0xff]
    %v20 = vld [vmem:[%s0 + $0x8] sm:$0xff]
    %v21 = vld [vmem:[%s0 + $0x10] sm:$0xff]
    %v22 = vld [vmem:[%s0 + $0x18] sm:$0xff]
    %v23 = vld [vmem:[%s0 + $0x20] sm:$0xff]
    %v24 = vld [vmem:[%s0 + $0x28] sm:$0xff]
    %v25 = vld [vmem:[%s0 + $0x30] sm:$0xf]
    %v26 = vld [vmem:[%s0 + $0x34] sm:$0xff]
    %v27 = vld [vmem:[%s0 + $0x3c] sm:$0xff]
    %v28 = vld [vmem:[%s0 + $0x44] sm:$0xff]
    %v29 = vld [vmem:[%s0 + $0x4c] sm:$0xff]
    %v30 = vld [vmem:[%s0 + $0x54] sm:$0xff]
    %v31 = vld [vmem:[%s0 + $0x5c] sm:$0xff]
    %v32 = vld [vmem:[%s0 + $0x64] sm:$0xf]
    %v33 = vld [vmem:[%s0 + $0x68] sm:$0xff]
    %v34 = vld [vmem:[%s0 + $0x70] sm:$0xff]
    %v35 = vld [vmem:[%s0 + $0x78] sm:$0xff]
    %v36 = vld [vmem:[%s0 + $0x80] sm:$0xff]
    %v37 = vld [vmem:[%s0 + $0x88] sm:$0xff]
    %v38 = vld [vmem:[%s0 + $0x90] sm:$0xff]
    %v39 = vld [vmem:[%s0 + $0x98] sm:$0xf]
    %v40 = vld [vmem:[%s0 + $0x9c] sm:$0xff]
    %v41 = vld [vmem:[%s0 + $0xa4] sm:$0xff]
    %v42 = vld [vmem:[%s0 + $0xac] sm:$0xff]
    %v43 = vld [vmem:[%s0 + $0xb4] sm:$0xff]
    %v44 = vld [vmem:[%s0 + $0xbc] sm:$0xff]
    %v45 = vld [vmem:[%s0 + $0xc4] sm:$0xff]
    %v46 = vld [vmem:[%s0 + $0xcc] sm:$0xf]
    %v47 = vld [vmem:[%s1] sm:$0xf]
    %v48 = vld [vmem:[%s1 + $0x4] sm:$0xf]
    %v49 = vld [vmem:[%s1 + $0x8] sm:$0xf]
    %v50 = vld [vmem:[%s1 + $0xc] sm:$0xf]
    %v51 = vld [vmem:[%s1 + $0x10] sm:$0xf]
    %v52 = vld [vmem:[%s1 + $0x14] sm:$0xf]
    %v53 = vld [vmem:[%s1 + $0x18] sm:$0xf]
    %v54 = vld [vmem:[%s1 + $0x1c] sm:$0xf]
    %v55 = vld [vmem:[%s1 + $0x20] sm:$0xf]
    %v56 = vld [vmem:[%s1 + $0x24] sm:$0xf]
    %v57 = vld [vmem:[%s1 + $0x28] sm:$0xf]
    %v58 = vld [vmem:[%s1 + $0x2c] sm:$0xf]
    %v59 = vld [vmem:[%s1 + $0x30] sm:$0xf]
    %v60 = vld [vmem:[%s1 + $0x34] sm:$0xf]
    %v61 = vld [vmem:[%s1 + $0x38] sm:$0xf]
    %v62 = vld [vmem:[%s1 + $0x3c] sm:$0xf]
    %v63 = vld [vmem:[%s1 + $0x40] sm:$0xf]
    %v64 = vld [vmem:[%s1 + $0x44] sm:$0xf]
    %v65 = vld [vmem:[%s1 + $0x48] sm:$0xf]
    %v66 = vld [vmem:[%s1 + $0x4c] sm:$0xf]
    %v67 = vld [vmem:[%s1 + $0x50] sm:$0xf]
    %v68 = vld [vmem:[%s1 + $0x54] sm:$0xf]
    %v69 = vld [vmem:[%s1 + $0x58] sm:$0xf]
    %v70 = vld [vmem:[%s1 + $0x5c] sm:$0xf]
    %v71 = vld [vmem:[%s1 + $0x60] sm:$0xf]
    %v72 = vld [vmem:[%s1 + $0x64] sm:$0xf]
    %v73 = vld [vmem:[%s1 + $0x68] sm:$0xf]
    %v74 = vld [vmem:[%s1 + $0x6c] sm:$0xf]
    %v75 = vld [vmem:[%s1 + $0x70] sm:$0xf]
    %v76 = vld [vmem:[%s1 + $0x74] sm:$0xf]
    %v77 = vld [vmem:[%s1 + $0x78] sm:$0xf]
    %v78 = vld [vmem:[%s1 + $0x7c] sm:$0xf]
    %v79 = vld [vmem:[%s1 + $0x80] sm:$0xf]
    %v80 = vld [vmem:[%s1 + $0x84] sm:$0xf]
    %v81 = vld [vmem:[%s1 + $0x88] sm:$0xf]
    %v82 = vld [vmem:[%s1 + $0x8c] sm:$0xf]
    %v83 = vld [vmem:[%s1 + $0x90] sm:$0xf]
    %v84 = vld [vmem:[%s1 + $0x94] sm:$0xf]
    %v85 = vld [vmem:[%s1 + $0x98] sm:$0xf]
    %v86 = vld [vmem:[%s1 + $0x9c] sm:$0xf]
    %v87 = vld [vmem:[%s1 + $0xa0] sm:$0xf]
    %v88 = vld [vmem:[%s1 + $0xa4] sm:$0xf]
    %v89 = vld [vmem:[%s1 + $0xa8] sm:$0xf]
    %v90 = vld [vmem:[%s1 + $0xac] sm:$0xf]
    %v91 = vld [vmem:[%s1 + $0xb0] sm:$0xf]
    %v92 = vld [vmem:[%s1 + $0xb4] sm:$0xf]
    %v93 = vld [vmem:[%s1 + $0xb8] sm:$0xf]
    %v94 = vld [vmem:[%s1 + $0xbc] sm:$0xf]
    %v95 = vld [vmem:[%s1 + $0xc0] sm:$0xf]
    %v96 = vld [vmem:[%s1 + $0xc4] sm:$0xf]
    %v97 = vld [vmem:[%s1 + $0xc8] sm:$0xf]
    %v98 = vld [vmem:[%s1 + $0xcc] sm:$0xf]
    %v99 = vld [vmem:[%s1 + $0xd0] sm:$0xf]
    %v100 = vld [vmem:[%s1 + $0xd4] sm:$0xf]
    %v101 = vld [vmem:[%s1 + $0xd8] sm:$0xf]
    %v102 = vld [vmem:[%s1 + $0xdc] sm:$0xf]
    %v103 = vld [vmem:[%s1 + $0xe0] sm:$0xf]
    %v104 = vld [vmem:[%s1 + $0xe4] sm:$0xf]
    %v105 = vld [vmem:[%s1 + $0xe8] sm:$0xf]
    %v106 = vld [vmem:[%s1 + $0xec] sm:$0xf]
    %v107 = vld [vmem:[%s1 + $0xf0] sm:$0xf]
    %v108 = vld [vmem:[%s1 + $0xf4] sm:$0xf]
    %v109 = vld [vmem:[%s1 + $0xf8] sm:$0xf]
    %v110 = vld [vmem:[%s1 + $0xfc] sm:$0xf]
    %v111 = vld [vmem:[%s1 + $0x100] sm:$0xf]
    %v112 = vld [vmem:[%s1 + $0x104] sm:$0xf]
    %v113 = vld [vmem:[%s1 + $0x108] sm:$0xf]
    %v114 = vld [vmem:[%s1 + $0x10c] sm:$0xf]
    %v115 = vld [vmem:[%s1 + $0x110] sm:$0xf]
    %v116 = vld [vmem:[%s1 + $0x114] sm:$0xf]
    %v117 = vld [vmem:[%s1 + $0x118] sm:$0xf]
    %v118 = vld [vmem:[%s1 + $0x11c] sm:$0xf]
    %v119 = vld [vmem:[%s1 + $0x120] sm:$0xf]
    %v120 = vld [vmem:[%s1 + $0x124] sm:$0xf]
    %v121 = vld [vmem:[%s1 + $0x128] sm:$0xf]
    %v122 = vld [vmem:[%s1 + $0x12c] sm:$0xf]
    %v123 = vld [vmem:[%s1 + $0x130] sm:$0xf]
    %v124 = vld [vmem:[%s1 + $0x134] sm:$0xf]
    %v125 = vld [vmem:[%s1 + $0x138] sm:$0xf]
    %v126 = vld [vmem:[%s1 + $0x13c] sm:$0xf]
    %v127 = vld [vmem:[%s1 + $0x140] sm:$0xf]
    %v128 = vld [vmem:[%s1 + $0x144] sm:$0xf]
    %v129 = vld [vmem:[%s1 + $0x148] sm:$0xf]
    %v130 = vld [vmem:[%s1 + $0x14c] sm:$0xf]
    %v131 = vld [vmem:[%s1 + $0x150] sm:$0xf]
    %v132 = vld [vmem:[%s1 + $0x154] sm:$0xf]
    %v133 = vld [vmem:[%s1 + $0x158] sm:$0xf]
    %v134 = vld [vmem:[%s1 + $0x15c] sm:$0xf]
    %v135 = vld [vmem:[%s1 + $0x160] sm:$0xf]
    %v136 = vld [vmem:[%s1 + $0x164] sm:$0xf]
    %v137 = vld [vmem:[%s1 + $0x168] sm:$0xf]
    %v138 = vld [vmem:[%s1 + $0x16c] sm:$0xf]
    %v139 = vld [vmem:[%s1 + $0x170] sm:$0xf]
    %v140 = vld [vmem:[%s1 + $0x174] sm:$0xf]
    %v141 = vld [vmem:[%s1 + $0x178] sm:$0xf]
    %v142 = vld [vmem:[%s1 + $0x17c] sm:$0xf]
    %v143 = vld [vmem:[%s1 + $0x180] sm:$0xf]
    %v144 = vld [vmem:[%s1 + $0x184] sm:$0xf]
    %v145 = vld [vmem:[%s1 + $0x188] sm:$0xf]
    %v146 = vld [vmem:[%s1 + $0x18c] sm:$0xf]
    %v147 = vld [vmem:[%s1 + $0x190] sm:$0xf]
    %v148 = vld [vmem:[%s1 + $0x194] sm:$0xf]
    %v149 = vld [vmem:[%s1 + $0x198] sm:$0xf]
    %v150 = vld [vmem:[%s1 + $0x19c] sm:$0xf]
    %v151 = vld [vmem:[%s1 + $0x1a0] sm:$0xf]
    %v152 = vld [vmem:[%s1 + $0x1a4] sm:$0xf]
    %v153 = vld [vmem:[%s1 + $0x1a8] sm:$0xf]
    %v154 = vld [vmem:[%s1 + $0x1ac] sm:$0xf]
    %v155 = vld [vmem:[%s1 + $0x1b0] sm:$0xf]
    %v156 = vld [vmem:[%s1 + $0x1b4] sm:$0xf]
    %v157 = vld [vmem:[%s1 + $0x1b8] sm:$0xf]
    %v158 = vld [vmem:[%s1 + $0x1bc] sm:$0xf]
    %v159 = vld [vmem:[%s1 + $0x1c0] sm:$0xf]
    %v160 = vld [vmem:[%s1 + $0x1c4] sm:$0xf]
    %v161 = vld [vmem:[%s1 + $0x1c8] sm:$0xf]
    %v162 = vld [vmem:[%s1 + $0x1cc] sm:$0xf]
    %v163 = vld [vmem:[%s1 + $0x1d0] sm:$0xf]
    %v164 = vld [vmem:[%s1 + $0x1d4] sm:$0xf]
    %v165 = vld [vmem:[%s1 + $0x1d8] sm:$0xf]
    %v166 = vld [vmem:[%s1 + $0x1dc] sm:$0xf]
    %v167 = vld [vmem:[%s1 + $0x1e0] sm:$0xf]
    %v168 = vld [vmem:[%s1 + $0x1e4] sm:$0xf]
    %v169 = vld [vmem:[%s1 + $0x1e8] sm:$0xf]
    %v170 = vld [vmem:[%s1 + $0x1ec] sm:$0xf]
    %v171 = vld [vmem:[%s1 + $0x1f0] sm:$0xf]
    %v172 = vld [vmem:[%s1 + $0x1f4] sm:$0xf]
    %v173 = vld [vmem:[%s1 + $0x1f8] sm:$0xf]
    %v174 = vld [vmem:[%s1 + $0x1fc] sm:$0xf]
    %v175 = vld [vmem:[%s1 + $0x200] sm:$0xf]
    %v176 = vld [vmem:[%s1 + $0x204] sm:$0xf]
    %v177 = vld [vmem:[%s1 + $0x208] sm:$0xf]
    %v178 = vld [vmem:[%s1 + $0x20c] sm:$0xf]
    %v179 = vld [vmem:[%s1 + $0x210] sm:$0xf]
    %v180 = vld [vmem:[%s1 + $0x214] sm:$0xf]
    %v181 = vld [vmem:[%s1 + $0x218] sm:$0xf]
    %v182 = vld [vmem:[%s1 + $0x21c] sm:$0xf]
    %v183 = vld [vmem:[%s1 + $0x220] sm:$0xf]
    %v184 = vld [vmem:[%s1 + $0x224] sm:$0xf]
    %v185 = vld [vmem:[%s1 + $0x228] sm:$0xf]
    %v186 = vld [vmem:[%s1 + $0x22c] sm:$0xf]
    %v187 = vld [vmem:[%s1 + $0x230] sm:$0xf]
    %v188 = vld [vmem:[%s1 + $0x234] sm:$0xf]
    %v189 = vld [vmem:[%s1 + $0x238] sm:$0xf]
    %v190 = vld [vmem:[%s1 + $0x23c] sm:$0xf]
    %v191 = vld [vmem:[%s1 + $0x240] sm:$0xf]
    %v192 = vld [vmem:[%s1 + $0x244] sm:$0xf]
    %v193 = vld [vmem:[%s1 + $0x248] sm:$0xf]
    %v194 = vld [vmem:[%s1 + $0x24c] sm:$0xf]
    %v195 = vld [vmem:[%s1 + $0x250] sm:$0xf]
    %v196 = vld [vmem:[%s1 + $0x254] sm:$0xf]
    %v197 = vld [vmem:[%s1 + $0x258] sm:$0xf]
    %v198 = vld [vmem:[%s1 + $0x25c] sm:$0xf]
    %v199 = vld [vmem:[%s1 + $0x260] sm:$0xf]
    %v200 = vld [vmem:[%s1 + $0x264] sm:$0xf]
    %v201 = vld [vmem:[%s1 + $0x268] sm:$0xf]
    %v202 = vld [vmem:[%s1 + $0x26c] sm:$0xf]
    %v203 = vld [vmem:[%s1 + $0x270] sm:$0xf]
    %v204 = vld [vmem:[%s1 + $0x274] sm:$0xf]
    %v205 = vld [vmem:[%s1 + $0x278] sm:$0xf]
    %v206 = vld [vmem:[%s1 + $0x27c] sm:$0xf]
    %v207 = vld [vmem:[%s1 + $0x280] sm:$0xf]
    %v208 = vld [vmem:[%s1 + $0x284] sm:$0xf]
    %v209 = vld [vmem:[%s1 + $0x288] sm:$0xf]
    %v210 = vld [vmem:[%s1 + $0x28c] sm:$0xf]
    %v211 = vld [vmem:[%s1 + $0x290] sm:$0xf]
    %v212 = vld [vmem:[%s1 + $0x294] sm:$0xf]
    %v213 = vld [vmem:[%s1 + $0x298] sm:$0xf]
    %v214 = vld [vmem:[%s1 + $0x29c] sm:$0xf]
    %v215 = vld [vmem:[%s1 + $0x2a0] sm:$0xf]
    %v216 = vld [vmem:[%s1 + $0x2a4] sm:$0xf]
    %v217 = vld [vmem:[%s1 + $0x2a8] sm:$0xf]
    %v218 = vld [vmem:[%s1 + $0x2ac] sm:$0xf]
    %v219 = vld [vmem:[%s1 + $0x2b0] sm:$0xf]
    %v220 = vld [vmem:[%s1 + $0x2b4] sm:$0xf]
    %v221 = vld [vmem:[%s1 + $0x2b8] sm:$0xf]
    %v222 = vld [vmem:[%s1 + $0x2bc] sm:$0xf]
    %v223 = vld [vmem:[%s1 + $0x2c0] sm:$0xf]
    %v224 = vld [vmem:[%s1 + $0x2c4] sm:$0xf]
    %v225 = vld [vmem:[%s1 + $0x2c8] sm:$0xf]
    %v226 = vld [vmem:[%s1 + $0x2cc] sm:$0xf]
    %v227 = vld [vmem:[%s1 + $0x2d0] sm:$0xf]
    %v228 = vld [vmem:[%s1 + $0x2d4] sm:$0xf]
    %v229 = vld [vmem:[%s1 + $0x2d8] sm:$0xf]
    %v230 = vld [vmem:[%s1 + $0x2dc] sm:$0xf]
    %v231 = vld [vmem:[%s1 + $0x2e0] sm:$0xf]
    %v232 = vld [vmem:[%s1 + $0x2e4] sm:$0xf]
    %v233 = vld [vmem:[%s1 + $0x2e8] sm:$0xf]
    %v234 = vld [vmem:[%s1 + $0x2ec] sm:$0xf]
    %v235 = vld [vmem:[%s1 + $0x2f0] sm:$0xf]
    %v236 = vld [vmem:[%s1 + $0x2f4] sm:$0xf]
    %v237 = vld [vmem:[%s1 + $0x2f8] sm:$0xf]
    %v238 = vld [vmem:[%s1 + $0x2fc] sm:$0xf]
    %v239 = vld [vmem:[%s1 + $0x300] sm:$0xf]
    %v240 = vld [vmem:[%s1 + $0x304] sm:$0xf]
    %v241 = vld [vmem:[%s1 + $0x308] sm:$0xf]
    %v242 = vld [vmem:[%s1 + $0x30c] sm:$0xf]
    %v271 = vunpack.c.l.b16 %v19
    %v272 = vunpack.c.h.b16 %v19
    %v273 = vunpack.c.l.b16 %v20
    %v274 = vunpack.c.h.b16 %v20
    %v275 = vunpack.c.l.b16 %v21
    %v276 = vunpack.c.h.b16 %v21
    %v277 = vunpack.c.l.b16 %v22
    %v278 = vunpack.c.h.b16 %v22
    %v279 = vunpack.c.l.b16 %v23
    %v280 = vunpack.c.h.b16 %v23
    %v281 = vunpack.c.l.b16 %v24
    %v282 = vunpack.c.h.b16 %v24
    %v283 = vunpack.c.l.b16 %v25
    %v284 = vunpack.c.l.b16 %v26
    %v285 = vunpack.c.h.b16 %v26
    %v286 = vunpack.c.l.b16 %v27
    %v287 = vunpack.c.h.b16 %v27
    %v288 = vunpack.c.l.b16 %v28
    %v289 = vunpack.c.h.b16 %v28
    %v290 = vunpack.c.l.b16 %v29
    %v291 = vunpack.c.h.b16 %v29
    %v292 = vunpack.c.l.b16 %v30
    %v293 = vunpack.c.h.b16 %v30
    %v294 = vunpack.c.l.b16 %v31
    %v295 = vunpack.c.h.b16 %v31
    %v296 = vunpack.c.l.b16 %v32
    %v297 = vunpack.c.l.b16 %v33
    %v298 = vunpack.c.h.b16 %v33
    %v299 = vunpack.c.l.b16 %v34
    %v300 = vunpack.c.h.b16 %v34
    %v301 = vunpack.c.l.b16 %v35
    %v302 = vunpack.c.h.b16 %v35
    %v303 = vunpack.c.l.b16 %v36
    %v304 = vunpack.c.h.b16 %v36
    %v305 = vunpack.c.l.b16 %v37
    %v306 = vunpack.c.h.b16 %v37
    %v307 = vunpack.c.l.b16 %v38
    %v308 = vunpack.c.h.b16 %v38
    %v309 = vunpack.c.l.b16 %v39
    %v310 = vunpack.c.l.b16 %v40
    %v311 = vunpack.c.h.b16 %v40
    %v312 = vunpack.c.l.b16 %v41
    %v313 = vunpack.c.h.b16 %v41
    %v314 = vunpack.c.l.b16 %v42
    %v315 = vunpack.c.h.b16 %v42
    %v316 = vunpack.c.l.b16 %v43
    %v317 = vunpack.c.h.b16 %v43
    %v318 = vunpack.c.l.b16 %v44
    %v319 = vunpack.c.h.b16 %v44
    %v320 = vunpack.c.l.b16 %v45
    %v321 = vunpack.c.h.b16 %v45
    %v322 = vunpack.c.l.b16 %v46
    %v323 = vpack.c.b16 %v284, %v271
    %v324 = vpack.c.b16 %v285, %v272
    %v325 = vpack.c.b16 %v286, %v273
    %v326 = vpack.c.b16 %v287, %v274
    %v327 = vpack.c.b16 %v288, %v275
    %v328 = vpack.c.b16 %v289, %v276
    %v329 = vpack.c.b16 %v290, %v277
    %v330 = vpack.c.b16 %v291, %v278
    %v331 = vpack.c.b16 %v292, %v279
    %v332 = vpack.c.b16 %v293, %v280
    %v333 = vpack.c.b16 %v294, %v281
    %v334 = vpack.c.b16 %v295, %v282
    %v335 = vpack.c.b16 %v296, %v283
    %v336 = vpack.c.b16 %v310, %v297
    %v337 = vpack.c.b16 %v311, %v298
    %v338 = vpack.c.b16 %v312, %v299
    %v339 = vpack.c.b16 %v313, %v300
    %v340 = vpack.c.b16 %v314, %v301
    %v341 = vpack.c.b16 %v315, %v302
    %v342 = vpack.c.b16 %v316, %v303
    %v343 = vpack.c.b16 %v317, %v304
    %v344 = vpack.c.b16 %v318, %v305
    %v345 = vpack.c.b16 %v319, %v306
    %v346 = vpack.c.b16 %v320, %v307
    %v347 = vpack.c.b16 %v321, %v308
    %v348 = vpack.c.b16 %v322, %v309
    %v569 = vunpack.c.l.b16 %v47
    %v570 = vunpack.c.l.b16 %v48
    %v571 = vunpack.c.l.b16 %v49
    %v572 = vunpack.c.l.b16 %v50
    %v573 = vunpack.c.l.b16 %v51
    %v574 = vunpack.c.l.b16 %v52
    %v575 = vunpack.c.l.b16 %v53
    %v576 = vunpack.c.l.b16 %v54
    %v577 = vunpack.c.l.b16 %v55
    %v578 = vunpack.c.l.b16 %v56
    %v579 = vunpack.c.l.b16 %v57
    %v580 = vunpack.c.l.b16 %v58
    %v581 = vunpack.c.l.b16 %v59
    %v582 = vunpack.c.l.b16 %v60
    %v583 = vunpack.c.l.b16 %v61
    %v584 = vunpack.c.l.b16 %v62
    %v585 = vunpack.c.l.b16 %v63
    %v586 = vunpack.c.l.b16 %v64
    %v587 = vunpack.c.l.b16 %v65
    %v588 = vunpack.c.l.b16 %v66
    %v589 = vunpack.c.l.b16 %v67
    %v590 = vunpack.c.l.b16 %v68
    %v591 = vunpack.c.l.b16 %v69
    %v592 = vunpack.c.l.b16 %v70
    %v593 = vunpack.c.l.b16 %v71
    %v594 = vunpack.c.l.b16 %v72
    %v595 = vunpack.c.l.b16 %v73
    %v596 = vunpack.c.l.b16 %v74
    %v597 = vunpack.c.l.b16 %v75
    %v598 = vunpack.c.l.b16 %v76
    %v599 = vunpack.c.l.b16 %v77
    %v600 = vunpack.c.l.b16 %v78
    %v601 = vunpack.c.l.b16 %v79
    %v602 = vunpack.c.l.b16 %v80
    %v603 = vunpack.c.l.b16 %v81
    %v604 = vunpack.c.l.b16 %v82
    %v605 = vunpack.c.l.b16 %v83
    %v606 = vunpack.c.l.b16 %v84
    %v607 = vunpack.c.l.b16 %v85
    %v608 = vunpack.c.l.b16 %v86
    %v609 = vunpack.c.l.b16 %v87
    %v610 = vunpack.c.l.b16 %v88
    %v611 = vunpack.c.l.b16 %v89
    %v612 = vunpack.c.l.b16 %v90
    %v613 = vunpack.c.l.b16 %v91
    %v614 = vunpack.c.l.b16 %v92
    %v615 = vunpack.c.l.b16 %v93
    %v616 = vunpack.c.l.b16 %v94
    %v617 = vunpack.c.l.b16 %v95
    %v618 = vunpack.c.l.b16 %v96
    %v619 = vunpack.c.l.b16 %v97
    %v620 = vunpack.c.l.b16 %v98
    %v621 = vunpack.c.l.b16 %v99
    %v622 = vunpack.c.l.b16 %v100
    %v623 = vunpack.c.l.b16 %v101
    %v624 = vunpack.c.l.b16 %v102
    %v625 = vunpack.c.l.b16 %v103
    %v626 = vunpack.c.l.b16 %v104
    %v627 = vunpack.c.l.b16 %v105
    %v628 = vunpack.c.l.b16 %v106
    %v629 = vunpack.c.l.b16 %v107
    %v630 = vunpack.c.l.b16 %v108
    %v631 = vunpack.c.l.b16 %v109
    %v632 = vunpack.c.l.b16 %v110
    %v633 = vunpack.c.l.b16 %v111
    %v634 = vunpack.c.l.b16 %v112
    %v635 = vunpack.c.l.b16 %v113
    %v636 = vunpack.c.l.b16 %v114
    %v637 = vunpack.c.l.b16 %v115
    %v638 = vunpack.c.l.b16 %v116
    %v639 = vunpack.c.l.b16 %v117
    %v640 = vunpack.c.l.b16 %v118
    %v641 = vunpack.c.l.b16 %v119
    %v642 = vunpack.c.l.b16 %v120
    %v643 = vunpack.c.l.b16 %v121
    %v644 = vunpack.c.l.b16 %v122
    %v645 = vunpack.c.l.b16 %v123
    %v646 = vunpack.c.l.b16 %v124
    %v647 = vunpack.c.l.b16 %v125
    %v648 = vunpack.c.l.b16 %v126
    %v649 = vunpack.c.l.b16 %v127
    %v650 = vunpack.c.l.b16 %v128
    %v651 = vunpack.c.l.b16 %v129
    %v652 = vunpack.c.l.b16 %v130
    %v653 = vunpack.c.l.b16 %v131
    %v654 = vunpack.c.l.b16 %v132
    %v655 = vunpack.c.l.b16 %v133
    %v656 = vunpack.c.l.b16 %v134
    %v657 = vunpack.c.l.b16 %v135
    %v658 = vunpack.c.l.b16 %v136
    %v659 = vunpack.c.l.b16 %v137
    %v660 = vunpack.c.l.b16 %v138
    %v661 = vunpack.c.l.b16 %v139
    %v662 = vunpack.c.l.b16 %v140
    %v663 = vunpack.c.l.b16 %v141
    %v664 = vunpack.c.l.b16 %v142
    %v665 = vunpack.c.l.b16 %v143
    %v666 = vunpack.c.l.b16 %v144
    %v667 = vunpack.c.l.b16 %v145
    %v668 = vunpack.c.l.b16 %v146
    %v669 = vunpack.c.l.b16 %v147
    %v670 = vunpack.c.l.b16 %v148
    %v671 = vunpack.c.l.b16 %v149
    %v672 = vunpack.c.l.b16 %v150
    %v673 = vunpack.c.l.b16 %v151
    %v674 = vunpack.c.l.b16 %v152
    %v675 = vunpack.c.l.b16 %v153
    %v676 = vunpack.c.l.b16 %v154
    %v677 = vunpack.c.l.b16 %v155
    %v678 = vunpack.c.l.b16 %v156
    %v679 = vunpack.c.l.b16 %v157
    %v680 = vunpack.c.l.b16 %v158
    %v681 = vunpack.c.l.b16 %v159
    %v682 = vunpack.c.l.b16 %v160
    %v683 = vunpack.c.l.b16 %v161
    %v684 = vunpack.c.l.b16 %v162
    %v685 = vunpack.c.l.b16 %v163
    %v686 = vunpack.c.l.b16 %v164
    %v687 = vunpack.c.l.b16 %v165
    %v688 = vunpack.c.l.b16 %v166
    %v689 = vunpack.c.l.b16 %v167
    %v690 = vunpack.c.l.b16 %v168
    %v691 = vunpack.c.l.b16 %v169
    %v692 = vunpack.c.l.b16 %v170
    %v693 = vunpack.c.l.b16 %v171
    %v694 = vunpack.c.l.b16 %v172
    %v695 = vunpack.c.l.b16 %v173
    %v696 = vunpack.c.l.b16 %v174
    %v697 = vunpack.c.l.b16 %v175
    %v698 = vunpack.c.l.b16 %v176
    %v699 = vunpack.c.l.b16 %v177
    %v700 = vunpack.c.l.b16 %v178
    %v701 = vunpack.c.l.b16 %v179
    %v702 = vunpack.c.l.b16 %v180
    %v703 = vunpack.c.l.b16 %v181
    %v704 = vunpack.c.l.b16 %v182
    %v705 = vunpack.c.l.b16 %v183
    %v706 = vunpack.c.l.b16 %v184
    %v707 = vunpack.c.l.b16 %v185
    %v708 = vunpack.c.l.b16 %v186
    %v709 = vunpack.c.l.b16 %v187
    %v710 = vunpack.c.l.b16 %v188
    %v711 = vunpack.c.l.b16 %v189
    %v712 = vunpack.c.l.b16 %v190
    %v713 = vunpack.c.l.b16 %v191
    %v714 = vunpack.c.l.b16 %v192
    %v715 = vunpack.c.l.b16 %v193
    %v716 = vunpack.c.l.b16 %v194
    %v717 = vunpack.c.l.b16 %v195
    %v718 = vunpack.c.l.b16 %v196
    %v719 = vunpack.c.l.b16 %v197
    %v720 = vunpack.c.l.b16 %v198
    %v721 = vunpack.c.l.b16 %v199
    %v722 = vunpack.c.l.b16 %v200
    %v723 = vunpack.c.l.b16 %v201
    %v724 = vunpack.c.l.b16 %v202
    %v725 = vunpack.c.l.b16 %v203
    %v726 = vunpack.c.l.b16 %v204
    %v727 = vunpack.c.l.b16 %v205
    %v728 = vunpack.c.l.b16 %v206
    %v729 = vunpack.c.l.b16 %v207
    %v730 = vunpack.c.l.b16 %v208
    %v731 = vunpack.c.l.b16 %v209
    %v732 = vunpack.c.l.b16 %v210
    %v733 = vunpack.c.l.b16 %v211
    %v734 = vunpack.c.l.b16 %v212
    %v735 = vunpack.c.l.b16 %v213
    %v736 = vunpack.c.l.b16 %v214
    %v737 = vunpack.c.l.b16 %v215
    %v738 = vunpack.c.l.b16 %v216
    %v739 = vunpack.c.l.b16 %v217
    %v740 = vunpack.c.l.b16 %v218
    %v741 = vunpack.c.l.b16 %v219
    %v742 = vunpack.c.l.b16 %v220
    %v743 = vunpack.c.l.b16 %v221
    %v744 = vunpack.c.l.b16 %v222
    %v745 = vunpack.c.l.b16 %v223
    %v746 = vunpack.c.l.b16 %v224
    %v747 = vunpack.c.l.b16 %v225
    %v748 = vunpack.c.l.b16 %v226
    %v749 = vunpack.c.l.b16 %v227
    %v750 = vunpack.c.l.b16 %v228
    %v751 = vunpack.c.l.b16 %v229
    %v752 = vunpack.c.l.b16 %v230
    %v753 = vunpack.c.l.b16 %v231
    %v754 = vunpack.c.l.b16 %v232
    %v755 = vunpack.c.l.b16 %v233
    %v756 = vunpack.c.l.b16 %v234
    %v757 = vunpack.c.l.b16 %v235
    %v758 = vunpack.c.l.b16 %v236
    %v759 = vunpack.c.l.b16 %v237
    %v760 = vunpack.c.l.b16 %v238
    %v761 = vunpack.c.l.b16 %v239
    %v762 = vunpack.c.l.b16 %v240
    %v763 = vunpack.c.l.b16 %v241
    %v764 = vunpack.c.l.b16 %v242
    %v765 = vpack.c.b16 %v570, %v569
    %v766 = vpack.c.b16 %v572, %v571
    %v767 = vpack.c.b16 %v574, %v573
    %v768 = vpack.c.b16 %v576, %v575
    %v769 = vpack.c.b16 %v578, %v577
    %v770 = vpack.c.b16 %v580, %v579
    %v771 = vpack.c.b16 %v582, %v581
    %v772 = vpack.c.b16 %v584, %v583
    %v773 = vpack.c.b16 %v586, %v585
    %v774 = vpack.c.b16 %v588, %v587
    %v775 = vpack.c.b16 %v590, %v589
    %v776 = vpack.c.b16 %v592, %v591
    %v777 = vpack.c.b16 %v594, %v593
    %v778 = vpack.c.b16 %v596, %v595
    %v779 = vpack.c.b16 %v598, %v597
    %v780 = vpack.c.b16 %v600, %v599
    %v781 = vpack.c.b16 %v602, %v601
    %v782 = vpack.c.b16 %v604, %v603
    %v783 = vpack.c.b16 %v606, %v605
    %v784 = vpack.c.b16 %v608, %v607
    %v785 = vpack.c.b16 %v610, %v609
    %v786 = vpack.c.b16 %v612, %v611
    %v787 = vpack.c.b16 %v614, %v613
    %v788 = vpack.c.b16 %v616, %v615
    %v789 = vpack.c.b16 %v618, %v617
    %v790 = vpack.c.b16 %v620, %v619
    %v791 = vpack.c.b16 %v622, %v621
    %v792 = vpack.c.b16 %v624, %v623
    %v793 = vpack.c.b16 %v626, %v625
    %v794 = vpack.c.b16 %v628, %v627
    %v795 = vpack.c.b16 %v630, %v629
    %v796 = vpack.c.b16 %v632, %v631
    %v797 = vpack.c.b16 %v634, %v633
    %v798 = vpack.c.b16 %v636, %v635
    %v799 = vpack.c.b16 %v638, %v637
    %v800 = vpack.c.b16 %v640, %v639
    %v801 = vpack.c.b16 %v642, %v641
    %v802 = vpack.c.b16 %v644, %v643
    %v803 = vpack.c.b16 %v646, %v645
    %v804 = vpack.c.b16 %v648, %v647
    %v805 = vpack.c.b16 %v650, %v649
    %v806 = vpack.c.b16 %v652, %v651
    %v807 = vpack.c.b16 %v654, %v653
    %v808 = vpack.c.b16 %v656, %v655
    %v809 = vpack.c.b16 %v658, %v657
    %v810 = vpack.c.b16 %v660, %v659
    %v811 = vpack.c.b16 %v662, %v661
    %v812 = vpack.c.b16 %v664, %v663
    %v813 = vpack.c.b16 %v666, %v665
    %v814 = vpack.c.b16 %v668, %v667
    %v815 = vpack.c.b16 %v670, %v669
    %v816 = vpack.c.b16 %v672, %v671
    %v817 = vpack.c.b16 %v674, %v673
    %v818 = vpack.c.b16 %v676, %v675
    %v819 = vpack.c.b16 %v678, %v677
    %v820 = vpack.c.b16 %v680, %v679
    %v821 = vpack.c.b16 %v682, %v681
    %v822 = vpack.c.b16 %v684, %v683
    %v823 = vpack.c.b16 %v686, %v685
    %v824 = vpack.c.b16 %v688, %v687
    %v825 = vpack.c.b16 %v690, %v689
    %v826 = vpack.c.b16 %v692, %v691
    %v827 = vpack.c.b16 %v694, %v693
    %v828 = vpack.c.b16 %v696, %v695
    %v829 = vpack.c.b16 %v698, %v697
    %v830 = vpack.c.b16 %v700, %v699
    %v831 = vpack.c.b16 %v702, %v701
    %v832 = vpack.c.b16 %v704, %v703
    %v833 = vpack.c.b16 %v706, %v705
    %v834 = vpack.c.b16 %v708, %v707
    %v835 = vpack.c.b16 %v710, %v709
    %v836 = vpack.c.b16 %v712, %v711
    %v837 = vpack.c.b16 %v714, %v713
    %v838 = vpack.c.b16 %v716, %v715
    %v839 = vpack.c.b16 %v718, %v717
    %v840 = vpack.c.b16 %v720, %v719
    %v841 = vpack.c.b16 %v722, %v721
    %v842 = vpack.c.b16 %v724, %v723
    %v843 = vpack.c.b16 %v726, %v725
    %v844 = vpack.c.b16 %v728, %v727
    %v845 = vpack.c.b16 %v730, %v729
    %v846 = vpack.c.b16 %v732, %v731
    %v847 = vpack.c.b16 %v734, %v733
    %v848 = vpack.c.b16 %v736, %v735
    %v849 = vpack.c.b16 %v738, %v737
    %v850 = vpack.c.b16 %v740, %v739
    %v851 = vpack.c.b16 %v742, %v741
    %v852 = vpack.c.b16 %v744, %v743
    %v853 = vpack.c.b16 %v746, %v745
    %v854 = vpack.c.b16 %v748, %v747
    %v855 = vpack.c.b16 %v750, %v749
    %v856 = vpack.c.b16 %v752, %v751
    %v857 = vpack.c.b16 %v754, %v753
    %v858 = vpack.c.b16 %v756, %v755
    %v859 = vpack.c.b16 %v758, %v757
    %v860 = vpack.c.b16 %v760, %v759
    %v861 = vpack.c.b16 %v762, %v761
    %v862 = vpack.c.b16 %v764, %v763
    %vm961 = vcmask 261120
    %v963 = vsel %vm961, %v335, 0
    %v966 = vsel %vm961, %v348, 0
    %968 = vmatprep.subr.bf16.mxu0 0
    %969 = vmatpush1.bf16.msra.mxu0 %v765
    %970 = vmatprep.subr.bf16.mxu0 0
    %971 = vmatpush1.bf16.msra.mxu0 %v766
    %972 = vmatprep.subr.bf16.mxu0 0
    %973 = vmatpush1.bf16.msra.mxu0 %v767
    %974 = vmatprep.subr.bf16.mxu0 0
    %975 = vmatpush1.bf16.msra.mxu0 %v768
    %976 = vmatprep.subr.bf16.mxu0 0
    %977 = vmatpush1.bf16.msra.mxu0 %v769
    %978 = vmatprep.subr.bf16.mxu0 0
    %979 = vmatpush1.bf16.msra.mxu0 %v770
    %980 = vmatprep.subr.bf16.mxu0 0
    %981 = vmatpush1.bf16.msra.mxu0 %v771
    %982 = vmatprep.subr.bf16.mxu0 0
    %983 = vmatpush1.bf16.msra.mxu0 %v772
    %984 = vmatprep.subr.bf16.mxu0 0
    %985 = vmatpush1.bf16.msra.mxu0 %v773
    %986 = vmatprep.subr.bf16.mxu0 0
    %987 = vmatpush1.bf16.msra.mxu0 %v774
    %988 = vmatprep.subr.bf16.mxu0 0
    %989 = vmatpush1.bf16.msra.mxu0 %v775
    %990 = vmatprep.subr.bf16.mxu0 0
    %991 = vmatpush1.bf16.msra.mxu0 %v776
    %992 = vmatprep.subr.bf16.mxu0 0
    %993 = vmatpush1.bf16.msra.mxu0 %v777
    %994 = vmatprep.subr.bf16.mxu0 0
    %995 = vmatpush1.bf16.msra.mxu0 %v778
    %996 = vmatprep.subr.bf16.mxu0 0
    %997 = vmatpush1.bf16.msra.mxu0 %v779
    %998 = vmatprep.subr.bf16.mxu0 0
    %999 = vmatpush1.bf16.msra.mxu0 %v780
    %1000 = vmatprep.mubr.bf16.mxu0 %v324
    %1001 = vmatmul.mubr.bf16.gmra.mrb[0].mxu0 %v323
    %v1002 = vpop.f32.mrb[0].mxu0
    %v1003 = vadd.f32 0.0, %v1002
    %v1004 = vpop.f32.mrb[0].mxu0
    %v1005 = vpop.f32.mrb[0].mxu0
    %v1006 = vadd.f32 0.0, %v1005
    %v1007 = vpop.f32.mrb[0].mxu0
    %1008 = vmatprep.mubr.bf16.mxu0 %v337
    %1009 = vmatmul.mubr.bf16.gmra.mrb[0].mxu0 %v336
    %v1010 = vpop.f32.mrb[0].mxu0
    %v1011 = vadd.f32 0.0, %v1010
    %v1012 = vpop.f32.mrb[0].mxu0
    %v1013 = vpop.f32.mrb[0].mxu0
    %v1014 = vadd.f32 0.0, %v1013
    %v1015 = vpop.f32.mrb[0].mxu0
    %1016 = vdwg.mxu0
    %1017 = vmatprep.subr.bf16.mxu0 0
    %1018 = vmatpush1.bf16.msra.mxu0 %v781
    %1019 = vmatprep.subr.bf16.mxu0 0
    %1020 = vmatpush1.bf16.msra.mxu0 %v782
    %1021 = vmatprep.subr.bf16.mxu0 0
    %1022 = vmatpush1.bf16.msra.mxu0 %v783
    %1023 = vmatprep.subr.bf16.mxu0 0
    %1024 = vmatpush1.bf16.msra.mxu0 %v784
    %1025 = vmatprep.subr.bf16.mxu0 0
    %1026 = vmatpush1.bf16.msra.mxu0 %v785
    %1027 = vmatprep.subr.bf16.mxu0 0
    %1028 = vmatpush1.bf16.msra.mxu0 %v786
    %1029 = vmatprep.subr.bf16.mxu0 0
    %1030 = vmatpush1.bf16.msra.mxu0 %v787
    %1031 = vmatprep.subr.bf16.mxu0 0
    %1032 = vmatpush1.bf16.msra.mxu0 %v788
    %1033 = vmatprep.subr.bf16.mxu0 0
    %1034 = vmatpush1.bf16.msra.mxu0 %v789
    %1035 = vmatprep.subr.bf16.mxu0 0
    %1036 = vmatpush1.bf16.msra.mxu0 %v790
    %1037 = vmatprep.subr.bf16.mxu0 0
    %1038 = vmatpush1.bf16.msra.mxu0 %v791
    %1039 = vmatprep.subr.bf16.mxu0 0
    %1040 = vmatpush1.bf16.msra.mxu0 %v792
    %1041 = vmatprep.subr.bf16.mxu0 0
    %1042 = vmatpush1.bf16.msra.mxu0 %v793
    %1043 = vmatprep.subr.bf16.mxu0 0
    %1044 = vmatpush1.bf16.msra.mxu0 %v794
    %1045 = vmatprep.subr.bf16.mxu0 0
    %1046 = vmatpush1.bf16.msra.mxu0 %v795
    %1047 = vmatprep.subr.bf16.mxu0 0
    %1048 = vmatpush1.bf16.msra.mxu0 %v796
    %1049 = vmatprep.mubr.bf16.mxu0 %v326
    %1050 = vmatmul.mubr.bf16.gmra.mrb[0].mxu0 %v325
    %v1051 = vpop.f32.mrb[0].mxu0
    %v1052 = vadd.f32 %v1003, %v1051
    %v1053 = vpop.f32.mrb[0].mxu0
    %v1054 = vpop.f32.mrb[0].mxu0
    %v1055 = vadd.f32 %v1006, %v1054
    %v1056 = vpop.f32.mrb[0].mxu0
    %1057 = vmatprep.mubr.bf16.mxu0 %v339
    %1058 = vmatmul.mubr.bf16.gmra.mrb[0].mxu0 %v338
    %v1059 = vpop.f32.mrb[0].mxu0
    %v1060 = vadd.f32 %v1011, %v1059
    %v1061 = vpop.f32.mrb[0].mxu0
    %v1062 = vpop.f32.mrb[0].mxu0
    %v1063 = vadd.f32 %v1014, %v1062
    %v1064 = vpop.f32.mrb[0].mxu0
    %1065 = vdwg.mxu0
    %1066 = vmatprep.subr.bf16.mxu0 0
    %1067 = vmatpush1.bf16.msra.mxu0 %v797
    %1068 = vmatprep.subr.bf16.mxu0 0
    %1069 = vmatpush1.bf16.msra.mxu0 %v798
    %1070 = vmatprep.subr.bf16.mxu0 0
    %1071 = vmatpush1.bf16.msra.mxu0 %v799
    %1072 = vmatprep.subr.bf16.mxu0 0
    %1073 = vmatpush1.bf16.msra.mxu0 %v800
    %1074 = vmatprep.subr.bf16.mxu0 0
    %1075 = vmatpush1.bf16.msra.mxu0 %v801
    %1076 = vmatprep.subr.bf16.mxu0 0
    %1077 = vmatpush1.bf16.msra.mxu0 %v802
    %1078 = vmatprep.subr.bf16.mxu0 0
    %1079 = vmatpush1.bf16.msra.mxu0 %v803
    %1080 = vmatprep.subr.bf16.mxu0 0
    %1081 = vmatpush1.bf16.msra.mxu0 %v804
    %1082 = vmatprep.subr.bf16.mxu0 0
    %1083 = vmatpush1.bf16.msra.mxu0 %v805
    %1084 = vmatprep.subr.bf16.mxu0 0
    %1085 = vmatpush1.bf16.msra.mxu0 %v806
    %1086 = vmatprep.subr.bf16.mxu0 0
    %1087 = vmatpush1.bf16.msra.mxu0 %v807
    %1088 = vmatprep.subr.bf16.mxu0 0
    %1089 = vmatpush1.bf16.msra.mxu0 %v808
    %1090 = vmatprep.subr.bf16.mxu0 0
    %1091 = vmatpush1.bf16.msra.mxu0 %v809
    %1092 = vmatprep.subr.bf16.mxu0 0
    %1093 = vmatpush1.bf16.msra.mxu0 %v810
    %1094 = vmatprep.subr.bf16.mxu0 0
    %1095 = vmatpush1.bf16.msra.mxu0 %v811
    %1096 = vmatprep.subr.bf16.mxu0 0
    %1097 = vmatpush1.bf16.msra.mxu0 %v812
    %1098 = vmatprep.mubr.bf16.mxu0 %v328
    %1099 = vmatmul.mubr.bf16.gmra.mrb[0].mxu0 %v327
    %v1100 = vpop.f32.mrb[0].mxu0
    %v1101 = vadd.f32 %v1052, %v1100
    %v1102 = vpop.f32.mrb[0].mxu0
    %v1103 = vpop.f32.mrb[0].mxu0
    %v1104 = vadd.f32 %v1055, %v1103
    %v1105 = vpop.f32.mrb[0].mxu0
    %1106 = vmatprep.mubr.bf16.mxu0 %v341
    %1107 = vmatmul.mubr.bf16.gmra.mrb[0].mxu0 %v340
    %v1108 = vpop.f32.mrb[0].mxu0
    %v1109 = vadd.f32 %v1060, %v1108
    %v1110 = vpop.f32.mrb[0].mxu0
    %v1111 = vpop.f32.mrb[0].mxu0
    %v1112 = vadd.f32 %v1063, %v1111
    %v1113 = vpop.f32.mrb[0].mxu0
    %1114 = vdwg.mxu0
    %1115 = vmatprep.subr.bf16.mxu0 0
    %1116 = vmatpush1.bf16.msra.mxu0 %v813
    %1117 = vmatprep.subr.bf16.mxu0 0
    %1118 = vmatpush1.bf16.msra.mxu0 %v814
    %1119 = vmatprep.subr.bf16.mxu0 0
    %1120 = vmatpush1.bf16.msra.mxu0 %v815
    %1121 = vmatprep.subr.bf16.mxu0 0
    %1122 = vmatpush1.bf16.msra.mxu0 %v816
    %1123 = vmatprep.subr.bf16.mxu0 0
    %1124 = vmatpush1.bf16.msra.mxu0 %v817
    %1125 = vmatprep.subr.bf16.mxu0 0
    %1126 = vmatpush1.bf16.msra.mxu0 %v818
    %1127 = vmatprep.subr.bf16.mxu0 0
    %1128 = vmatpush1.bf16.msra.mxu0 %v819
    %1129 = vmatprep.subr.bf16.mxu0 0
    %1130 = vmatpush1.bf16.msra.mxu0 %v820
    %1131 = vmatprep.subr.bf16.mxu0 0
    %1132 = vmatpush1.bf16.msra.mxu0 %v821
    %1133 = vmatprep.subr.bf16.mxu0 0
    %1134 = vmatpush1.bf16.msra.mxu0 %v822
    %1135 = vmatprep.subr.bf16.mxu0 0
    %1136 = vmatpush1.bf16.msra.mxu0 %v823
    %1137 = vmatprep.subr.bf16.mxu0 0
    %1138 = vmatpush1.bf16.msra.mxu0 %v824
    %1139 = vmatprep.subr.bf16.mxu0 0
    %1140 = vmatpush1.bf16.msra.mxu0 %v825
    %1141 = vmatprep.subr.bf16.mxu0 0
    %1142 = vmatpush1.bf16.msra.mxu0 %v826
    %1143 = vmatprep.subr.bf16.mxu0 0
    %1144 = vmatpush1.bf16.msra.mxu0 %v827
    %1145 = vmatprep.subr.bf16.mxu0 0
    %1146 = vmatpush1.bf16.msra.mxu0 %v828
    %1147 = vmatprep.mubr.bf16.mxu0 %v330
    %1148 = vmatmul.mubr.bf16.gmra.mrb[0].mxu0 %v329
    %v1149 = vpop.f32.mrb[0].mxu0
    %v1150 = vadd.f32 %v1101, %v1149
    %v1151 = vpop.f32.mrb[0].mxu0
    %v1152 = vpop.f32.mrb[0].mxu0
    %v1153 = vadd.f32 %v1104, %v1152
    %v1154 = vpop.f32.mrb[0].mxu0
    %1155 = vmatprep.mubr.bf16.mxu0 %v343
    %1156 = vmatmul.mubr.bf16.gmra.mrb[0].mxu0 %v342
    %v1157 = vpop.f32.mrb[0].mxu0
    %v1158 = vadd.f32 %v1109, %v1157
    %v1159 = vpop.f32.mrb[0].mxu0
    %v1160 = vpop.f32.mrb[0].mxu0
    %v1161 = vadd.f32 %v1112, %v1160
    %v1162 = vpop.f32.mrb[0].mxu0
    %1163 = vdwg.mxu0
    %1164 = vmatprep.subr.bf16.mxu0 0
    %1165 = vmatpush1.bf16.msra.mxu0 %v829
    %1166 = vmatprep.subr.bf16.mxu0 0
    %1167 = vmatpush1.bf16.msra.mxu0 %v830
    %1168 = vmatprep.subr.bf16.mxu0 0
    %1169 = vmatpush1.bf16.msra.mxu0 %v831
    %1170 = vmatprep.subr.bf16.mxu0 0
    %1171 = vmatpush1.bf16.msra.mxu0 %v832
    %1172 = vmatprep.subr.bf16.mxu0 0
    %1173 = vmatpush1.bf16.msra.mxu0 %v833
    %1174 = vmatprep.subr.bf16.mxu0 0
    %1175 = vmatpush1.bf16.msra.mxu0 %v834
    %1176 = vmatprep.subr.bf16.mxu0 0
    %1177 = vmatpush1.bf16.msra.mxu0 %v835
    %1178 = vmatprep.subr.bf16.mxu0 0
    %1179 = vmatpush1.bf16.msra.mxu0 %v836
    %1180 = vmatprep.subr.bf16.mxu0 0
    %1181 = vmatpush1.bf16.msra.mxu0 %v837
    %1182 = vmatprep.subr.bf16.mxu0 0
    %1183 = vmatpush1.bf16.msra.mxu0 %v838
    %1184 = vmatprep.subr.bf16.mxu0 0
    %1185 = vmatpush1.bf16.msra.mxu0 %v839
    %1186 = vmatprep.subr.bf16.mxu0 0
    %1187 = vmatpush1.bf16.msra.mxu0 %v840
    %1188 = vmatprep.subr.bf16.mxu0 0
    %1189 = vmatpush1.bf16.msra.mxu0 %v841
    %1190 = vmatprep.subr.bf16.mxu0 0
    %1191 = vmatpush1.bf16.msra.mxu0 %v842
    %1192 = vmatprep.subr.bf16.mxu0 0
    %1193 = vmatpush1.bf16.msra.mxu0 %v843
    %1194 = vmatprep.subr.bf16.mxu0 0
    %1195 = vmatpush1.bf16.msra.mxu0 %v844
    %1196 = vmatprep.mubr.bf16.mxu0 %v332
    %1197 = vmatmul.mubr.bf16.gmra.mrb[0].mxu0 %v331
    %v1198 = vpop.f32.mrb[0].mxu0
    %v1199 = vadd.f32 %v1150, %v1198
    %v1200 = vpop.f32.mrb[0].mxu0
    %v1201 = vpop.f32.mrb[0].mxu0
    %v1202 = vadd.f32 %v1153, %v1201
    %v1203 = vpop.f32.mrb[0].mxu0
    %1204 = vmatprep.mubr.bf16.mxu0 %v345
    %1205 = vmatmul.mubr.bf16.gmra.mrb[0].mxu0 %v344
    %v1206 = vpop.f32.mrb[0].mxu0
    %v1207 = vadd.f32 %v1158, %v1206
    %v1208 = vpop.f32.mrb[0].mxu0
    %v1209 = vpop.f32.mrb[0].mxu0
    %v1210 = vadd.f32 %v1161, %v1209
    %v1211 = vpop.f32.mrb[0].mxu0
    %1212 = vdwg.mxu0
    %1213 = vmatprep.subr.bf16.mxu0 0
    %1214 = vmatpush1.bf16.msra.mxu0 %v845
    %1215 = vmatprep.subr.bf16.mxu0 0
    %1216 = vmatpush1.bf16.msra.mxu0 %v846
    %1217 = vmatprep.subr.bf16.mxu0 0
    %1218 = vmatpush1.bf16.msra.mxu0 %v847
    %1219 = vmatprep.subr.bf16.mxu0 0
    %1220 = vmatpush1.bf16.msra.mxu0 %v848
    %1221 = vmatprep.subr.bf16.mxu0 0
    %1222 = vmatpush1.bf16.msra.mxu0 %v849
    %1223 = vmatprep.subr.bf16.mxu0 0
    %1224 = vmatpush1.bf16.msra.mxu0 %v850
    %1225 = vmatprep.subr.bf16.mxu0 0
    %1226 = vmatpush1.bf16.msra.mxu0 %v851
    %1227 = vmatprep.subr.bf16.mxu0 0
    %1228 = vmatpush1.bf16.msra.mxu0 %v852
    %1229 = vmatprep.subr.bf16.mxu0 0
    %1230 = vmatpush1.bf16.msra.mxu0 %v853
    %1231 = vmatprep.subr.bf16.mxu0 0
    %1232 = vmatpush1.bf16.msra.mxu0 %v854
    %1233 = vmatprep.subr.bf16.mxu0 0
    %1234 = vmatpush1.bf16.msra.mxu0 %v855
    %1235 = vmatprep.subr.bf16.mxu0 0
    %1236 = vmatpush1.bf16.msra.mxu0 %v856
    %1237 = vmatprep.subr.bf16.mxu0 0
    %1238 = vmatpush1.bf16.msra.mxu0 %v857
    %1239 = vmatprep.subr.bf16.mxu0 0
    %1240 = vmatpush1.bf16.msra.mxu0 %v858
    %1241 = vmatprep.subr.bf16.mxu0 0
    %1242 = vmatpush1.bf16.msra.mxu0 %v859
    %1243 = vmatprep.subr.bf16.mxu0 0
    %1244 = vmatpush1.bf16.msra.mxu0 %v860
    %1245 = vmatprep.mubr.bf16.mxu0 %v334
    %1246 = vmatmul.mubr.bf16.gmra.mrb[0].mxu0 %v333
    %v1247 = vpop.f32.mrb[0].mxu0
    %v1248 = vadd.f32 %v1199, %v1247
    %v1249 = vpop.f32.mrb[0].mxu0
    %v1250 = vpop.f32.mrb[0].mxu0
    %v1251 = vadd.f32 %v1202, %v1250
    %v1252 = vpop.f32.mrb[0].mxu0
    %1253 = vmatprep.mubr.bf16.mxu0 %v347
    %1254 = vmatmul.mubr.bf16.gmra.mrb[0].mxu0 %v346
    %v1255 = vpop.f32.mrb[0].mxu0
    %v1256 = vadd.f32 %v1207, %v1255
    %v1257 = vpop.f32.mrb[0].mxu0
    %v1258 = vpop.f32.mrb[0].mxu0
    %v1259 = vadd.f32 %v1210, %v1258
    %v1260 = vpop.f32.mrb[0].mxu0
    %1261 = vdwg.mxu0
    %1262 = vmatprep.subr.bf16.mxu0 0
    %1263 = vmatpush1.bf16.msra.mxu0 %v861
    %1264 = vmatprep.subr.bf16.mxu0 0
    %1265 = vmatpush1.bf16.msra.mxu0 %v862
    %1266 = vmatprep.subr.bf16.mxu0 0
    %1267 = vmatpush1.bf16.msra.mxu0 0
    %1268 = vmatprep.subr.bf16.mxu0 0
    %1269 = vmatpush1.bf16.msra.mxu0 0
    %1270 = vmatprep.subr.bf16.mxu0 0
    %1271 = vmatpush1.bf16.msra.mxu0 0
    %1272 = vmatprep.subr.bf16.mxu0 0
    %1273 = vmatpush1.bf16.msra.mxu0 0
    %1274 = vmatprep.subr.bf16.mxu0 0
    %1275 = vmatpush1.bf16.msra.mxu0 0
    %1276 = vmatprep.subr.bf16.mxu0 0
    %1277 = vmatpush1.bf16.msra.mxu0 0
    %1278 = vmatprep.subr.bf16.mxu0 0
    %1279 = vmatpush1.bf16.msra.mxu0 0
    %1280 = vmatprep.subr.bf16.mxu0 0
    %1281 = vmatpush1.bf16.msra.mxu0 0
    %1282 = vmatprep.subr.bf16.mxu0 0
    %1283 = vmatpush1.bf16.msra.mxu0 0
    %1284 = vmatprep.subr.bf16.mxu0 0
    %1285 = vmatpush1.bf16.msra.mxu0 0
    %1286 = vmatprep.subr.bf16.mxu0 0
    %1287 = vmatpush1.bf16.msra.mxu0 0
    %1288 = vmatprep.subr.bf16.mxu0 0
    %1289 = vmatpush1.bf16.msra.mxu0 0
    %1290 = vmatprep.subr.bf16.mxu0 0
    %1291 = vmatpush1.bf16.msra.mxu0 0
    %1292 = vmatprep.subr.bf16.mxu0 0
    %1293 = vmatpush1.bf16.msra.mxu0 0
    %1294 = vmatprep.mubr.bf16.mxu0 0
    %1295 = vmatmul.mubr.bf16.gmra.mrb[0].mxu0 %v963
    %v1296 = vpop.f32.mrb[0].mxu0
    %v1297 = vadd.f32 %v1248, %v1296
    %v1298 = vpop.f32.mrb[0].mxu0
    %v1299 = vpop.f32.mrb[0].mxu0
    %v1300 = vadd.f32 %v1251, %v1299
    %v1301 = vpop.f32.mrb[0].mxu0
    %1302 = vmatprep.mubr.bf16.mxu0 0
    %1303 = vmatmul.mubr.bf16.gmra.mrb[0].mxu0 %v966
    %v1304 = vpop.f32.mrb[0].mxu0
    %v1305 = vadd.f32 %v1256, %v1304
    %v1306 = vpop.f32.mrb[0].mxu0
    %v1307 = vpop.f32.mrb[0].mxu0
    %v1308 = vadd.f32 %v1259, %v1307
    %v1309 = vpop.f32.mrb[0].mxu0
    %1310 = vdwg.mxu0
    %v1311 = vld [vmem:[%s2] sm:$0x1]
    %v1313 = vlaneseq
    %v1314 = vshrl.u32 %v1313, 7
    %v1315 = vsub.s32 0, %v1314
    %v1316 = vrot.slane %v1311, %v1315
    %v1318 = vmul.f32 %v1297, %v1316
    %v1319 = vmul.f32 %v1300, %v1316
    %v1320 = vmul.f32 %v1305, %v1316
    %v1321 = vmul.f32 %v1308, %v1316
    %v1322 = vld [vmem:[%s3] sm:$0x1]
    %v1324 = vlaneseq
    %v1325 = vshrl.u32 %v1324, 7
    %v1326 = vsub.s32 0, %v1325
    %v1327 = vrot.slane %v1322, %v1326
    %v1329 = vadd.f32 %v1318, %v1327
    %v1330 = vadd.f32 %v1319, %v1327
    %v1331 = vadd.f32 %v1320, %v1327
    %v1332 = vadd.f32 %v1321, %v1327
    %v1333 = vtanh.pop %v1329
    %v1334 = vtanh.pop %v1330
    %v1335 = vtanh.pop %v1331
    %v1336 = vtanh.pop %v1332
    %1337 = vst [vmem:[#allocation2] sm:$0xff] %v1333
    %1338 = vst [vmem:[#allocation2 + $0x8] sm:$0xff] %v1334
    %1339 = vst [vmem:[#allocation2 + $0x10] sm:$0xff] %v1335
    %1340 = vst [vmem:[#allocation2 + $0x18] sm:$0xff] %v1336
    // Predicated region
    $region18: #{g1_forward.19} parent=1 // pred_check
      _
    $region19: #{g1_forward.19} parent=1 // pred_check_branch
      %1342 = sbr.rel (0) target = $region21
    $region20: #{g1_forward.19} parent=1 // pred_region
      %s1344 = ssub.s32 512, 512
      %1345 = vsyncadd [#allocation3], %s1344
      %s1346 = sshll.u32 [#allocation2], 4
      %s1347 = int_to_ptr.vmem [resolvable:$true] %s1346
      %1352 = dma.vmem_to_hbm [thread:$0]  %s1347, 512, %s4, [#allocation3], 128, 128, 8
    $region21: #{g1_forward.19} parent=1 // pred_fallthru
      _
    // Predicated region
    $region22: #{g1_forward.19} parent=1 // pred_check
      _
    $region23: #{g1_forward.19} parent=1 // pred_check_branch
      %1354 = sbr.rel (0) target = $region25
    $region24: #{g1_forward.19} parent=1 // pred_region
      %1355 = dma.done [#allocation3], 512
    $region25: #{g1_forward.19} parent=1 // pred_fallthru
      _
    %1356 = vsyncpa [#allocation3], 1

</llo_original>
